<compile_context>
chip_gen: v6e
topology: v6e:2x2x1
jax: 0.10.0
libtpu: 0.0.40
codegen_flags: <defaults>
</compile_context>

<pallas_src>
import math
import functools

import jax
import jax.numpy as jnp
from jax.experimental import pallas as pl
from jax.experimental.pallas import tpu as pltpu

BN_EPS = 1e-5
LN_EPS = 1e-5
BN_SCALE = 1.0 / math.sqrt(1.0 + BN_EPS)  # eval-mode BatchNorm1d with fresh running stats


# ----------------------------- Pallas kernels -----------------------------

def _encoder_kernel(x_ref, win_ref, bin_ref, pe_ref,
                    wqkv_ref, bqkv_ref, wo_ref, bo_ref, ln_ref,
                    w1_ref, b1_ref, w2_ref, b2_ref,
                    h_out_ref, hlast_ref, attn_ref, h_sc, *, B, S, H, hd, nlayers):
    """One grid step == one transformer encoder layer. Hidden state stays resident in VMEM.

    The trunk (Linear -> BN(eval) -> +PE -> BN(eval)) is fused into the layer==0 step so the
    whole encoder stack is a single pallas_call."""
    layer = pl.program_id(0)

    @pl.when(layer == 0)
    def _():
        y = jnp.dot(x_ref[...], win_ref[...], preferred_element_type=jnp.float32) + bin_ref[...]
        # pe_ref is pre-scaled by BN_SCALE (second BN of the trunk) at init time
        h_sc[...] = y * (BN_SCALE * BN_SCALE) + pe_ref[...]

    E = H * hd
    h = h_sc[...]                                                   # (B*S, E), batch-major rows

    # --- fused QKV projection: one (B*S,E) x (E,3E) MXU pass ---
    qkv = jnp.dot(h, wqkv_ref[0], preferred_element_type=jnp.float32) + bqkv_ref[0]
    q = qkv[:, 0 * E:1 * E]
    k = qkv[:, 1 * E:2 * E]
    v = qkv[:, 2 * E:3 * E]

    # --- multi-head attention, fully unrolled (B, H are tiny compile-time ints) ---
    scale = 1.0 / math.sqrt(hd)
    inv_h = 1.0 / H
    out_rows = []
    attn_rows = []
    for b in range(B):
        qb = q[b * S:(b + 1) * S, :]
        kb = k[b * S:(b + 1) * S, :]
        vb = v[b * S:(b + 1) * S, :]
        attn_acc = jnp.zeros((S, S), jnp.float32)
        head_outs = []
        for hh in range(H):
            qh = qb[:, hh * hd:(hh + 1) * hd]
            kh = kb[:, hh * hd:(hh + 1) * hd]
            vh = vb[:, hh * hd:(hh + 1) * hd]
            s = jnp.dot(qh, kh.T, preferred_element_type=jnp.float32) * scale
            s = s - jnp.max(s, axis=-1, keepdims=True)
            p = jnp.exp(s)
            p = p * pl.reciprocal(jnp.sum(p, axis=-1, keepdims=True), approx=True)
            attn_acc = attn_acc + p
            head_outs.append(jnp.dot(p, vh, preferred_element_type=jnp.float32))
        out_rows.append(jnp.concatenate(head_outs, axis=-1))         # (S, E)
        attn_rows.append(attn_acc * inv_h)                           # (S, S) head-averaged
    o = jnp.concatenate(out_rows, axis=0)                            # (B*S, E)
    attn_out = jnp.concatenate(attn_rows, axis=0)                    # (B*S, S)

    # --- output projection + residual + LayerNorm1 ---
    o = jnp.dot(o, wo_ref[0], preferred_element_type=jnp.float32) + bo_ref[0]
    ln = ln_ref[0]                                                   # (4, E): g1, b1, g2, b2
    h1 = h + o
    mu = jnp.mean(h1, axis=-1, keepdims=True)
    var = jnp.mean((h1 - mu) ** 2, axis=-1, keepdims=True)
    h1 = (h1 - mu) * jax.lax.rsqrt(var + LN_EPS) * ln[0:1, :] + ln[1:2, :]

    # --- FFN + residual + LayerNorm2 ---
    ff = jnp.dot(h1, w1_ref[0], preferred_element_type=jnp.float32) + b1_ref[0]
    ff = jnp.maximum(ff, 0.0)
    ff = jnp.dot(ff, w2_ref[0], preferred_element_type=jnp.float32) + b2_ref[0]
    h2 = h1 + ff
    mu = jnp.mean(h2, axis=-1, keepdims=True)
    var = jnp.mean((h2 - mu) ** 2, axis=-1, keepdims=True)
    h2 = (h2 - mu) * jax.lax.rsqrt(var + LN_EPS) * ln[2:3, :] + ln[3:4, :]

    # carry
    h_sc[...] = h2

    # outputs: constant output index maps -> single HBM writeback at grid end, so only the
    # final layer needs to populate them.
    @pl.when(layer == nlayers - 1)
    def _():
        h_out_ref[...] = h2
        attn_ref[...] = attn_out
        hlast_ref[...] = jnp.concatenate(
            [h2[b * S + S - 1: b * S + S, :] for b in range(B)], axis=0)  # (B, E), seq pos S-1


def _mlp3_kernel(x_ref, w1_ref, b1_ref, w2_ref, b2_ref, w3_ref, b3_ref, o_ref,
                 *, relu12, in_scale, mid_scale):
    # fused 3-layer MLP head; eval-mode BatchNorm1d folded as uniform scales.
    h = x_ref[...] * in_scale
    h = jnp.dot(h, w1_ref[...], preferred_element_type=jnp.float32) + b1_ref[...]
    if relu12:
        h = jnp.maximum(h, 0.0)
    h = h * mid_scale
    h = jnp.dot(h, w2_ref[...], preferred_element_type=jnp.float32) + b2_ref[...]
    if relu12:
        h = jnp.maximum(h, 0.0)
    h = h * mid_scale
    o_ref[...] = jnp.dot(h, w3_ref[...], preferred_element_type=jnp.float32) + b3_ref[...]


# ----------------------------- kernel wrappers -----------------------------

def encoder_forward(x2d, w_in, b_in, pe_tiled, params, *, B, S, H, nlayers, nhid):
    BS, I = x2d.shape
    E = w_in.shape[1]
    hd = E // H
    kernel = functools.partial(_encoder_kernel, B=B, S=S, H=H, hd=hd, nlayers=nlayers)
    out_shape = (jax.ShapeDtypeStruct((BS, E), jnp.float32),   # final hidden states
                 jax.ShapeDtypeStruct((B, E), jnp.float32),    # last seq position per batch
                 jax.ShapeDtypeStruct((BS, S), jnp.float32))   # last layer head-avg attn
    return pl.pallas_call(
        kernel,
        grid=(nlayers,),
        out_shape=out_shape,
        in_specs=[
            # trunk inputs (constant index maps -> loaded once, held in VMEM)
            pl.BlockSpec((BS, I), lambda l: (0, 0)),
            pl.BlockSpec((I, E), lambda l: (0, 0)),
            pl.BlockSpec((1, E), lambda l: (0, 0)),
            pl.BlockSpec((BS, E), lambda l: (0, 0)),
            # per-layer stacked weights (grid axis selects the layer slice)
            pl.BlockSpec((1, E, 3 * E), lambda l: (l, 0, 0)),
            pl.BlockSpec((1, 1, 3 * E), lambda l: (l, 0, 0)),
            pl.BlockSpec((1, E, E), lambda l: (l, 0, 0)),
            pl.BlockSpec((1, 1, E), lambda l: (l, 0, 0)),
            pl.BlockSpec((1, 4, E), lambda l: (l, 0, 0)),
            pl.BlockSpec((1, E, nhid), lambda l: (l, 0, 0)),
            pl.BlockSpec((1, 1, nhid), lambda l: (l, 0, 0)),
            pl.BlockSpec((1, nhid, E), lambda l: (l, 0, 0)),
            pl.BlockSpec((1, 1, E), lambda l: (l, 0, 0)),
        ],
        out_specs=(pl.BlockSpec((BS, E), lambda l: (0, 0)),
                   pl.BlockSpec((B, E), lambda l: (0, 0)),
                   pl.BlockSpec((BS, S), lambda l: (0, 0))),
        scratch_shapes=[pltpu.VMEM((BS, E), jnp.float32)],
        compiler_params=pltpu.CompilerParams(dimension_semantics=("arbitrary",)),
    )(x2d, w_in, b_in, pe_tiled,
      params['wqkv'], params['bqkv'], params['wo'], params['bo'], params['ln'],
      params['w1'], params['b1'], params['w2'], params['b2'])


def mlp3_forward(x, w1, b1, w2, b2, w3, b3, *, relu12, in_scale, mid_scale):
    M, K = x.shape
    N1, N2, N3 = w1.shape[1], w2.shape[1], w3.shape[1]
    kernel = functools.partial(_mlp3_kernel, relu12=relu12,
                               in_scale=in_scale, mid_scale=mid_scale)
    return pl.pallas_call(
        kernel,
        grid=(1,),
        out_shape=jax.ShapeDtypeStruct((M, N3), jnp.float32),
        in_specs=[pl.BlockSpec((M, K), lambda i: (0, 0)),
                  pl.BlockSpec((K, N1), lambda i: (0, 0)),
                  pl.BlockSpec((1, N1), lambda i: (0, 0)),
                  pl.BlockSpec((N1, N2), lambda i: (0, 0)),
                  pl.BlockSpec((1, N2), lambda i: (0, 0)),
                  pl.BlockSpec((N2, N3), lambda i: (0, 0)),
                  pl.BlockSpec((1, N3), lambda i: (0, 0))],
        out_specs=pl.BlockSpec((M, N3), lambda i: (0, 0)),
    )(x, w1, b1.reshape(1, N1), w2, b2.reshape(1, N2), w3, b3.reshape(1, N3))


# ----------------------------- model -----------------------------

def _init_linear(key, fan_in, fan_out):
    k1, k2 = jax.random.split(key)
    bound = 1.0 / math.sqrt(fan_in)
    w = jax.random.uniform(k1, (fan_in, fan_out), jnp.float32, -bound, bound)
    b = jax.random.uniform(k2, (fan_out,), jnp.float32, -bound, bound)
    return w, b


def make_positional_encoding(seq_len, d_model):
    max_len = max(5000, seq_len)
    pos = jnp.arange(max_len, dtype=jnp.float32)[:, None]
    div = jnp.exp(jnp.arange(0, d_model, 2, dtype=jnp.float32)
                  * (-math.log(10000.0) / d_model))
    pe = jnp.zeros((max_len, d_model), jnp.float32)
    pe = pe.at[:, 0::2].set(jnp.sin(pos * div))
    pe = pe.at[:, 1::2].set(jnp.cos(pos * div))  # d_model assumed even (matches torch branch)
    return pe[:seq_len]                          # (seq_len, d_model)


class MultitaskTransformerModel:
    """Inference-mode port of the PyTorch MultitaskTransformerModel (task_type='classification')."""

    def __init__(self, task_type, nclasses, seq_len, batch, input_size, emb_size,
                 nhead, nhid, nhid_tar, nhid_task, nlayers, key):
        assert task_type == 'classification'
        assert emb_size % nhead == 0
        self.nhead = nhead
        self.emb_size = emb_size
        self.nhid = nhid
        self.nlayers = nlayers
        self.batch = batch
        self.seq_len = seq_len

        keys = jax.random.split(key, 7 + 6 * nlayers)
        ki = iter(keys)

        # trunk_net
        self.W_in, b_in = _init_linear(next(ki), input_size, emb_size)
        self.b_in = b_in.reshape(1, emb_size)
        pe = make_positional_encoding(seq_len, emb_size)              # (S, E)
        # pre-scale by BN_SCALE (second BN) and tile to the batch-major (B*S, E) row layout
        self.pe_tiled = jnp.tile(pe * BN_SCALE, (batch, 1))

        # transformer encoder layers, weights stacked along a leading layer axis.
        # TODO(synk): the custom `transformer.TransformerEncoder` source is not provided;
        # standard nn.TransformerEncoderLayer semantics (post-norm, relu) are used and the
        # last layer's head-averaged attention weights are returned as `attn`.
        wqkv, bqkv, wo, bo, w1, b1, w2, b2, ln = [], [], [], [], [], [], [], [], []
        for _ in range(nlayers):
            wq, bq_ = _init_linear(next(ki), emb_size, emb_size)
            wk, bk_ = _init_linear(next(ki), emb_size, emb_size)
            wv, bv_ = _init_linear(next(ki), emb_size, emb_size)
            wo_i, bo_i = _init_linear(next(ki), emb_size, emb_size)
            w1_i, b1_i = _init_linear(next(ki), emb_size, nhid)
            w2_i, b2_i = _init_linear(next(ki), nhid, emb_size)
            wqkv.append(jnp.concatenate([wq, wk, wv], axis=1))        # (E, 3E)
            bqkv.append(jnp.concatenate([bq_, bk_, bv_]))             # (3E,)
            wo.append(wo_i); bo.append(bo_i)
            w1.append(w1_i); b1.append(b1_i)
            w2.append(w2_i); b2.append(b2_i)
            ln.append(jnp.stack([jnp.ones((emb_size,), jnp.float32),
                                 jnp.zeros((emb_size,), jnp.float32),
                                 jnp.ones((emb_size,), jnp.float32),
                                 jnp.zeros((emb_size,), jnp.float32)]))  # (4, E)
        self.enc = {
            'wqkv': jnp.stack(wqkv),                    # (L, E, 3E)
            'bqkv': jnp.stack(bqkv)[:, None, :],        # (L, 1, 3E)
            'wo':   jnp.stack(wo),                      # (L, E, E)
            'bo':   jnp.stack(bo)[:, None, :],          # (L, 1, E)
            'w1':   jnp.stack(w1),                      # (L, E, nhid)
            'b1':   jnp.stack(b1)[:, None, :],          # (L, 1, nhid)
            'w2':   jnp.stack(w2),                      # (L, nhid, E)
            'b2':   jnp.stack(b2)[:, None, :],          # (L, 1, E)
            'ln':   jnp.stack(ln),                      # (L, 4, E)
        }

        # tar_net (reconstruction head)
        self.Wt1, self.bt1 = _init_linear(next(ki), emb_size, nhid_tar)
        self.Wt2, self.bt2 = _init_linear(next(ki), nhid_tar, nhid_tar)
        self.Wt3, self.bt3 = _init_linear(next(ki), nhid_tar, input_size)

        # class_net
        self.Wc1, self.bc1 = _init_linear(next(ki), emb_size, nhid_task)
        self.Wc2, self.bc2 = _init_linear(next(ki), nhid_task, nhid_task)
        self.Wc3, self.bc3 = _init_linear(next(ki), nhid_task, nclasses)

    def forward(self, x, task_type):
        # x: (batch, seq_len, input_size)
        B, S, I = x.shape
        assert B == self.batch and S == self.seq_len
        x2d = x.reshape(B * S, I)                       # batch-major rows (b*S + s), free reshape

        # 1) trunk (fused into layer 0) + all encoder layers in ONE kernel
        h, h_last, attn2d = encoder_forward(x2d, self.W_in, self.b_in, self.pe_tiled,
                                            self.enc, B=B, S=S, H=self.nhead,
                                            nlayers=self.nlayers, nhid=self.nhid)
        attn = attn2d.reshape(B, S, S)                  # last layer, head-averaged

        # 2) head (self.batch_norm + BN layers inside the heads folded as scales)
        if task_type == 'classification':
            output = mlp3_forward(h_last, self.Wc1, self.bc1, self.Wc2, self.bc2,
                                  self.Wc3, self.bc3, relu12=True,
                                  in_scale=BN_SCALE, mid_scale=BN_SCALE)   # (B, nclasses)
        elif task_type == 'reconstruction':
            t = mlp3_forward(h, self.Wt1, self.bt1, self.Wt2, self.bt2,
                             self.Wt3, self.bt3, relu12=False,
                             in_scale=BN_SCALE, mid_scale=BN_SCALE)        # (B*S, I)
            output = t.reshape(B, S, I)
        else:
            # TODO(synk): reg_net is not constructed when task_type=='classification'
            # (matches PyTorch, which would raise AttributeError here).
            raise ValueError("regression head not built for classification-task model")
        return output, attn


# ----------------------------- demo -----------------------------

if __name__ == "__main__":
    key = jax.random.PRNGKey(0)
    kparam, kx = jax.random.split(key)

    batch, seq_len, input_size = 2, 8, 4
    emb_size, nhead, nhid = 32, 4, 64
    nhid_tar, nhid_task, nclasses, nlayers = 32, 16, 3, 2

    model = MultitaskTransformerModel('classification', nclasses, seq_len, batch,
                                      input_size, emb_size, nhead, nhid,
                                      nhid_tar, nhid_task, nlayers, kparam)

    x = jax.random.normal(kx, (batch, seq_len, input_size), jnp.float32)

    out_cls, attn = model.forward(x, 'classification')
    out_rec, _ = model.forward(x, 'reconstruction')
    jax.block_until_ready((out_cls, attn, out_rec))

    assert out_cls.shape == (batch, nclasses)
    assert attn.shape == (batch, seq_len, seq_len)
    assert out_rec.shape == (batch, seq_len, input_size)
    assert bool(jnp.all(jnp.isfinite(out_cls)))
    assert bool(jnp.all(jnp.isfinite(attn)))
    assert bool(jnp.all(jnp.isfinite(out_rec)))
    # head-averaged attention rows must sum to ~1 (approx reciprocal softmax)
    assert bool(jnp.all(jnp.abs(attn.sum(-1) - 1.0) < 1e-2))
    print("KERNEL_OK")
</pallas_src>

<mosaic_0001>
module attributes {stable_mosaic.version = 11 : i64} {
  func.func @_encoder_kernel(%arg0: i32, %arg1: memref<16x4xf32, #tpu.memory_space<vmem>>, %arg2: memref<4x32xf32, #tpu.memory_space<vmem>>, %arg3: memref<1x32xf32, #tpu.memory_space<vmem>>, %arg4: memref<16x32xf32, #tpu.memory_space<vmem>>, %arg5: memref<1x32x96xf32, #tpu.memory_space<vmem>>, %arg6: memref<1x1x96xf32, #tpu.memory_space<vmem>>, %arg7: memref<1x32x32xf32, #tpu.memory_space<vmem>>, %arg8: memref<1x1x32xf32, #tpu.memory_space<vmem>>, %arg9: memref<1x4x32xf32, #tpu.memory_space<vmem>>, %arg10: memref<1x32x64xf32, #tpu.memory_space<vmem>>, %arg11: memref<1x1x64xf32, #tpu.memory_space<vmem>>, %arg12: memref<1x64x32xf32, #tpu.memory_space<vmem>>, %arg13: memref<1x1x32xf32, #tpu.memory_space<vmem>>, %arg14: memref<16x32xf32, #tpu.memory_space<vmem>>, %arg15: memref<2x32xf32, #tpu.memory_space<vmem>>, %arg16: memref<16x8xf32, #tpu.memory_space<vmem>>, %arg17: memref<16x32xf32, #tpu.memory_space<vmem>>) attributes {dimension_semantics = [#tpu.dimension_semantics<arbitrary>], iteration_bounds = array<i64: 2>, scalar_prefetch = 0 : i64, scratch_operands = 1 : i64, tpu.core_type = #tpu.core_type<tc>, window_params = [{pipeline_mode = #tpu.pipeline_mode<synchronous>, transform_indices = @transform_0, window_bounds = array<i64: 16, 4>}, {pipeline_mode = #tpu.pipeline_mode<synchronous>, transform_indices = @transform_1, window_bounds = array<i64: 4, 32>}, {pipeline_mode = #tpu.pipeline_mode<synchronous>, transform_indices = @transform_2, window_bounds = array<i64: 1, 32>}, {pipeline_mode = #tpu.pipeline_mode<synchronous>, transform_indices = @transform_3, window_bounds = array<i64: 16, 32>}, {transform_indices = @transform_4, window_bounds = array<i64: 1, 32, 96>}, {transform_indices = @transform_5, window_bounds = array<i64: 1, 1, 96>}, {transform_indices = @transform_6, window_bounds = array<i64: 1, 32, 32>}, {transform_indices = @transform_7, window_bounds = array<i64: 1, 1, 32>}, {transform_indices = @transform_8, window_bounds = array<i64: 1, 4, 32>}, {transform_indices = @transform_9, window_bounds = array<i64: 1, 32, 64>}, {transform_indices = @transform_10, window_bounds = array<i64: 1, 1, 64>}, {transform_indices = @transform_11, window_bounds = array<i64: 1, 64, 32>}, {transform_indices = @transform_12, window_bounds = array<i64: 1, 1, 32>}, {pipeline_mode = #tpu.pipeline_mode<synchronous>, transform_indices = @transform_13, window_bounds = array<i64: 16, 32>}, {pipeline_mode = #tpu.pipeline_mode<synchronous>, transform_indices = @transform_14, window_bounds = array<i64: 2, 32>}, {pipeline_mode = #tpu.pipeline_mode<synchronous>, transform_indices = @transform_15, window_bounds = array<i64: 16, 8>}]} {
    %c0_i32 = arith.constant 0 : i32
    %0 = arith.cmpi eq, %arg0, %c0_i32 : i32
    %1 = arith.extui %0 : i1 to i32
    %c0_i32_0 = arith.constant 0 : i32
    %2 = arith.cmpi ne, %1, %c0_i32_0 : i32
    scf.if %2 {
      %c0_90 = arith.constant 0 : index
      %c0_91 = arith.constant 0 : index
      %261 = vector.load %arg1[%c0_90, %c0_91] : memref<16x4xf32, #tpu.memory_space<vmem>>, vector<16x4xf32>
      %c0_92 = arith.constant 0 : index
      %c0_93 = arith.constant 0 : index
      %262 = vector.load %arg2[%c0_92, %c0_93] : memref<4x32xf32, #tpu.memory_space<vmem>>, vector<4x32xf32>
      %cst_94 = arith.constant dense<0.000000e+00> : vector<16x32xf32>
      %263 = tpu.matmul %261, %262, %cst_94 {dimension_numbers = #tpu.dot_dimension_numbers<[1], [0], [0], [1], [0, 0, 1, 1], [], []>} : vector<16x4xf32>, vector<4x32xf32>, vector<16x32xf32> -> vector<16x32xf32>
      %c0_95 = arith.constant 0 : index
      %c0_96 = arith.constant 0 : index
      %264 = vector.load %arg3[%c0_95, %c0_96] : memref<1x32xf32, #tpu.memory_space<vmem>>, vector<1x32xf32>
      %265 = vector.broadcast %264 : vector<1x32xf32> to vector<16x32xf32>
      %266 = arith.addf %263, %265 : vector<16x32xf32>
      %cst_97 = arith.constant 0.999989986 : f32
      %267 = vector.broadcast %cst_97 : f32 to vector<16x32xf32>
      %268 = arith.mulf %266, %267 : vector<16x32xf32>
      %c0_98 = arith.constant 0 : index
      %c0_99 = arith.constant 0 : index
      %269 = vector.load %arg4[%c0_98, %c0_99] : memref<16x32xf32, #tpu.memory_space<vmem>>, vector<16x32xf32>
      %270 = arith.addf %268, %269 : vector<16x32xf32>
      %c0_100 = arith.constant 0 : index
      %c0_101 = arith.constant 0 : index
      %271 = vector.load %arg17[%c0_100, %c0_101] : memref<16x32xf32, #tpu.memory_space<vmem>>, vector<16x32xf32>
      tpu.vector_store %arg17[%c0_100, %c0_101], %270 {strides = array<i32>} : memref<16x32xf32, #tpu.memory_space<vmem>>, vector<16x32xf32>,
    } else {
    }
    %c0 = arith.constant 0 : index
    %c0_1 = arith.constant 0 : index
    %3 = vector.load %arg17[%c0, %c0_1] : memref<16x32xf32, #tpu.memory_space<vmem>>, vector<16x32xf32>
    %c0_2 = arith.constant 0 : index
    %c0_3 = arith.constant 0 : index
    %c0_4 = arith.constant 0 : index
    %4 = vector.load %arg5[%c0_2, %c0_3, %c0_4] : memref<1x32x96xf32, #tpu.memory_space<vmem>>, vector<1x32x96xf32>
    %5 = vector.shape_cast %4 : vector<1x32x96xf32> to vector<32x96xf32>
    %cst = arith.constant dense<0.000000e+00> : vector<16x96xf32>
    %6 = tpu.matmul %3, %5, %cst {dimension_numbers = #tpu.dot_dimension_numbers<[1], [0], [0], [1], [0, 0, 1, 1], [], []>} : vector<16x32xf32>, vector<32x96xf32>, vector<16x96xf32> -> vector<16x96xf32>
    %c0_5 = arith.constant 0 : index
    %c0_6 = arith.constant 0 : index
    %c0_7 = arith.constant 0 : index
    %7 = vector.load %arg6[%c0_5, %c0_6, %c0_7] : memref<1x1x96xf32, #tpu.memory_space<vmem>>, vector<1x1x96xf32>
    %8 = vector.shape_cast %7 : vector<1x1x96xf32> to vector<1x96xf32>
    %9 = vector.broadcast %8 : vector<1x96xf32> to vector<16x96xf32>
    %10 = arith.addf %6, %9 : vector<16x96xf32>
    %11 = vector.extract_strided_slice %10 {offsets = [0, 0], sizes = [16, 32], strides = [1, 1]} : vector<16x96xf32> to vector<16x32xf32>
    %12 = vector.extract_strided_slice %10 {offsets = [0, 32], sizes = [16, 32], strides = [1, 1]} : vector<16x96xf32> to vector<16x32xf32>
    %13 = vector.extract_strided_slice %10 {offsets = [0, 64], sizes = [16, 32], strides = [1, 1]} : vector<16x96xf32> to vector<16x32xf32>
    %14 = vector.extract_strided_slice %11 {offsets = [0, 0], sizes = [8, 32], strides = [1, 1]} : vector<16x32xf32> to vector<8x32xf32>
    %15 = vector.extract_strided_slice %12 {offsets = [0, 0], sizes = [8, 32], strides = [1, 1]} : vector<16x32xf32> to vector<8x32xf32>
    %16 = vector.extract_strided_slice %13 {offsets = [0, 0], sizes = [8, 32], strides = [1, 1]} : vector<16x32xf32> to vector<8x32xf32>
    %cst_8 = arith.constant 0.000000e+00 : f32
    %17 = vector.broadcast %cst_8 : f32 to vector<8x8xf32>
    %18 = vector.extract_strided_slice %14 {offsets = [0, 0], sizes = [8, 8], strides = [1, 1]} : vector<8x32xf32> to vector<8x8xf32>
    %19 = vector.extract_strided_slice %15 {offsets = [0, 0], sizes = [8, 8], strides = [1, 1]} : vector<8x32xf32> to vector<8x8xf32>
    %20 = vector.extract_strided_slice %16 {offsets = [0, 0], sizes = [8, 8], strides = [1, 1]} : vector<8x32xf32> to vector<8x8xf32>
    %21 = tpu.transpose %19, [1, 0] : vector<8x8xf32> -> vector<8x8xf32>
    %cst_9 = arith.constant dense<0.000000e+00> : vector<8x8xf32>
    %22 = tpu.matmul %18, %21, %cst_9 {dimension_numbers = #tpu.dot_dimension_numbers<[1], [0], [0], [1], [0, 0, 1, 1], [], []>} : vector<8x8xf32>, vector<8x8xf32>, vector<8x8xf32> -> vector<8x8xf32>
    %cst_10 = arith.constant 0.353553385 : f32
    %23 = vector.broadcast %cst_10 : f32 to vector<8x8xf32>
    %24 = arith.mulf %22, %23 : vector<8x8xf32>
    %cst_11 = arith.constant dense<0xFF800000> : vector<8xf32>
    %25 = vector.multi_reduction <maximumf>, %24, %cst_11 [1] : vector<8x8xf32> to vector<8xf32>
    %26 = vector.shape_cast %25 : vector<8xf32> to vector<8x1xf32>
    %27 = vector.broadcast %26 : vector<8x1xf32> to vector<8x8xf32>
    %28 = arith.subf %24, %27 : vector<8x8xf32>
    %29 = math.exp %28 : vector<8x8xf32>
    %cst_12 = arith.constant dense<0.000000e+00> : vector<8xf32>
    %30 = vector.multi_reduction <add>, %29, %cst_12 [1] : vector<8x8xf32> to vector<8xf32>
    %31 = vector.shape_cast %30 : vector<8xf32> to vector<8x1xf32>
    %32 = tpu.reciprocal %31 {approx = true} : vector<8x1xf32> -> vector<8x1xf32>
    %33 = vector.broadcast %32 : vector<8x1xf32> to vector<8x8xf32>
    %34 = arith.mulf %29, %33 : vector<8x8xf32>
    %35 = arith.addf %17, %34 : vector<8x8xf32>
    %cst_13 = arith.constant dense<0.000000e+00> : vector<8x8xf32>
    %36 = tpu.matmul %34, %20, %cst_13 {dimension_numbers = #tpu.dot_dimension_numbers<[1], [0], [0], [1], [0, 0, 1, 1], [], []>} : vector<8x8xf32>, vector<8x8xf32>, vector<8x8xf32> -> vector<8x8xf32>
    %37 = vector.extract_strided_slice %14 {offsets = [0, 8], sizes = [8, 8], strides = [1, 1]} : vector<8x32xf32> to vector<8x8xf32>
    %38 = vector.extract_strided_slice %15 {offsets = [0, 8], sizes = [8, 8], strides = [1, 1]} : vector<8x32xf32> to vector<8x8xf32>
    %39 = vector.extract_strided_slice %16 {offsets = [0, 8], sizes = [8, 8], strides = [1, 1]} : vector<8x32xf32> to vector<8x8xf32>
    %40 = tpu.transpose %38, [1, 0] : vector<8x8xf32> -> vector<8x8xf32>
    %cst_14 = arith.constant dense<0.000000e+00> : vector<8x8xf32>
    %41 = tpu.matmul %37, %40, %cst_14 {dimension_numbers = #tpu.dot_dimension_numbers<[1], [0], [0], [1], [0, 0, 1, 1], [], []>} : vector<8x8xf32>, vector<8x8xf32>, vector<8x8xf32> -> vector<8x8xf32>
    %cst_15 = arith.constant 0.353553385 : f32
    %42 = vector.broadcast %cst_15 : f32 to vector<8x8xf32>
    %43 = arith.mulf %41, %42 : vector<8x8xf32>
    %cst_16 = arith.constant dense<0xFF800000> : vector<8xf32>
    %44 = vector.multi_reduction <maximumf>, %43, %cst_16 [1] : vector<8x8xf32> to vector<8xf32>
    %45 = vector.shape_cast %44 : vector<8xf32> to vector<8x1xf32>
    %46 = vector.broadcast %45 : vector<8x1xf32> to vector<8x8xf32>
    %47 = arith.subf %43, %46 : vector<8x8xf32>
    %48 = math.exp %47 : vector<8x8xf32>
    %cst_17 = arith.constant dense<0.000000e+00> : vector<8xf32>
    %49 = vector.multi_reduction <add>, %48, %cst_17 [1] : vector<8x8xf32> to vector<8xf32>
    %50 = vector.shape_cast %49 : vector<8xf32> to vector<8x1xf32>
    %51 = tpu.reciprocal %50 {approx = true} : vector<8x1xf32> -> vector<8x1xf32>
    %52 = vector.broadcast %51 : vector<8x1xf32> to vector<8x8xf32>
    %53 = arith.mulf %48, %52 : vector<8x8xf32>
    %54 = arith.addf %35, %53 : vector<8x8xf32>
    %cst_18 = arith.constant dense<0.000000e+00> : vector<8x8xf32>
    %55 = tpu.matmul %53, %39, %cst_18 {dimension_numbers = #tpu.dot_dimension_numbers<[1], [0], [0], [1], [0, 0, 1, 1], [], []>} : vector<8x8xf32>, vector<8x8xf32>, vector<8x8xf32> -> vector<8x8xf32>
    %56 = vector.extract_strided_slice %14 {offsets = [0, 16], sizes = [8, 8], strides = [1, 1]} : vector<8x32xf32> to vector<8x8xf32>
    %57 = vector.extract_strided_slice %15 {offsets = [0, 16], sizes = [8, 8], strides = [1, 1]} : vector<8x32xf32> to vector<8x8xf32>
    %58 = vector.extract_strided_slice %16 {offsets = [0, 16], sizes = [8, 8], strides = [1, 1]} : vector<8x32xf32> to vector<8x8xf32>
    %59 = tpu.transpose %57, [1, 0] : vector<8x8xf32> -> vector<8x8xf32>
    %cst_19 = arith.constant dense<0.000000e+00> : vector<8x8xf32>
    %60 = tpu.matmul %56, %59, %cst_19 {dimension_numbers = #tpu.dot_dimension_numbers<[1], [0], [0], [1], [0, 0, 1, 1], [], []>} : vector<8x8xf32>, vector<8x8xf32>, vector<8x8xf32> -> vector<8x8xf32>
    %cst_20 = arith.constant 0.353553385 : f32
    %61 = vector.broadcast %cst_20 : f32 to vector<8x8xf32>
    %62 = arith.mulf %60, %61 : vector<8x8xf32>
    %cst_21 = arith.constant dense<0xFF800000> : vector<8xf32>
    %63 = vector.multi_reduction <maximumf>, %62, %cst_21 [1] : vector<8x8xf32> to vector<8xf32>
    %64 = vector.shape_cast %63 : vector<8xf32> to vector<8x1xf32>
    %65 = vector.broadcast %64 : vector<8x1xf32> to vector<8x8xf32>
    %66 = arith.subf %62, %65 : vector<8x8xf32>
    %67 = math.exp %66 : vector<8x8xf32>
    %cst_22 = arith.constant dense<0.000000e+00> : vector<8xf32>
    %68 = vector.multi_reduction <add>, %67, %cst_22 [1] : vector<8x8xf32> to vector<8xf32>
    %69 = vector.shape_cast %68 : vector<8xf32> to vector<8x1xf32>
    %70 = tpu.reciprocal %69 {approx = true} : vector<8x1xf32> -> vector<8x1xf32>
    %71 = vector.broadcast %70 : vector<8x1xf32> to vector<8x8xf32>
    %72 = arith.mulf %67, %71 : vector<8x8xf32>
    %73 = arith.addf %54, %72 : vector<8x8xf32>
    %cst_23 = arith.constant dense<0.000000e+00> : vector<8x8xf32>
    %74 = tpu.matmul %72, %58, %cst_23 {dimension_numbers = #tpu.dot_dimension_numbers<[1], [0], [0], [1], [0, 0, 1, 1], [], []>} : vector<8x8xf32>, vector<8x8xf32>, vector<8x8xf32> -> vector<8x8xf32>
    %75 = vector.extract_strided_slice %14 {offsets = [0, 24], sizes = [8, 8], strides = [1, 1]} : vector<8x32xf32> to vector<8x8xf32>
    %76 = vector.extract_strided_slice %15 {offsets = [0, 24], sizes = [8, 8], strides = [1, 1]} : vector<8x32xf32> to vector<8x8xf32>
    %77 = vector.extract_strided_slice %16 {offsets = [0, 24], sizes = [8, 8], strides = [1, 1]} : vector<8x32xf32> to vector<8x8xf32>
    %78 = tpu.transpose %76, [1, 0] : vector<8x8xf32> -> vector<8x8xf32>
    %cst_24 = arith.constant dense<0.000000e+00> : vector<8x8xf32>
    %79 = tpu.matmul %75, %78, %cst_24 {dimension_numbers = #tpu.dot_dimension_numbers<[1], [0], [0], [1], [0, 0, 1, 1], [], []>} : vector<8x8xf32>, vector<8x8xf32>, vector<8x8xf32> -> vector<8x8xf32>
    %cst_25 = arith.constant 0.353553385 : f32
    %80 = vector.broadcast %cst_25 : f32 to vector<8x8xf32>
    %81 = arith.mulf %79, %80 : vector<8x8xf32>
    %cst_26 = arith.constant dense<0xFF800000> : vector<8xf32>
    %82 = vector.multi_reduction <maximumf>, %81, %cst_26 [1] : vector<8x8xf32> to vector<8xf32>
    %83 = vector.shape_cast %82 : vector<8xf32> to vector<8x1xf32>
    %84 = vector.broadcast %83 : vector<8x1xf32> to vector<8x8xf32>
    %85 = arith.subf %81, %84 : vector<8x8xf32>
    %86 = math.exp %85 : vector<8x8xf32>
    %cst_27 = arith.constant dense<0.000000e+00> : vector<8xf32>
    %87 = vector.multi_reduction <add>, %86, %cst_27 [1] : vector<8x8xf32> to vector<8xf32>
    %88 = vector.shape_cast %87 : vector<8xf32> to vector<8x1xf32>
    %89 = tpu.reciprocal %88 {approx = true} : vector<8x1xf32> -> vector<8x1xf32>
    %90 = vector.broadcast %89 : vector<8x1xf32> to vector<8x8xf32>
    %91 = arith.mulf %86, %90 : vector<8x8xf32>
    %92 = arith.addf %73, %91 : vector<8x8xf32>
    %cst_28 = arith.constant dense<0.000000e+00> : vector<8x8xf32>
    %93 = tpu.matmul %91, %77, %cst_28 {dimension_numbers = #tpu.dot_dimension_numbers<[1], [0], [0], [1], [0, 0, 1, 1], [], []>} : vector<8x8xf32>, vector<8x8xf32>, vector<8x8xf32> -> vector<8x8xf32>
    %94 = tpu.concatenate %36, %55, %74, %93 in 1 : vector<8x8xf32>, vector<8x8xf32>, vector<8x8xf32>, vector<8x8xf32> -> vector<8x32xf32>
    %cst_29 = arith.constant 2.500000e-01 : f32
    %95 = vector.broadcast %cst_29 : f32 to vector<8x8xf32>
    %96 = arith.mulf %92, %95 : vector<8x8xf32>
    %97 = vector.extract_strided_slice %11 {offsets = [8, 0], sizes = [8, 32], strides = [1, 1]} : vector<16x32xf32> to vector<8x32xf32>
    %98 = vector.extract_strided_slice %12 {offsets = [8, 0], sizes = [8, 32], strides = [1, 1]} : vector<16x32xf32> to vector<8x32xf32>
    %99 = vector.extract_strided_slice %13 {offsets = [8, 0], sizes = [8, 32], strides = [1, 1]} : vector<16x32xf32> to vector<8x32xf32>
    %cst_30 = arith.constant 0.000000e+00 : f32
    %100 = vector.broadcast %cst_30 : f32 to vector<8x8xf32>
    %101 = vector.extract_strided_slice %97 {offsets = [0, 0], sizes = [8, 8], strides = [1, 1]} : vector<8x32xf32> to vector<8x8xf32>
    %102 = vector.extract_strided_slice %98 {offsets = [0, 0], sizes = [8, 8], strides = [1, 1]} : vector<8x32xf32> to vector<8x8xf32>
    %103 = vector.extract_strided_slice %99 {offsets = [0, 0], sizes = [8, 8], strides = [1, 1]} : vector<8x32xf32> to vector<8x8xf32>
    %104 = tpu.transpose %102, [1, 0] : vector<8x8xf32> -> vector<8x8xf32>
    %cst_31 = arith.constant dense<0.000000e+00> : vector<8x8xf32>
    %105 = tpu.matmul %101, %104, %cst_31 {dimension_numbers = #tpu.dot_dimension_numbers<[1], [0], [0], [1], [0, 0, 1, 1], [], []>} : vector<8x8xf32>, vector<8x8xf32>, vector<8x8xf32> -> vector<8x8xf32>
    %cst_32 = arith.constant 0.353553385 : f32
    %106 = vector.broadcast %cst_32 : f32 to vector<8x8xf32>
    %107 = arith.mulf %105, %106 : vector<8x8xf32>
    %cst_33 = arith.constant dense<0xFF800000> : vector<8xf32>
    %108 = vector.multi_reduction <maximumf>, %107, %cst_33 [1] : vector<8x8xf32> to vector<8xf32>
    %109 = vector.shape_cast %108 : vector<8xf32> to vector<8x1xf32>
    %110 = vector.broadcast %109 : vector<8x1xf32> to vector<8x8xf32>
    %111 = arith.subf %107, %110 : vector<8x8xf32>
    %112 = math.exp %111 : vector<8x8xf32>
    %cst_34 = arith.constant dense<0.000000e+00> : vector<8xf32>
    %113 = vector.multi_reduction <add>, %112, %cst_34 [1] : vector<8x8xf32> to vector<8xf32>
    %114 = vector.shape_cast %113 : vector<8xf32> to vector<8x1xf32>
    %115 = tpu.reciprocal %114 {approx = true} : vector<8x1xf32> -> vector<8x1xf32>
    %116 = vector.broadcast %115 : vector<8x1xf32> to vector<8x8xf32>
    %117 = arith.mulf %112, %116 : vector<8x8xf32>
    %118 = arith.addf %100, %117 : vector<8x8xf32>
    %cst_35 = arith.constant dense<0.000000e+00> : vector<8x8xf32>
    %119 = tpu.matmul %117, %103, %cst_35 {dimension_numbers = #tpu.dot_dimension_numbers<[1], [0], [0], [1], [0, 0, 1, 1], [], []>} : vector<8x8xf32>, vector<8x8xf32>, vector<8x8xf32> -> vector<8x8xf32>
    %120 = vector.extract_strided_slice %97 {offsets = [0, 8], sizes = [8, 8], strides = [1, 1]} : vector<8x32xf32> to vector<8x8xf32>
    %121 = vector.extract_strided_slice %98 {offsets = [0, 8], sizes = [8, 8], strides = [1, 1]} : vector<8x32xf32> to vector<8x8xf32>
    %122 = vector.extract_strided_slice %99 {offsets = [0, 8], sizes = [8, 8], strides = [1, 1]} : vector<8x32xf32> to vector<8x8xf32>
    %123 = tpu.transpose %121, [1, 0] : vector<8x8xf32> -> vector<8x8xf32>
    %cst_36 = arith.constant dense<0.000000e+00> : vector<8x8xf32>
    %124 = tpu.matmul %120, %123, %cst_36 {dimension_numbers = #tpu.dot_dimension_numbers<[1], [0], [0], [1], [0, 0, 1, 1], [], []>} : vector<8x8xf32>, vector<8x8xf32>, vector<8x8xf32> -> vector<8x8xf32>
    %cst_37 = arith.constant 0.353553385 : f32
    %125 = vector.broadcast %cst_37 : f32 to vector<8x8xf32>
    %126 = arith.mulf %124, %125 : vector<8x8xf32>
    %cst_38 = arith.constant dense<0xFF800000> : vector<8xf32>
    %127 = vector.multi_reduction <maximumf>, %126, %cst_38 [1] : vector<8x8xf32> to vector<8xf32>
    %128 = vector.shape_cast %127 : vector<8xf32> to vector<8x1xf32>
    %129 = vector.broadcast %128 : vector<8x1xf32> to vector<8x8xf32>
    %130 = arith.subf %126, %129 : vector<8x8xf32>
    %131 = math.exp %130 : vector<8x8xf32>
    %cst_39 = arith.constant dense<0.000000e+00> : vector<8xf32>
    %132 = vector.multi_reduction <add>, %131, %cst_39 [1] : vector<8x8xf32> to vector<8xf32>
    %133 = vector.shape_cast %132 : vector<8xf32> to vector<8x1xf32>
    %134 = tpu.reciprocal %133 {approx = true} : vector<8x1xf32> -> vector<8x1xf32>
    %135 = vector.broadcast %134 : vector<8x1xf32> to vector<8x8xf32>
    %136 = arith.mulf %131, %135 : vector<8x8xf32>
    %137 = arith.addf %118, %136 : vector<8x8xf32>
    %cst_40 = arith.constant dense<0.000000e+00> : vector<8x8xf32>
    %138 = tpu.matmul %136, %122, %cst_40 {dimension_numbers = #tpu.dot_dimension_numbers<[1], [0], [0], [1], [0, 0, 1, 1], [], []>} : vector<8x8xf32>, vector<8x8xf32>, vector<8x8xf32> -> vector<8x8xf32>
    %139 = vector.extract_strided_slice %97 {offsets = [0, 16], sizes = [8, 8], strides = [1, 1]} : vector<8x32xf32> to vector<8x8xf32>
    %140 = vector.extract_strided_slice %98 {offsets = [0, 16], sizes = [8, 8], strides = [1, 1]} : vector<8x32xf32> to vector<8x8xf32>
    %141 = vector.extract_strided_slice %99 {offsets = [0, 16], sizes = [8, 8], strides = [1, 1]} : vector<8x32xf32> to vector<8x8xf32>
    %142 = tpu.transpose %140, [1, 0] : vector<8x8xf32> -> vector<8x8xf32>
    %cst_41 = arith.constant dense<0.000000e+00> : vector<8x8xf32>
    %143 = tpu.matmul %139, %142, %cst_41 {dimension_numbers = #tpu.dot_dimension_numbers<[1], [0], [0], [1], [0, 0, 1, 1], [], []>} : vector<8x8xf32>, vector<8x8xf32>, vector<8x8xf32> -> vector<8x8xf32>
    %cst_42 = arith.constant 0.353553385 : f32
    %144 = vector.broadcast %cst_42 : f32 to vector<8x8xf32>
    %145 = arith.mulf %143, %144 : vector<8x8xf32>
    %cst_43 = arith.constant dense<0xFF800000> : vector<8xf32>
    %146 = vector.multi_reduction <maximumf>, %145, %cst_43 [1] : vector<8x8xf32> to vector<8xf32>
    %147 = vector.shape_cast %146 : vector<8xf32> to vector<8x1xf32>
    %148 = vector.broadcast %147 : vector<8x1xf32> to vector<8x8xf32>
    %149 = arith.subf %145, %148 : vector<8x8xf32>
    %150 = math.exp %149 : vector<8x8xf32>
    %cst_44 = arith.constant dense<0.000000e+00> : vector<8xf32>
    %151 = vector.multi_reduction <add>, %150, %cst_44 [1] : vector<8x8xf32> to vector<8xf32>
    %152 = vector.shape_cast %151 : vector<8xf32> to vector<8x1xf32>
    %153 = tpu.reciprocal %152 {approx = true} : vector<8x1xf32> -> vector<8x1xf32>
    %154 = vector.broadcast %153 : vector<8x1xf32> to vector<8x8xf32>
    %155 = arith.mulf %150, %154 : vector<8x8xf32>
    %156 = arith.addf %137, %155 : vector<8x8xf32>
    %cst_45 = arith.constant dense<0.000000e+00> : vector<8x8xf32>
    %157 = tpu.matmul %155, %141, %cst_45 {dimension_numbers = #tpu.dot_dimension_numbers<[1], [0], [0], [1], [0, 0, 1, 1], [], []>} : vector<8x8xf32>, vector<8x8xf32>, vector<8x8xf32> -> vector<8x8xf32>
    %158 = vector.extract_strided_slice %97 {offsets = [0, 24], sizes = [8, 8], strides = [1, 1]} : vector<8x32xf32> to vector<8x8xf32>
    %159 = vector.extract_strided_slice %98 {offsets = [0, 24], sizes = [8, 8], strides = [1, 1]} : vector<8x32xf32> to vector<8x8xf32>
    %160 = vector.extract_strided_slice %99 {offsets = [0, 24], sizes = [8, 8], strides = [1, 1]} : vector<8x32xf32> to vector<8x8xf32>
    %161 = tpu.transpose %159, [1, 0] : vector<8x8xf32> -> vector<8x8xf32>
    %cst_46 = arith.constant dense<0.000000e+00> : vector<8x8xf32>
    %162 = tpu.matmul %158, %161, %cst_46 {dimension_numbers = #tpu.dot_dimension_numbers<[1], [0], [0], [1], [0, 0, 1, 1], [], []>} : vector<8x8xf32>, vector<8x8xf32>, vector<8x8xf32> -> vector<8x8xf32>
    %cst_47 = arith.constant 0.353553385 : f32
    %163 = vector.broadcast %cst_47 : f32 to vector<8x8xf32>
    %164 = arith.mulf %162, %163 : vector<8x8xf32>
    %cst_48 = arith.constant dense<0xFF800000> : vector<8xf32>
    %165 = vector.multi_reduction <maximumf>, %164, %cst_48 [1] : vector<8x8xf32> to vector<8xf32>
    %166 = vector.shape_cast %165 : vector<8xf32> to vector<8x1xf32>
    %167 = vector.broadcast %166 : vector<8x1xf32> to vector<8x8xf32>
    %168 = arith.subf %164, %167 : vector<8x8xf32>
    %169 = math.exp %168 : vector<8x8xf32>
    %cst_49 = arith.constant dense<0.000000e+00> : vector<8xf32>
    %170 = vector.multi_reduction <add>, %169, %cst_49 [1] : vector<8x8xf32> to vector<8xf32>
    %171 = vector.shape_cast %170 : vector<8xf32> to vector<8x1xf32>
    %172 = tpu.reciprocal %171 {approx = true} : vector<8x1xf32> -> vector<8x1xf32>
    %173 = vector.broadcast %172 : vector<8x1xf32> to vector<8x8xf32>
    %174 = arith.mulf %169, %173 : vector<8x8xf32>
    %175 = arith.addf %156, %174 : vector<8x8xf32>
    %cst_50 = arith.constant dense<0.000000e+00> : vector<8x8xf32>
    %176 = tpu.matmul %174, %160, %cst_50 {dimension_numbers = #tpu.dot_dimension_numbers<[1], [0], [0], [1], [0, 0, 1, 1], [], []>} : vector<8x8xf32>, vector<8x8xf32>, vector<8x8xf32> -> vector<8x8xf32>
    %177 = tpu.concatenate %119, %138, %157, %176 in 1 : vector<8x8xf32>, vector<8x8xf32>, vector<8x8xf32>, vector<8x8xf32> -> vector<8x32xf32>
    %cst_51 = arith.constant 2.500000e-01 : f32
    %178 = vector.broadcast %cst_51 : f32 to vector<8x8xf32>
    %179 = arith.mulf %175, %178 : vector<8x8xf32>
    %180 = tpu.concatenate %94, %177 in 0 : vector<8x32xf32>, vector<8x32xf32> -> vector<16x32xf32>
    %181 = tpu.concatenate %96, %179 in 0 : vector<8x8xf32>, vector<8x8xf32> -> vector<16x8xf32>
    %c0_52 = arith.constant 0 : index
    %c0_53 = arith.constant 0 : index
    %c0_54 = arith.constant 0 : index
    %182 = vector.load %arg7[%c0_52, %c0_53, %c0_54] : memref<1x32x32xf32, #tpu.memory_space<vmem>>, vector<1x32x32xf32>
    %183 = vector.shape_cast %182 : vector<1x32x32xf32> to vector<32x32xf32>
    %cst_55 = arith.constant dense<0.000000e+00> : vector<16x32xf32>
    %184 = tpu.matmul %180, %183, %cst_55 {dimension_numbers = #tpu.dot_dimension_numbers<[1], [0], [0], [1], [0, 0, 1, 1], [], []>} : vector<16x32xf32>, vector<32x32xf32>, vector<16x32xf32> -> vector<16x32xf32>
    %c0_56 = arith.constant 0 : index
    %c0_57 = arith.constant 0 : index
    %c0_58 = arith.constant 0 : index
    %185 = vector.load %arg8[%c0_56, %c0_57, %c0_58] : memref<1x1x32xf32, #tpu.memory_space<vmem>>, vector<1x1x32xf32>
    %186 = vector.shape_cast %185 : vector<1x1x32xf32> to vector<1x32xf32>
    %187 = vector.broadcast %186 : vector<1x32xf32> to vector<16x32xf32>
    %188 = arith.addf %184, %187 : vector<16x32xf32>
    %c0_59 = arith.constant 0 : index
    %c0_60 = arith.constant 0 : index
    %c0_61 = arith.constant 0 : index
    %189 = vector.load %arg9[%c0_59, %c0_60, %c0_61] : memref<1x4x32xf32, #tpu.memory_space<vmem>>, vector<1x4x32xf32>
    %190 = vector.shape_cast %189 : vector<1x4x32xf32> to vector<4x32xf32>
    %191 = arith.addf %3, %188 : vector<16x32xf32>
    %cst_62 = arith.constant dense<0.000000e+00> : vector<16xf32>
    %192 = vector.multi_reduction <add>, %191, %cst_62 [1] : vector<16x32xf32> to vector<16xf32>
    %193 = vector.shape_cast %192 : vector<16xf32> to vector<16x1xf32>
    %cst_63 = arith.constant 3.200000e+01 : f32
    %194 = vector.broadcast %cst_63 : f32 to vector<16x1xf32>
    %195 = arith.divf %193, %194 : vector<16x1xf32>
    %196 = vector.broadcast %195 : vector<16x1xf32> to vector<16x32xf32>
    %197 = arith.subf %191, %196 : vector<16x32xf32>
    %198 = arith.mulf %197, %197 : vector<16x32xf32>
    %cst_64 = arith.constant dense<0.000000e+00> : vector<16xf32>
    %199 = vector.multi_reduction <add>, %198, %cst_64 [1] : vector<16x32xf32> to vector<16xf32>
    %200 = vector.shape_cast %199 : vector<16xf32> to vector<16x1xf32>
    %cst_65 = arith.constant 3.200000e+01 : f32
    %201 = vector.broadcast %cst_65 : f32 to vector<16x1xf32>
    %202 = arith.divf %200, %201 : vector<16x1xf32>
    %203 = vector.broadcast %195 : vector<16x1xf32> to vector<16x32xf32>
    %204 = arith.subf %191, %203 : vector<16x32xf32>
    %cst_66 = arith.constant 9.99999974E-6 : f32
    %205 = vector.broadcast %cst_66 : f32 to vector<16x1xf32>
    %206 = arith.addf %202, %205 : vector<16x1xf32>
    %207 = math.rsqrt %206 : vector<16x1xf32>
    %208 = vector.broadcast %207 : vector<16x1xf32> to vector<16x32xf32>
    %209 = arith.mulf %204, %208 : vector<16x32xf32>
    %210 = vector.extract_strided_slice %190 {offsets = [0, 0], sizes = [1, 32], strides = [1, 1]} : vector<4x32xf32> to vector<1x32xf32>
    %211 = vector.broadcast %210 : vector<1x32xf32> to vector<16x32xf32>
    %212 = arith.mulf %209, %211 : vector<16x32xf32>
    %213 = vector.extract_strided_slice %190 {offsets = [1, 0], sizes = [1, 32], strides = [1, 1]} : vector<4x32xf32> to vector<1x32xf32>
    %214 = vector.broadcast %213 : vector<1x32xf32> to vector<16x32xf32>
    %215 = arith.addf %212, %214 : vector<16x32xf32>
    %c0_67 = arith.constant 0 : index
    %c0_68 = arith.constant 0 : index
    %c0_69 = arith.constant 0 : index
    %216 = vector.load %arg10[%c0_67, %c0_68, %c0_69] : memref<1x32x64xf32, #tpu.memory_space<vmem>>, vector<1x32x64xf32>
    %217 = vector.shape_cast %216 : vector<1x32x64xf32> to vector<32x64xf32>
    %cst_70 = arith.constant dense<0.000000e+00> : vector<16x64xf32>
    %218 = tpu.matmul %215, %217, %cst_70 {dimension_numbers = #tpu.dot_dimension_numbers<[1], [0], [0], [1], [0, 0, 1, 1], [], []>} : vector<16x32xf32>, vector<32x64xf32>, vector<16x64xf32> -> vector<16x64xf32>
    %c0_71 = arith.constant 0 : index
    %c0_72 = arith.constant 0 : index
    %c0_73 = arith.constant 0 : index
    %219 = vector.load %arg11[%c0_71, %c0_72, %c0_73] : memref<1x1x64xf32, #tpu.memory_space<vmem>>, vector<1x1x64xf32>
    %220 = vector.shape_cast %219 : vector<1x1x64xf32> to vector<1x64xf32>
    %221 = vector.broadcast %220 : vector<1x64xf32> to vector<16x64xf32>
    %222 = arith.addf %218, %221 : vector<16x64xf32>
    %cst_74 = arith.constant 0.000000e+00 : f32
    %223 = vector.broadcast %cst_74 : f32 to vector<16x64xf32>
    %224 = arith.maximumf %222, %223 : vector<16x64xf32>
    %c0_75 = arith.constant 0 : index
    %c0_76 = arith.constant 0 : index
    %c0_77 = arith.constant 0 : index
    %225 = vector.load %arg12[%c0_75, %c0_76, %c0_77] : memref<1x64x32xf32, #tpu.memory_space<vmem>>, vector<1x64x32xf32>
    %226 = vector.shape_cast %225 : vector<1x64x32xf32> to vector<64x32xf32>
    %cst_78 = arith.constant dense<0.000000e+00> : vector<16x32xf32>
    %227 = tpu.matmul %224, %226, %cst_78 {dimension_numbers = #tpu.dot_dimension_numbers<[1], [0], [0], [1], [0, 0, 1, 1], [], []>} : vector<16x64xf32>, vector<64x32xf32>, vector<16x32xf32> -> vector<16x32xf32>
    %c0_79 = arith.constant 0 : index
    %c0_80 = arith.constant 0 : index
    %c0_81 = arith.constant 0 : index
    %228 = vector.load %arg13[%c0_79, %c0_80, %c0_81] : memref<1x1x32xf32, #tpu.memory_space<vmem>>, vector<1x1x32xf32>
    %229 = vector.shape_cast %228 : vector<1x1x32xf32> to vector<1x32xf32>
    %230 = vector.broadcast %229 : vector<1x32xf32> to vector<16x32xf32>
    %231 = arith.addf %227, %230 : vector<16x32xf32>
    %232 = arith.addf %215, %231 : vector<16x32xf32>
    %cst_82 = arith.constant dense<0.000000e+00> : vector<16xf32>
    %233 = vector.multi_reduction <add>, %232, %cst_82 [1] : vector<16x32xf32> to vector<16xf32>
    %234 = vector.shape_cast %233 : vector<16xf32> to vector<16x1xf32>
    %cst_83 = arith.constant 3.200000e+01 : f32
    %235 = vector.broadcast %cst_83 : f32 to vector<16x1xf32>
    %236 = arith.divf %234, %235 : vector<16x1xf32>
    %237 = vector.broadcast %236 : vector<16x1xf32> to vector<16x32xf32>
    %238 = arith.subf %232, %237 : vector<16x32xf32>
    %239 = arith.mulf %238, %238 : vector<16x32xf32>
    %cst_84 = arith.constant dense<0.000000e+00> : vector<16xf32>
    %240 = vector.multi_reduction <add>, %239, %cst_84 [1] : vector<16x32xf32> to vector<16xf32>
    %241 = vector.shape_cast %240 : vector<16xf32> to vector<16x1xf32>
    %cst_85 = arith.constant 3.200000e+01 : f32
    %242 = vector.broadcast %cst_85 : f32 to vector<16x1xf32>
    %243 = arith.divf %241, %242 : vector<16x1xf32>
    %244 = vector.broadcast %236 : vector<16x1xf32> to vector<16x32xf32>
    %245 = arith.subf %232, %244 : vector<16x32xf32>
    %cst_86 = arith.constant 9.99999974E-6 : f32
    %246 = vector.broadcast %cst_86 : f32 to vector<16x1xf32>
    %247 = arith.addf %243, %246 : vector<16x1xf32>
    %248 = math.rsqrt %247 : vector<16x1xf32>
    %249 = vector.broadcast %248 : vector<16x1xf32> to vector<16x32xf32>
    %250 = arith.mulf %245, %249 : vector<16x32xf32>
    %251 = vector.extract_strided_slice %190 {offsets = [2, 0], sizes = [1, 32], strides = [1, 1]} : vector<4x32xf32> to vector<1x32xf32>
    %252 = vector.broadcast %251 : vector<1x32xf32> to vector<16x32xf32>
    %253 = arith.mulf %250, %252 : vector<16x32xf32>
    %254 = vector.extract_strided_slice %190 {offsets = [3, 0], sizes = [1, 32], strides = [1, 1]} : vector<4x32xf32> to vector<1x32xf32>
    %255 = vector.broadcast %254 : vector<1x32xf32> to vector<16x32xf32>
    %256 = arith.addf %253, %255 : vector<16x32xf32>
    %c0_87 = arith.constant 0 : index
    %c0_88 = arith.constant 0 : index
    %257 = vector.load %arg17[%c0_87, %c0_88] : memref<16x32xf32, #tpu.memory_space<vmem>>, vector<16x32xf32>
    tpu.vector_store %arg17[%c0_87, %c0_88], %256 {strides = array<i32>} : memref<16x32xf32, #tpu.memory_space<vmem>>, vector<16x32xf32>,
    %c1_i32 = arith.constant 1 : i32
    %258 = arith.cmpi eq, %arg0, %c1_i32 : i32
    %259 = arith.extui %258 : i1 to i32
    %c0_i32_89 = arith.constant 0 : i32
    %260 = arith.cmpi ne, %259, %c0_i32_89 : i32
    scf.if %260 {
      %c0_90 = arith.constant 0 : index
      %c0_91 = arith.constant 0 : index
      %261 = vector.load %arg14[%c0_90, %c0_91] : memref<16x32xf32, #tpu.memory_space<vmem>>, vector<16x32xf32>
      tpu.vector_store %arg14[%c0_90, %c0_91], %256 {strides = array<i32>} : memref<16x32xf32, #tpu.memory_space<vmem>>, vector<16x32xf32>,
      %c0_92 = arith.constant 0 : index
      %c0_93 = arith.constant 0 : index
      %262 = vector.load %arg16[%c0_92, %c0_93] : memref<16x8xf32, #tpu.memory_space<vmem>>, vector<16x8xf32>
      tpu.vector_store %arg16[%c0_92, %c0_93], %181 {strides = array<i32>} : memref<16x8xf32, #tpu.memory_space<vmem>>, vector<16x8xf32>,
      %263 = vector.extract_strided_slice %256 {offsets = [7, 0], sizes = [1, 32], strides = [1, 1]} : vector<16x32xf32> to vector<1x32xf32>
      %264 = vector.extract_strided_slice %256 {offsets = [15, 0], sizes = [1, 32], strides = [1, 1]} : vector<16x32xf32> to vector<1x32xf32>
      %265 = tpu.concatenate %263, %264 in 0 : vector<1x32xf32>, vector<1x32xf32> -> vector<2x32xf32>
      %c0_94 = arith.constant 0 : index
      %c0_95 = arith.constant 0 : index
      %266 = vector.load %arg15[%c0_94, %c0_95] : memref<2x32xf32, #tpu.memory_space<vmem>>, vector<2x32xf32>
      tpu.vector_store %arg15[%c0_94, %c0_95], %265 {strides = array<i32>} : memref<2x32xf32, #tpu.memory_space<vmem>>, vector<2x32xf32>,
    } else {
    }
    return
  }
  func.func @transform_0(%arg0: i32) -> (i32, i32) {
    %c0_i32 = arith.constant 0 : i32
    %c0_i32_0 = arith.constant 0 : i32
    %c0_i32_1 = arith.constant 0 : i32
    return %c0_i32, %c0_i32_0 : i32, i32
  }
  func.func @transform_1(%arg0: i32) -> (i32, i32) {
    %c0_i32 = arith.constant 0 : i32
    %c0_i32_0 = arith.constant 0 : i32
    %c0_i32_1 = arith.constant 0 : i32
    return %c0_i32, %c0_i32_0 : i32, i32
  }
  func.func @transform_2(%arg0: i32) -> (i32, i32) {
    %c0_i32 = arith.constant 0 : i32
    %c0_i32_0 = arith.constant 0 : i32
    %c0_i32_1 = arith.constant 0 : i32
    return %c0_i32, %c0_i32_0 : i32, i32
  }
  func.func @transform_3(%arg0: i32) -> (i32, i32) {
    %c0_i32 = arith.constant 0 : i32
    %c0_i32_0 = arith.constant 0 : i32
    %c0_i32_1 = arith.constant 0 : i32
    return %c0_i32, %c0_i32_0 : i32, i32
  }
  func.func @transform_4(%arg0: i32) -> (i32, i32, i32) {
    %c0_i32 = arith.constant 0 : i32
    %c0_i32_0 = arith.constant 0 : i32
    %c0_i32_1 = arith.constant 0 : i32
    return %arg0, %c0_i32, %c0_i32_0 : i32, i32, i32
  }
  func.func @transform_5(%arg0: i32) -> (i32, i32, i32) {
    %c0_i32 = arith.constant 0 : i32
    %c0_i32_0 = arith.constant 0 : i32
    %c0_i32_1 = arith.constant 0 : i32
    return %arg0, %c0_i32, %c0_i32_0 : i32, i32, i32
  }
  func.func @transform_6(%arg0: i32) -> (i32, i32, i32) {
    %c0_i32 = arith.constant 0 : i32
    %c0_i32_0 = arith.constant 0 : i32
    %c0_i32_1 = arith.constant 0 : i32
    return %arg0, %c0_i32, %c0_i32_0 : i32, i32, i32
  }
  func.func @transform_7(%arg0: i32) -> (i32, i32, i32) {
    %c0_i32 = arith.constant 0 : i32
    %c0_i32_0 = arith.constant 0 : i32
    %c0_i32_1 = arith.constant 0 : i32
    return %arg0, %c0_i32, %c0_i32_0 : i32, i32, i32
  }
  func.func @transform_8(%arg0: i32) -> (i32, i32, i32) {
    %c0_i32 = arith.constant 0 : i32
    %c0_i32_0 = arith.constant 0 : i32
    %c0_i32_1 = arith.constant 0 : i32
    return %arg0, %c0_i32, %c0_i32_0 : i32, i32, i32
  }
  func.func @transform_9(%arg0: i32) -> (i32, i32, i32) {
    %c0_i32 = arith.constant 0 : i32
    %c0_i32_0 = arith.constant 0 : i32
    %c0_i32_1 = arith.constant 0 : i32
    return %arg0, %c0_i32, %c0_i32_0 : i32, i32, i32
  }
  func.func @transform_10(%arg0: i32) -> (i32, i32, i32) {
    %c0_i32 = arith.constant 0 : i32
    %c0_i32_0 = arith.constant 0 : i32
    %c0_i32_1 = arith.constant 0 : i32
    return %arg0, %c0_i32, %c0_i32_0 : i32, i32, i32
  }
  func.func @transform_11(%arg0: i32) -> (i32, i32, i32) {
    %c0_i32 = arith.constant 0 : i32
    %c0_i32_0 = arith.constant 0 : i32
    %c0_i32_1 = arith.constant 0 : i32
    return %arg0, %c0_i32, %c0_i32_0 : i32, i32, i32
  }
  func.func @transform_12(%arg0: i32) -> (i32, i32, i32) {
    %c0_i32 = arith.constant 0 : i32
    %c0_i32_0 = arith.constant 0 : i32
    %c0_i32_1 = arith.constant 0 : i32
    return %arg0, %c0_i32, %c0_i32_0 : i32, i32, i32
  }
  func.func @transform_13(%arg0: i32) -> (i32, i32) {
    %c0_i32 = arith.constant 0 : i32
    %c0_i32_0 = arith.constant 0 : i32
    %c0_i32_1 = arith.constant 0 : i32
    return %c0_i32, %c0_i32_0 : i32, i32
  }
  func.func @transform_14(%arg0: i32) -> (i32, i32) {
    %c0_i32 = arith.constant 0 : i32
    %c0_i32_0 = arith.constant 0 : i32
    %c0_i32_1 = arith.constant 0 : i32
    return %c0_i32, %c0_i32_0 : i32, i32
  }
  func.func @transform_15(%arg0: i32) -> (i32, i32) {
    %c0_i32 = arith.constant 0 : i32
    %c0_i32_0 = arith.constant 0 : i32
    %c0_i32_1 = arith.constant 0 : i32
    return %c0_i32, %c0_i32_0 : i32, i32
  }
}

</mosaic_0001>

<llo_original>
// kernel: tpu_custom_call.1
$region0: #{tpu_custom_call.1}
  #allocation0 [shape = 'u32[]', space=smem, size = 0x4, offset = 0x4, fixed_abs, tag = 'smem constant byte address 0x4 - core index']
  #allocation1 [shape = 'u32[144,128]{1,0:T(1,128)}', space=vmem, size = 0x12000, scoped, tag = 'internal scratch']
  #allocation2 [shape = 'f32[16,32]{1,0:T(8,128)}', space=vmem, size = 0x2000, scoped, tag = 'scratch operand']
  %s0 = inlined_call_operand.vmem [shape: f32[16,4], index: 0, kind: input, shape index: {}]
  %s1 = inlined_call_operand.hbm [shape: f32[4,32], index: 1, kind: input, shape index: {}]
  %s2 = inlined_call_operand.hbm [shape: f32[1,32], index: 2, kind: input, shape index: {}]
  %s3 = inlined_call_operand.vmem [shape: f32[16,32], index: 3, kind: input, shape index: {}]
  %s4 = inlined_call_operand.vmem [shape: f32[2,32,96], index: 4, kind: input, shape index: {}]
  %s5 = inlined_call_operand.vmem [shape: f32[2,1,96], index: 5, kind: input, shape index: {}]
  %s6 = inlined_call_operand.vmem [shape: f32[2,32,32], index: 6, kind: input, shape index: {}]
  %s7 = inlined_call_operand.vmem [shape: f32[2,1,32], index: 7, kind: input, shape index: {}]
  %s8 = inlined_call_operand.vmem [shape: f32[2,4,32], index: 8, kind: input, shape index: {}]
  %s9 = inlined_call_operand.vmem [shape: f32[2,32,64], index: 9, kind: input, shape index: {}]
  %s10 = inlined_call_operand.vmem [shape: f32[2,1,64], index: 10, kind: input, shape index: {}]
  %s11 = inlined_call_operand.vmem [shape: f32[2,64,32], index: 11, kind: input, shape index: {}]
  %s12 = inlined_call_operand.vmem [shape: f32[2,1,32], index: 12, kind: input, shape index: {}]
  %s13 = inlined_call_operand.hbm [shape: f32[16,32], index: 13, kind: output, shape index: {0}]
  %s14 = inlined_call_operand.hbm [shape: f32[2,32], index: 14, kind: output, shape index: {1}]
  %s15 = inlined_call_operand.vmem [shape: f32[16,8], index: 15, kind: output, shape index: {2}]
  %16 = xla_tuple %s13, %s14, %s15
  %s17 = sld [smem:[#allocation0]]
  $region117: #{tpu_custom_call.1} parent=0
    _
  %s19 = ssub.s32 1, %s17
  %s20 = scalar_select 0, %s19, %s17
  $region1: #{tpu_custom_call.1} parent=0
    #allocation3 [shape = 'u8[2048]{0}', space=vmem, size = 0x800, scoped, tag = 'input window, operand 1, single buffered']
    #allocation4 [shape = 's32[2]{0}', space=sflag, size = 0x8, scoped, tag = 'scoped memory for tpu_custom_call.1']
    #allocation5 [shape = 's32[2]{0}', space=sflag, size = 0x8, scoped, tag = 'scoped memory for tpu_custom_call.1']
    #allocation6 [shape = 'u8[512]{0}', space=vmem, size = 0x400, scoped, tag = 'input window, operand 2, single buffered']
    #allocation7 [shape = 's32[1]{0}', space=sflag, size = 0x4, scoped, tag = 'scoped memory for tpu_custom_call.1']
    #allocation8 [shape = 'u8[8192]{0}', space=vmem, size = 0x2000, scoped, tag = 'output window, operand 0, single buffered']
    #allocation9 [shape = 'u8[1024]{0}', space=vmem, size = 0x400, scoped, tag = 'output window, operand 1, single buffered']
    #allocation10 [shape = 's32[1]{0}', space=sflag, size = 0x4, scoped, tag = 'scoped memory for tpu_custom_call.1']
    %21 = vsyncpa [#allocation4], 0
    %22 = vsyncpa [#allocation7], 0
    %23 = vsyncpa [#allocation5], 0
    %24 = vsyncpa [#allocation10], 0
    loop: start=0, step=1, limit=4
    $region2: #{tpu_custom_call.1} parent=1 // loop_pre_header
      _
    $region3: #{tpu_custom_call.1} parent=1 // loop_header
      %s26 = sphi 0, %s30
      %p27 = scmp.ge.s32.totalorder %s26, 4
      %s34 = sphi 0, %s34
      %s36 = sphi 0, %s34
      %s37 = sphi 0, %s36
      %s51 = sphi 0, %s37
      %s55 = sphi 0, %s55
      %s57 = sphi 0, %s55
      %s58 = sphi 0, %s57
      %s72 = sphi 0, %s58
      %s76 = sphi 0, %s76
      %s78 = sphi 0, %s76
      %s79 = sphi 0, %s78
      %s93 = sphi 0, %s79
      %s97 = sphi 0, %s97
      %s99 = sphi 0, %s97
      %s100 = sphi 0, %s99
      %s114 = sphi 0, %s100
      %s120 = sphi 0, %s122
      %s123 = sphi 0, %s120
      %s124 = sphi 0, %s123
      %s140 = sphi 0, %s124
      %s146 = sphi 0, %s148
      %s149 = sphi 0, %s146
      %s150 = sphi 0, %s149
      %s166 = sphi 0, %s150
      %s172 = sphi 0, %s174
      %s175 = sphi 0, %s172
      %s176 = sphi 0, %s175
      %s192 = sphi 0, %s176
      %s198 = sphi 0, %s200
      %s201 = sphi 0, %s198
      %s202 = sphi 0, %s201
      %s218 = sphi 0, %s202
      %s224 = sphi 0, %s226
      %s227 = sphi 0, %s224
      %s228 = sphi 0, %s227
      %s244 = sphi 0, %s228
      %s250 = sphi 0, %s252
      %s253 = sphi 0, %s250
      %s254 = sphi 0, %s253
      %s270 = sphi 0, %s254
      %s276 = sphi 0, %s278
      %s279 = sphi 0, %s276
      %s280 = sphi 0, %s279
      %s296 = sphi 0, %s280
      %s302 = sphi 0, %s304
      %s305 = sphi 0, %s302
      %s306 = sphi 0, %s305
      %s322 = sphi 0, %s306
      %s328 = sphi 0, %s330
      %s331 = sphi 0, %s328
      %s332 = sphi 0, %s331
      %s348 = sphi 0, %s332
      %s352 = sphi 0, %s352
      %s354 = sphi 0, %s352
      %s355 = sphi 0, %s354
      %s369 = sphi 0, %s355
      %s373 = sphi 0, %s373
      %s375 = sphi 0, %s373
      %s376 = sphi 0, %s375
      %s390 = sphi 0, %s376
      %s394 = sphi 0, %s394
      %s396 = sphi 0, %s394
      %s397 = sphi 0, %s396
      %s411 = sphi 0, %s397
    $region4: #{tpu_custom_call.1} parent=1 // loop_header_branch
      %29 = sbr.rel (%p27) target = $region8
    $region5: #{tpu_custom_call.1} parent=1 // loop_body
      %s31 = ssub.s32 %s26, 1
      %s32 = ssub.s32 %s26, 2
      %s33 = sadd.s32 %s26, 1
      %s35 = sadd.s32 %s34, 1
      %p38 = scmp.eq.s32.totalorder %s26, 1
      %p39 = scmp.ne.s32.totalorder %s34, %s36
      %p40 = scmp.eq.s32.totalorder %s26, 0
      %p41 = por %p39, %p40
      %p42 = scmp.ne.s32.totalorder %s34, %s36
      %p43 = scmp.eq.s32.totalorder %s31, 1
      %p44 = por %p42, %p43
      %p45 = scmp.ne.s32.totalorder %s36, %s37
      %p46 = scmp.eq.s32.totalorder %s31, 0
      %p47 = por %p45, %p46
      %p48 = scmp.ne.s32.totalorder %s36, %s37
      %p49 = scmp.eq.s32.totalorder %s32, 1
      %p50 = por %p48, %p49
      %p52 = scmp.ne.s32.totalorder %s37, %s51
      %p53 = scmp.eq.s32.totalorder %s32, 0
      %p54 = por %p52, %p53
      %s56 = sadd.s32 %s55, 1
      %p59 = scmp.eq.s32.totalorder %s26, 1
      %p60 = scmp.ne.s32.totalorder %s55, %s57
      %p61 = scmp.eq.s32.totalorder %s26, 0
      %p62 = por %p60, %p61
      %p63 = scmp.ne.s32.totalorder %s55, %s57
      %p64 = scmp.eq.s32.totalorder %s31, 1
      %p65 = por %p63, %p64
      %p66 = scmp.ne.s32.totalorder %s57, %s58
      %p67 = scmp.eq.s32.totalorder %s31, 0
      %p68 = por %p66, %p67
      %p69 = scmp.ne.s32.totalorder %s57, %s58
      %p70 = scmp.eq.s32.totalorder %s32, 1
      %p71 = por %p69, %p70
      %p73 = scmp.ne.s32.totalorder %s58, %s72
      %p74 = scmp.eq.s32.totalorder %s32, 0
      %p75 = por %p73, %p74
      %s77 = sadd.s32 %s76, 1
      %p80 = scmp.eq.s32.totalorder %s26, 1
      %p81 = scmp.ne.s32.totalorder %s76, %s78
      %p82 = scmp.eq.s32.totalorder %s26, 0
      %p83 = por %p81, %p82
      %p84 = scmp.ne.s32.totalorder %s76, %s78
      %p85 = scmp.eq.s32.totalorder %s31, 1
      %p86 = por %p84, %p85
      %p87 = scmp.ne.s32.totalorder %s78, %s79
      %p88 = scmp.eq.s32.totalorder %s31, 0
      %p89 = por %p87, %p88
      %p90 = scmp.ne.s32.totalorder %s78, %s79
      %p91 = scmp.eq.s32.totalorder %s32, 1
      %p92 = por %p90, %p91
      %p94 = scmp.ne.s32.totalorder %s79, %s93
      %p95 = scmp.eq.s32.totalorder %s32, 0
      %p96 = por %p94, %p95
      %s98 = sadd.s32 %s97, 1
      %p101 = scmp.eq.s32.totalorder %s26, 1
      %p102 = scmp.ne.s32.totalorder %s97, %s99
      %p103 = scmp.eq.s32.totalorder %s26, 0
      %p104 = por %p102, %p103
      %p105 = scmp.ne.s32.totalorder %s97, %s99
      %p106 = scmp.eq.s32.totalorder %s31, 1
      %p107 = por %p105, %p106
      %p108 = scmp.ne.s32.totalorder %s99, %s100
      %p109 = scmp.eq.s32.totalorder %s31, 0
      %p110 = por %p108, %p109
      %p111 = scmp.ne.s32.totalorder %s99, %s100
      %p112 = scmp.eq.s32.totalorder %s32, 1
      %p113 = por %p111, %p112
      %p115 = scmp.ne.s32.totalorder %s100, %s114
      %p116 = scmp.eq.s32.totalorder %s32, 0
      %p117 = por %p115, %p116
      %s118 = ssub.s32 %s26, %s33
      %p119 = scmp.eq.s32.totalorder %s118, 0
      %s121 = sadd.s32 %s120, 1
      %s122 = scalar_select %p119, %s120, %s121
      %p125 = pneg %p119
      %p126 = scmp.eq.s32.totalorder %s26, 1
      %p127 = por %p125, %p126
      %p128 = scmp.ne.s32.totalorder %s120, %s123
      %p129 = scmp.eq.s32.totalorder %s26, 0
      %p130 = por %p128, %p129
      %p131 = scmp.ne.s32.totalorder %s120, %s123
      %p132 = scmp.eq.s32.totalorder %s31, 1
      %p133 = por %p131, %p132
      %p134 = scmp.ne.s32.totalorder %s123, %s124
      %p135 = scmp.eq.s32.totalorder %s31, 0
      %p136 = por %p134, %p135
      %p137 = scmp.ne.s32.totalorder %s123, %s124
      %p138 = scmp.eq.s32.totalorder %s32, 1
      %p139 = por %p137, %p138
      %p141 = scmp.ne.s32.totalorder %s124, %s140
      %p142 = scmp.eq.s32.totalorder %s32, 0
      %p143 = por %p141, %p142
      %s144 = ssub.s32 %s26, %s33
      %p145 = scmp.eq.s32.totalorder %s144, 0
      %s147 = sadd.s32 %s146, 1
      %s148 = scalar_select %p145, %s146, %s147
      %p151 = pneg %p145
      %p152 = scmp.eq.s32.totalorder %s26, 1
      %p153 = por %p151, %p152
      %p154 = scmp.ne.s32.totalorder %s146, %s149
      %p155 = scmp.eq.s32.totalorder %s26, 0
      %p156 = por %p154, %p155
      %p157 = scmp.ne.s32.totalorder %s146, %s149
      %p158 = scmp.eq.s32.totalorder %s31, 1
      %p159 = por %p157, %p158
      %p160 = scmp.ne.s32.totalorder %s149, %s150
      %p161 = scmp.eq.s32.totalorder %s31, 0
      %p162 = por %p160, %p161
      %p163 = scmp.ne.s32.totalorder %s149, %s150
      %p164 = scmp.eq.s32.totalorder %s32, 1
      %p165 = por %p163, %p164
      %p167 = scmp.ne.s32.totalorder %s150, %s166
      %p168 = scmp.eq.s32.totalorder %s32, 0
      %p169 = por %p167, %p168
      %s170 = ssub.s32 %s26, %s33
      %p171 = scmp.eq.s32.totalorder %s170, 0
      %s173 = sadd.s32 %s172, 1
      %s174 = scalar_select %p171, %s172, %s173
      %p177 = pneg %p171
      %p178 = scmp.eq.s32.totalorder %s26, 1
      %p179 = por %p177, %p178
      %p180 = scmp.ne.s32.totalorder %s172, %s175
      %p181 = scmp.eq.s32.totalorder %s26, 0
      %p182 = por %p180, %p181
      %p183 = scmp.ne.s32.totalorder %s172, %s175
      %p184 = scmp.eq.s32.totalorder %s31, 1
      %p185 = por %p183, %p184
      %p186 = scmp.ne.s32.totalorder %s175, %s176
      %p187 = scmp.eq.s32.totalorder %s31, 0
      %p188 = por %p186, %p187
      %p189 = scmp.ne.s32.totalorder %s175, %s176
      %p190 = scmp.eq.s32.totalorder %s32, 1
      %p191 = por %p189, %p190
      %p193 = scmp.ne.s32.totalorder %s176, %s192
      %p194 = scmp.eq.s32.totalorder %s32, 0
      %p195 = por %p193, %p194
      %s196 = ssub.s32 %s26, %s33
      %p197 = scmp.eq.s32.totalorder %s196, 0
      %s199 = sadd.s32 %s198, 1
      %s200 = scalar_select %p197, %s198, %s199
      %p203 = pneg %p197
      %p204 = scmp.eq.s32.totalorder %s26, 1
      %p205 = por %p203, %p204
      %p206 = scmp.ne.s32.totalorder %s198, %s201
      %p207 = scmp.eq.s32.totalorder %s26, 0
      %p208 = por %p206, %p207
      %p209 = scmp.ne.s32.totalorder %s198, %s201
      %p210 = scmp.eq.s32.totalorder %s31, 1
      %p211 = por %p209, %p210
      %p212 = scmp.ne.s32.totalorder %s201, %s202
      %p213 = scmp.eq.s32.totalorder %s31, 0
      %p214 = por %p212, %p213
      %p215 = scmp.ne.s32.totalorder %s201, %s202
      %p216 = scmp.eq.s32.totalorder %s32, 1
      %p217 = por %p215, %p216
      %p219 = scmp.ne.s32.totalorder %s202, %s218
      %p220 = scmp.eq.s32.totalorder %s32, 0
      %p221 = por %p219, %p220
      %s222 = ssub.s32 %s26, %s33
      %p223 = scmp.eq.s32.totalorder %s222, 0
      %s225 = sadd.s32 %s224, 1
      %s226 = scalar_select %p223, %s224, %s225
      %p229 = pneg %p223
      %p230 = scmp.eq.s32.totalorder %s26, 1
      %p231 = por %p229, %p230
      %p232 = scmp.ne.s32.totalorder %s224, %s227
      %p233 = scmp.eq.s32.totalorder %s26, 0
      %p234 = por %p232, %p233
      %p235 = scmp.ne.s32.totalorder %s224, %s227
      %p236 = scmp.eq.s32.totalorder %s31, 1
      %p237 = por %p235, %p236
      %p238 = scmp.ne.s32.totalorder %s227, %s228
      %p239 = scmp.eq.s32.totalorder %s31, 0
      %p240 = por %p238, %p239
      %p241 = scmp.ne.s32.totalorder %s227, %s228
      %p242 = scmp.eq.s32.totalorder %s32, 1
      %p243 = por %p241, %p242
      %p245 = scmp.ne.s32.totalorder %s228, %s244
      %p246 = scmp.eq.s32.totalorder %s32, 0
      %p247 = por %p245, %p246
      %s248 = ssub.s32 %s26, %s33
      %p249 = scmp.eq.s32.totalorder %s248, 0
      %s251 = sadd.s32 %s250, 1
      %s252 = scalar_select %p249, %s250, %s251
      %p255 = pneg %p249
      %p256 = scmp.eq.s32.totalorder %s26, 1
      %p257 = por %p255, %p256
      %p258 = scmp.ne.s32.totalorder %s250, %s253
      %p259 = scmp.eq.s32.totalorder %s26, 0
      %p260 = por %p258, %p259
      %p261 = scmp.ne.s32.totalorder %s250, %s253
      %p262 = scmp.eq.s32.totalorder %s31, 1
      %p263 = por %p261, %p262
      %p264 = scmp.ne.s32.totalorder %s253, %s254
      %p265 = scmp.eq.s32.totalorder %s31, 0
      %p266 = por %p264, %p265
      %p267 = scmp.ne.s32.totalorder %s253, %s254
      %p268 = scmp.eq.s32.totalorder %s32, 1
      %p269 = por %p267, %p268
      %p271 = scmp.ne.s32.totalorder %s254, %s270
      %p272 = scmp.eq.s32.totalorder %s32, 0
      %p273 = por %p271, %p272
      %s274 = ssub.s32 %s26, %s33
      %p275 = scmp.eq.s32.totalorder %s274, 0
      %s277 = sadd.s32 %s276, 1
      %s278 = scalar_select %p275, %s276, %s277
      %p281 = pneg %p275
      %p282 = scmp.eq.s32.totalorder %s26, 1
      %p283 = por %p281, %p282
      %p284 = scmp.ne.s32.totalorder %s276, %s279
      %p285 = scmp.eq.s32.totalorder %s26, 0
      %p286 = por %p284, %p285
      %p287 = scmp.ne.s32.totalorder %s276, %s279
      %p288 = scmp.eq.s32.totalorder %s31, 1
      %p289 = por %p287, %p288
      %p290 = scmp.ne.s32.totalorder %s279, %s280
      %p291 = scmp.eq.s32.totalorder %s31, 0
      %p292 = por %p290, %p291
      %p293 = scmp.ne.s32.totalorder %s279, %s280
      %p294 = scmp.eq.s32.totalorder %s32, 1
      %p295 = por %p293, %p294
      %p297 = scmp.ne.s32.totalorder %s280, %s296
      %p298 = scmp.eq.s32.totalorder %s32, 0
      %p299 = por %p297, %p298
      %s300 = ssub.s32 %s26, %s33
      %p301 = scmp.eq.s32.totalorder %s300, 0
      %s303 = sadd.s32 %s302, 1
      %s304 = scalar_select %p301, %s302, %s303
      %p307 = pneg %p301
      %p308 = scmp.eq.s32.totalorder %s26, 1
      %p309 = por %p307, %p308
      %p310 = scmp.ne.s32.totalorder %s302, %s305
      %p311 = scmp.eq.s32.totalorder %s26, 0
      %p312 = por %p310, %p311
      %p313 = scmp.ne.s32.totalorder %s302, %s305
      %p314 = scmp.eq.s32.totalorder %s31, 1
      %p315 = por %p313, %p314
      %p316 = scmp.ne.s32.totalorder %s305, %s306
      %p317 = scmp.eq.s32.totalorder %s31, 0
      %p318 = por %p316, %p317
      %p319 = scmp.ne.s32.totalorder %s305, %s306
      %p320 = scmp.eq.s32.totalorder %s32, 1
      %p321 = por %p319, %p320
      %p323 = scmp.ne.s32.totalorder %s306, %s322
      %p324 = scmp.eq.s32.totalorder %s32, 0
      %p325 = por %p323, %p324
      %s326 = ssub.s32 %s26, %s33
      %p327 = scmp.eq.s32.totalorder %s326, 0
      %s329 = sadd.s32 %s328, 1
      %s330 = scalar_select %p327, %s328, %s329
      %p333 = pneg %p327
      %p334 = scmp.eq.s32.totalorder %s26, 1
      %p335 = por %p333, %p334
      %p336 = scmp.ne.s32.totalorder %s328, %s331
      %p337 = scmp.eq.s32.totalorder %s26, 0
      %p338 = por %p336, %p337
      %p339 = scmp.ne.s32.totalorder %s328, %s331
      %p340 = scmp.eq.s32.totalorder %s31, 1
      %p341 = por %p339, %p340
      %p342 = scmp.ne.s32.totalorder %s331, %s332
      %p343 = scmp.eq.s32.totalorder %s31, 0
      %p344 = por %p342, %p343
      %p345 = scmp.ne.s32.totalorder %s331, %s332
      %p346 = scmp.eq.s32.totalorder %s32, 1
      %p347 = por %p345, %p346
      %p349 = scmp.ne.s32.totalorder %s332, %s348
      %p350 = scmp.eq.s32.totalorder %s32, 0
      %p351 = por %p349, %p350
      %s353 = sadd.s32 %s352, 1
      %p356 = scmp.eq.s32.totalorder %s26, 1
      %p357 = scmp.ne.s32.totalorder %s352, %s354
      %p358 = scmp.eq.s32.totalorder %s26, 0
      %p359 = por %p357, %p358
      %p360 = scmp.ne.s32.totalorder %s352, %s354
      %p361 = scmp.eq.s32.totalorder %s31, 1
      %p362 = por %p360, %p361
      %p363 = scmp.ne.s32.totalorder %s354, %s355
      %p364 = scmp.eq.s32.totalorder %s31, 0
      %p365 = por %p363, %p364
      %p366 = scmp.ne.s32.totalorder %s354, %s355
      %p367 = scmp.eq.s32.totalorder %s32, 1
      %p368 = por %p366, %p367
      %p370 = scmp.ne.s32.totalorder %s355, %s369
      %p371 = scmp.eq.s32.totalorder %s32, 0
      %p372 = por %p370, %p371
      %s374 = sadd.s32 %s373, 1
      %p377 = scmp.eq.s32.totalorder %s26, 1
      %p378 = scmp.ne.s32.totalorder %s373, %s375
      %p379 = scmp.eq.s32.totalorder %s26, 0
      %p380 = por %p378, %p379
      %p381 = scmp.ne.s32.totalorder %s373, %s375
      %p382 = scmp.eq.s32.totalorder %s31, 1
      %p383 = por %p381, %p382
      %p384 = scmp.ne.s32.totalorder %s375, %s376
      %p385 = scmp.eq.s32.totalorder %s31, 0
      %p386 = por %p384, %p385
      %p387 = scmp.ne.s32.totalorder %s375, %s376
      %p388 = scmp.eq.s32.totalorder %s32, 1
      %p389 = por %p387, %p388
      %p391 = scmp.ne.s32.totalorder %s376, %s390
      %p392 = scmp.eq.s32.totalorder %s32, 0
      %p393 = por %p391, %p392
      %s395 = sadd.s32 %s394, 1
      %p398 = scmp.eq.s32.totalorder %s26, 1
      %p399 = scmp.ne.s32.totalorder %s394, %s396
      %p400 = scmp.eq.s32.totalorder %s26, 0
      %p401 = por %p399, %p400
      %p402 = scmp.ne.s32.totalorder %s394, %s396
      %p403 = scmp.eq.s32.totalorder %s31, 1
      %p404 = por %p402, %p403
      %p405 = scmp.ne.s32.totalorder %s396, %s397
      %p406 = scmp.eq.s32.totalorder %s31, 0
      %p407 = por %p405, %p406
      %p408 = scmp.ne.s32.totalorder %s396, %s397
      %p409 = scmp.eq.s32.totalorder %s32, 1
      %p410 = por %p408, %p409
      %p412 = scmp.ne.s32.totalorder %s397, %s411
      %p413 = scmp.eq.s32.totalorder %s32, 0
      %p414 = por %p412, %p413
      %p415 = scmp.le.s32.totalorder 1, %s26
      %p416 = scmp.lt.s32.totalorder %s26, 3
      %p417 = pnand %p415, %p416
      %p418 = pneg %p417
      // Predicated region
      $region9: #{tpu_custom_call.1} parent=5 // pred_check
        _
      $region10: #{tpu_custom_call.1} parent=5 // pred_check_branch
        %420 = sbr.rel (%p417) target = $region12
      $region11: #{tpu_custom_call.1} parent=5 // pred_region
        %s421 = ssub.s32 %s26, 1
        // Predicated region
        $region13: #{tpu_custom_call.1} parent=11 // pred_check
          %p422 = pneg %p47
        $region14: #{tpu_custom_call.1} parent=11 // pred_check_branch
          %424 = sbr.rel (%p422) target = $region16
        $region15: #{tpu_custom_call.1} parent=11 // pred_region
          _
        $region16: #{tpu_custom_call.1} parent=11 // pred_fallthru
          _
        // Predicated region
        $region17: #{tpu_custom_call.1} parent=11 // pred_check
          %p425 = pneg %p68
        $region18: #{tpu_custom_call.1} parent=11 // pred_check_branch
          %427 = sbr.rel (%p425) target = $region20
        $region19: #{tpu_custom_call.1} parent=11 // pred_region
          %s429 = ssub.s32 64, 64
          %430 = vsyncadd [#allocation4], %s429
          %s432 = sshll.u32 [#allocation3], 4
          %s433 = int_to_ptr.vmem [resolvable:$true] %s432
          %435 = dma.hbm_to_vmem [thread:$0]  %s1, 64, %s433, [#allocation4]
        $region20: #{tpu_custom_call.1} parent=11 // pred_fallthru
          _
        // Predicated region
        $region21: #{tpu_custom_call.1} parent=11 // pred_check
          %p436 = pneg %p89
        $region22: #{tpu_custom_call.1} parent=11 // pred_check_branch
          %438 = sbr.rel (%p436) target = $region24
        $region23: #{tpu_custom_call.1} parent=11 // pred_region
          %s440 = ssub.s32 16, 16
          %441 = vsyncadd [#allocation7], %s440
          %s443 = sshll.u32 [#allocation6], 4
          %s444 = int_to_ptr.vmem [resolvable:$true] %s443
          %446 = dma.hbm_to_vmem [thread:$0]  %s2, 16, %s444, [#allocation7]
        $region24: #{tpu_custom_call.1} parent=11 // pred_fallthru
          _
        // Predicated region
        $region25: #{tpu_custom_call.1} parent=11 // pred_check
          %p447 = pneg %p110
        $region26: #{tpu_custom_call.1} parent=11 // pred_check_branch
          %449 = sbr.rel (%p447) target = $region28
        $region27: #{tpu_custom_call.1} parent=11 // pred_region
          _
        $region28: #{tpu_custom_call.1} parent=11 // pred_fallthru
          _
      $region12: #{tpu_custom_call.1} parent=5 // pred_fallthru
        _
      %p450 = scmp.lt.s32.totalorder %s26, 2
      // Predicated region
      $region29: #{tpu_custom_call.1} parent=5 // pred_check
        %p451 = pneg %p450
      $region30: #{tpu_custom_call.1} parent=5 // pred_check_branch
        %453 = sbr.rel (%p451) target = $region32
      $region31: #{tpu_custom_call.1} parent=5 // pred_region
        // Predicated region
        $region33: #{tpu_custom_call.1} parent=31 // pred_check
          %p454 = pneg %p130
        $region34: #{tpu_custom_call.1} parent=31 // pred_check_branch
          %456 = sbr.rel (%p454) target = $region36
        $region35: #{tpu_custom_call.1} parent=31 // pred_region
          %p457 = scmp.lt.s32.totalorder %s26, 1
          %s458 = scalar_select %p457, %s26, 1
          %s459 = smul.addr %s458, 4
          %s460 = smul.addr %s459, 8
          %s461 = scalar_lea.vmem %s4, %s460
        $region36: #{tpu_custom_call.1} parent=31 // pred_fallthru
          _
        // Predicated region
        $region37: #{tpu_custom_call.1} parent=31 // pred_check
          %p462 = pneg %p156
        $region38: #{tpu_custom_call.1} parent=31 // pred_check_branch
          %464 = sbr.rel (%p462) target = $region40
        $region39: #{tpu_custom_call.1} parent=31 // pred_region
          %p465 = scmp.lt.s32.totalorder %s26, 1
          %s466 = scalar_select %p465, %s26, 1
          %s467 = scalar_lea.vmem %s5, %s466
        $region40: #{tpu_custom_call.1} parent=31 // pred_fallthru
          _
        // Predicated region
        $region41: #{tpu_custom_call.1} parent=31 // pred_check
          %p468 = pneg %p182
        $region42: #{tpu_custom_call.1} parent=31 // pred_check_branch
          %470 = sbr.rel (%p468) target = $region44
        $region43: #{tpu_custom_call.1} parent=31 // pred_region
          %p471 = scmp.lt.s32.totalorder %s26, 1
          %s472 = scalar_select %p471, %s26, 1
          %s473 = smul.addr %s472, 4
          %s474 = smul.addr %s473, 8
          %s475 = scalar_lea.vmem %s6, %s474
        $region44: #{tpu_custom_call.1} parent=31 // pred_fallthru
          _
        // Predicated region
        $region45: #{tpu_custom_call.1} parent=31 // pred_check
          %p476 = pneg %p208
        $region46: #{tpu_custom_call.1} parent=31 // pred_check_branch
          %478 = sbr.rel (%p476) target = $region48
        $region47: #{tpu_custom_call.1} parent=31 // pred_region
          %p479 = scmp.lt.s32.totalorder %s26, 1
          %s480 = scalar_select %p479, %s26, 1
          %s481 = scalar_lea.vmem %s7, %s480
        $region48: #{tpu_custom_call.1} parent=31 // pred_fallthru
          _
        // Predicated region
        $region49: #{tpu_custom_call.1} parent=31 // pred_check
          %p482 = pneg %p234
        $region50: #{tpu_custom_call.1} parent=31 // pred_check_branch
          %484 = sbr.rel (%p482) target = $region52
        $region51: #{tpu_custom_call.1} parent=31 // pred_region
          %p485 = scmp.lt.s32.totalorder %s26, 1
          %s486 = scalar_select %p485, %s26, 1
          %s487 = smul.addr %s486, 4
          %s488 = scalar_lea.vmem %s8, %s487
        $region52: #{tpu_custom_call.1} parent=31 // pred_fallthru
          _
        // Predicated region
        $region53: #{tpu_custom_call.1} parent=31 // pred_check
          %p489 = pneg %p260
        $region54: #{tpu_custom_call.1} parent=31 // pred_check_branch
          %491 = sbr.rel (%p489) target = $region56
        $region55: #{tpu_custom_call.1} parent=31 // pred_region
          %p492 = scmp.lt.s32.totalorder %s26, 1
          %s493 = scalar_select %p492, %s26, 1
          %s494 = smul.addr %s493, 4
          %s495 = smul.addr %s494, 8
          %s496 = scalar_lea.vmem %s9, %s495
        $region56: #{tpu_custom_call.1} parent=31 // pred_fallthru
          _
        // Predicated region
        $region57: #{tpu_custom_call.1} parent=31 // pred_check
          %p497 = pneg %p286
        $region58: #{tpu_custom_call.1} parent=31 // pred_check_branch
          %499 = sbr.rel (%p497) target = $region60
        $region59: #{tpu_custom_call.1} parent=31 // pred_region
          %p500 = scmp.lt.s32.totalorder %s26, 1
          %s501 = scalar_select %p500, %s26, 1
          %s502 = scalar_lea.vmem %s10, %s501
        $region60: #{tpu_custom_call.1} parent=31 // pred_fallthru
          _
        // Predicated region
        $region61: #{tpu_custom_call.1} parent=31 // pred_check
          %p503 = pneg %p312
        $region62: #{tpu_custom_call.1} parent=31 // pred_check_branch
          %505 = sbr.rel (%p503) target = $region64
        $region63: #{tpu_custom_call.1} parent=31 // pred_region
          %p506 = scmp.lt.s32.totalorder %s26, 1
          %s507 = scalar_select %p506, %s26, 1
          %s508 = smul.addr %s507, 8
          %s509 = smul.addr %s508, 8
          %s510 = scalar_lea.vmem %s11, %s509
        $region64: #{tpu_custom_call.1} parent=31 // pred_fallthru
          _
        // Predicated region
        $region65: #{tpu_custom_call.1} parent=31 // pred_check
          %p511 = pneg %p338
        $region66: #{tpu_custom_call.1} parent=31 // pred_check_branch
          %513 = sbr.rel (%p511) target = $region68
        $region67: #{tpu_custom_call.1} parent=31 // pred_region
          %p514 = scmp.lt.s32.totalorder %s26, 1
          %s515 = scalar_select %p514, %s26, 1
          %s516 = scalar_lea.vmem %s12, %s515
        $region68: #{tpu_custom_call.1} parent=31 // pred_fallthru
          _
      $region32: #{tpu_custom_call.1} parent=5 // pred_fallthru
        _
      %p517 = scmp.le.s32.totalorder 1, %s26
      %p518 = scmp.lt.s32.totalorder %s26, 3
      %p519 = pnand %p517, %p518
      %p520 = pneg %p519
      // Predicated region
      $region69: #{tpu_custom_call.1} parent=5 // pred_check
        _
      $region70: #{tpu_custom_call.1} parent=5 // pred_check_branch
        %522 = sbr.rel (%p519) target = $region72
      $region71: #{tpu_custom_call.1} parent=5 // pred_region
        %s523 = ssub.s32 %s26, 1
        // Predicated region
        $region73: #{tpu_custom_call.1} parent=71 // pred_check
          %p524 = pneg %p68
        $region74: #{tpu_custom_call.1} parent=71 // pred_check_branch
          %526 = sbr.rel (%p524) target = $region76
        $region75: #{tpu_custom_call.1} parent=71 // pred_region
          %527 = dma.done [#allocation4], 64
        $region76: #{tpu_custom_call.1} parent=71 // pred_fallthru
          _
        // Predicated region
        $region77: #{tpu_custom_call.1} parent=71 // pred_check
          %p528 = pneg %p89
        $region78: #{tpu_custom_call.1} parent=71 // pred_check_branch
          %530 = sbr.rel (%p528) target = $region80
        $region79: #{tpu_custom_call.1} parent=71 // pred_region
          %531 = dma.done [#allocation7], 16
        $region80: #{tpu_custom_call.1} parent=71 // pred_fallthru
          _
        %p532 = pneg %p47
        %p533 = pneg %p44
        %p534 = pneg %p68
        %p535 = pneg %p65
        %p536 = pneg %p89
        %p537 = pneg %p86
        %p538 = pneg %p110
        %p539 = pneg %p107
        %p540 = scmp.lt.s32.totalorder %s31, 1
        %s541 = scalar_select %p540, %s31, 1
        %s542 = smul.addr %s541, 4
        %s543 = smul.addr %s542, 8
        %s544 = scalar_lea.vmem %s4, %s543
        %p545 = pneg %p136
        %p546 = pneg %p133
        %p547 = scmp.lt.s32.totalorder %s31, 1
        %s548 = scalar_select %p547, %s31, 1
        %s549 = scalar_lea.vmem %s5, %s548
        %p550 = pneg %p162
        %p551 = pneg %p159
        %p552 = scmp.lt.s32.totalorder %s31, 1
        %s553 = scalar_select %p552, %s31, 1
        %s554 = smul.addr %s553, 4
        %s555 = smul.addr %s554, 8
        %s556 = scalar_lea.vmem %s6, %s555
        %p557 = pneg %p188
        %p558 = pneg %p185
        %p559 = scmp.lt.s32.totalorder %s31, 1
        %s560 = scalar_select %p559, %s31, 1
        %s561 = scalar_lea.vmem %s7, %s560
        %p562 = pneg %p214
        %p563 = pneg %p211
        %p564 = scmp.lt.s32.totalorder %s31, 1
        %s565 = scalar_select %p564, %s31, 1
        %s566 = smul.addr %s565, 4
        %s567 = scalar_lea.vmem %s8, %s566
        %p568 = pneg %p240
        %p569 = pneg %p237
        %p570 = scmp.lt.s32.totalorder %s31, 1
        %s571 = scalar_select %p570, %s31, 1
        %s572 = smul.addr %s571, 4
        %s573 = smul.addr %s572, 8
        %s574 = scalar_lea.vmem %s9, %s573
        %p575 = pneg %p266
        %p576 = pneg %p263
        %p577 = scmp.lt.s32.totalorder %s31, 1
        %s578 = scalar_select %p577, %s31, 1
        %s579 = scalar_lea.vmem %s10, %s578
        %p580 = pneg %p292
        %p581 = pneg %p289
        %p582 = scmp.lt.s32.totalorder %s31, 1
        %s583 = scalar_select %p582, %s31, 1
        %s584 = smul.addr %s583, 8
        %s585 = smul.addr %s584, 8
        %s586 = scalar_lea.vmem %s11, %s585
        %p587 = pneg %p318
        %p588 = pneg %p315
        %p589 = scmp.lt.s32.totalorder %s31, 1
        %s590 = scalar_select %p589, %s31, 1
        %s591 = scalar_lea.vmem %s12, %s590
        %p592 = pneg %p344
        %p593 = pneg %p341
        %p594 = pneg %p365
        %p595 = pneg %p362
        %p596 = pneg %p386
        %p597 = pneg %p383
        %p598 = pneg %p407
        %p599 = pneg %p404
        %p600 = scmp.lt.s32.totalorder %s31, 1
        %s601 = scalar_select %p600, %s31, 1
        %s602 = smul.addr %s601, 4
        %s603 = smul.addr %s602, 8
        %s604 = scalar_lea.vmem %s4, %s603
        %p605 = scmp.lt.s32.totalorder %s31, 1
        %s606 = scalar_select %p605, %s31, 1
        %s607 = scalar_lea.vmem %s5, %s606
        %p608 = scmp.lt.s32.totalorder %s31, 1
        %s609 = scalar_select %p608, %s31, 1
        %s610 = smul.addr %s609, 4
        %s611 = smul.addr %s610, 8
        %s612 = scalar_lea.vmem %s6, %s611
        %p613 = scmp.lt.s32.totalorder %s31, 1
        %s614 = scalar_select %p613, %s31, 1
        %s615 = scalar_lea.vmem %s7, %s614
        %p616 = scmp.lt.s32.totalorder %s31, 1
        %s617 = scalar_select %p616, %s31, 1
        %s618 = smul.addr %s617, 4
        %s619 = scalar_lea.vmem %s8, %s618
        %p620 = scmp.lt.s32.totalorder %s31, 1
        %s621 = scalar_select %p620, %s31, 1
        %s622 = smul.addr %s621, 4
        %s623 = smul.addr %s622, 8
        %s624 = scalar_lea.vmem %s9, %s623
        %p625 = scmp.lt.s32.totalorder %s31, 1
        %s626 = scalar_select %p625, %s31, 1
        %s627 = scalar_lea.vmem %s10, %s626
        %p628 = scmp.lt.s32.totalorder %s31, 1
        %s629 = scalar_select %p628, %s31, 1
        %s630 = smul.addr %s629, 8
        %s631 = smul.addr %s630, 8
        %s632 = scalar_lea.vmem %s11, %s631
        %p633 = scmp.lt.s32.totalorder %s31, 1
        %s634 = scalar_select %p633, %s31, 1
        %s635 = scalar_lea.vmem %s12, %s634
        %p636 = scmp.eq.s32.totalorder %s31, 0
        // Predicated region
        $region81: #{tpu_custom_call.1} parent=71 // pred_check
          %p637 = pneg %p636
        $region82: #{tpu_custom_call.1} parent=71 // pred_check_branch
          %639 = sbr.rel (%p637) target = $region84
        $region83: #{tpu_custom_call.1} parent=71 // pred_region
          %v640 = vld [vmem:[%s0] sm:$0xff]
          %v641 = vld [vmem:[%s0 + $0x8] sm:$0xff]
          %v642 = vld [vmem:[#allocation3] sm:$0xf]
          %v643 = vld [vmem:[#allocation6] sm:$0x1]
          %v645 = vlaneseq
          %v646 = vshrl.u32 %v645, 7
          %v647 = vsub.s32 0, %v646
          %v648 = vrot.slane %v643, %v647
          %vm650 = vcmask 31744
          %v652 = vsel %vm650, %v640, 0
          %v655 = vsel %vm650, %v641, 0
          %vm657 = vcmask 1043456
          %v659 = vsel %vm657, %v642, 0
          %661 = vmatprep.subr.mxu0 0.0
          %662 = vmatpush1.msra.mxu0 0.0
          %663 = vmatprep.subr.mxu0 0.0
          %664 = vmatpush1.msra.mxu0 0.0
          %665 = vmatprep.subr.mxu0 0.0
          %666 = vmatpush1.msra.mxu0 0.0
          %667 = vmatprep.subr.mxu0 0.0
          %668 = vmatpush1.msra.mxu0 0.0
          %669 = vmatprep.subr.mxu0 0.0
          %670 = vmatpush1.msra.mxu0 0.0
          %671 = vmatprep.subr.mxu0 0.0
          %672 = vmatpush1.msra.mxu0 0.0
          %673 = vmatprep.subr.mxu0 0.0
          %674 = vmatpush1.msra.mxu0 0.0
          %675 = vmatprep.subr.mxu0 0.0
          %676 = vmatpush1.msra.mxu0 0.0
          %677 = vmatprep.subr.mxu0 0.0
          %678 = vmatpush1.msra.mxu0 0.0
          %679 = vmatprep.subr.mxu0 0.0
          %680 = vmatpush1.msra.mxu0 0.0
          %681 = vmatprep.subr.mxu0 0.0
          %682 = vmatpush1.msra.mxu0 0.0
          %683 = vmatprep.subr.mxu0 0.0
          %684 = vmatpush1.msra.mxu0 0.0
          %685 = vmatprep.subr.mxu0 0.0
          %686 = vmatpush1.msra.mxu0 0.0
          %687 = vmatprep.subr.mxu0 0.0
          %688 = vmatpush1.msra.mxu0 0.0
          %689 = vmatprep.subr.mxu0 0.0
          %690 = vmatpush1.msra.mxu0 0.0
          %691 = vmatprep.subr.mxu0 0.0
          %692 = vmatpush1.msra.mxu0 %v659
          %693 = vmatprep.subr.mxu0 0.0
          %694 = vmatpush2.msra.mxu0 0.0
          %695 = vmatprep.subr.mxu0 0.0
          %696 = vmatpush2.msra.mxu0 0.0
          %697 = vmatprep.subr.mxu0 0.0
          %698 = vmatpush2.msra.mxu0 0.0
          %699 = vmatprep.subr.mxu0 0.0
          %700 = vmatpush2.msra.mxu0 0.0
          %701 = vmatprep.subr.mxu0 0.0
          %702 = vmatpush2.msra.mxu0 0.0
          %703 = vmatprep.subr.mxu0 0.0
          %704 = vmatpush2.msra.mxu0 0.0
          %705 = vmatprep.subr.mxu0 0.0
          %706 = vmatpush2.msra.mxu0 0.0
          %707 = vmatprep.subr.mxu0 0.0
          %708 = vmatpush2.msra.mxu0 0.0
          %709 = vmatprep.subr.mxu0 0.0
          %710 = vmatpush2.msra.mxu0 0.0
          %711 = vmatprep.subr.mxu0 0.0
          %712 = vmatpush2.msra.mxu0 0.0
          %713 = vmatprep.subr.mxu0 0.0
          %714 = vmatpush2.msra.mxu0 0.0
          %715 = vmatprep.subr.mxu0 0.0
          %716 = vmatpush2.msra.mxu0 0.0
          %717 = vmatprep.subr.mxu0 0.0
          %718 = vmatpush2.msra.mxu0 0.0
          %719 = vmatprep.subr.mxu0 0.0
          %720 = vmatpush2.msra.mxu0 0.0
          %721 = vmatprep.subr.mxu0 0.0
          %722 = vmatpush2.msra.mxu0 0.0
          %723 = vmatprep.subr.mxu0 0.0
          %724 = vmatpush2.msra.mxu0 0.0
          %725 = vmatprep.mubr.f32.mxu0 0.0
          %726 = vmatmul.mubr.f32.gmra.mxu0 %v652
          %v727 = vpop.f32.mrf.mxu0
          %v728 = vadd.f32 %v648, %v727
          %v729 = vpop.f32.mrf.mxu0
          %730 = vmatprep.mubr.f32.mxu0 0.0
          %731 = vmatmul.mubr.f32.gmra.mxu0 %v655
          %v732 = vpop.f32.mrf.mxu0
          %v733 = vadd.f32 %v648, %v732
          %v734 = vpop.f32.mrf.mxu0
          %735 = vdwg.mxu0
          %v736 = vmul.f32 %v728, 0.99999
          %v737 = vmul.f32 %v733, 0.99999
          %v738 = vld [vmem:[%s3] sm:$0xff]
          %v739 = vld [vmem:[%s3 + $0x8] sm:$0xff]
          %v740 = vadd.f32 %v736, %v738
          %v741 = vadd.f32 %v737, %v739
          %vm742 = vcmask 261120
          %743 = vst.msk [vmem:[#allocation2] sm:$0xff] %vm742, %v740
          %744 = vst.msk [vmem:[#allocation2 + $0x8] sm:$0xff] %vm742, %v741
        $region84: #{tpu_custom_call.1} parent=71 // pred_fallthru
          _
        %v745 = vld [vmem:[#allocation2] sm:$0xff]
        %v746 = vld [vmem:[#allocation2 + $0x8] sm:$0xff]
        %v747 = vld [vmem:[%s604] sm:$0xff]
        %v748 = vld [vmem:[%s604 + $0x8] sm:$0xff]
        %v749 = vld [vmem:[%s604 + $0x10] sm:$0xff]
        %v750 = vld [vmem:[%s604 + $0x18] sm:$0xff]
        %v751 = vld [vmem:[%s607] sm:$0x1]
        %v753 = vlaneseq
        %v754 = vshrl.u32 %v753, 7
        %v755 = vsub.s32 0, %v754
        %v756 = vrot.slane %v751, %v755
        %vm758 = vcmask 261120
        %v760 = vsel %vm758, %v745, 0
        %v763 = vsel %vm758, %v746, 0
        %765 = vmatprep.subr.mxu0 0.0
        %766 = vmatpush1.msra.mxu0 0.0
        %767 = vmatprep.subr.mxu0 0.0
        %768 = vmatpush1.msra.mxu0 0.0
        %769 = vmatprep.subr.mxu0 0.0
        %770 = vmatpush1.msra.mxu0 0.0
        %771 = vmatprep.subr.mxu0 0.0
        %772 = vmatpush1.msra.mxu0 0.0
        %773 = vmatprep.subr.mxu0 0.0
        %774 = vmatpush1.msra.mxu0 0.0
        %775 = vmatprep.subr.mxu0 0.0
        %776 = vmatpush1.msra.mxu0 0.0
        %777 = vmatprep.subr.mxu0 0.0
        %778 = vmatpush1.msra.mxu0 0.0
        %779 = vmatprep.subr.mxu0 0.0
        %780 = vmatpush1.msra.mxu0 0.0
        %781 = vmatprep.subr.mxu0 0.0
        %782 = vmatpush1.msra.mxu0 0.0
        %783 = vmatprep.subr.mxu0 0.0
        %784 = vmatpush1.msra.mxu0 0.0
        %785 = vmatprep.subr.mxu0 0.0
        %786 = vmatpush1.msra.mxu0 0.0
        %787 = vmatprep.subr.mxu0 0.0
        %788 = vmatpush1.msra.mxu0 0.0
        %789 = vmatprep.subr.mxu0 0.0
        %790 = vmatpush1.msra.mxu0 %v750
        %791 = vmatprep.subr.mxu0 0.0
        %792 = vmatpush1.msra.mxu0 %v749
        %793 = vmatprep.subr.mxu0 0.0
        %794 = vmatpush1.msra.mxu0 %v748
        %795 = vmatprep.subr.mxu0 0.0
        %796 = vmatpush1.msra.mxu0 %v747
        %797 = vmatprep.subr.mxu0 0.0
        %798 = vmatpush2.msra.mxu0 0.0
        %799 = vmatprep.subr.mxu0 0.0
        %800 = vmatpush2.msra.mxu0 0.0
        %801 = vmatprep.subr.mxu0 0.0
        %802 = vmatpush2.msra.mxu0 0.0
        %803 = vmatprep.subr.mxu0 0.0
        %804 = vmatpush2.msra.mxu0 0.0
        %805 = vmatprep.subr.mxu0 0.0
        %806 = vmatpush2.msra.mxu0 0.0
        %807 = vmatprep.subr.mxu0 0.0
        %808 = vmatpush2.msra.mxu0 0.0
        %809 = vmatprep.subr.mxu0 0.0
        %810 = vmatpush2.msra.mxu0 0.0
        %811 = vmatprep.subr.mxu0 0.0
        %812 = vmatpush2.msra.mxu0 0.0
        %813 = vmatprep.subr.mxu0 0.0
        %814 = vmatpush2.msra.mxu0 0.0
        %815 = vmatprep.subr.mxu0 0.0
        %816 = vmatpush2.msra.mxu0 0.0
        %817 = vmatprep.subr.mxu0 0.0
        %818 = vmatpush2.msra.mxu0 0.0
        %819 = vmatprep.subr.mxu0 0.0
        %820 = vmatpush2.msra.mxu0 0.0
        %821 = vmatprep.subr.mxu0 0.0
        %822 = vmatpush2.msra.mxu0 0.0
        %823 = vmatprep.subr.mxu0 0.0
        %824 = vmatpush2.msra.mxu0 0.0
        %825 = vmatprep.subr.mxu0 0.0
        %826 = vmatpush2.msra.mxu0 0.0
        %827 = vmatprep.subr.mxu0 0.0
        %828 = vmatpush2.msra.mxu0 0.0
        %829 = vmatprep.mubr.f32.mxu0 0.0
        %830 = vmatmul.mubr.f32.gmra.mxu0 %v760
        %v831 = vpop.f32.mrf.mxu0
        %v832 = vadd.f32 %v756, %v831
        %v833 = vpop.f32.mrf.mxu0
        %834 = vmatprep.mubr.f32.mxu0 0.0
        %835 = vmatmul.mubr.f32.gmra.mxu0 %v763
        %v836 = vpop.f32.mrf.mxu0
        %v837 = vadd.f32 %v756, %v836
        %v838 = vpop.f32.mrf.mxu0
        %839 = vdwg.mxu0
        %841 = vrot.lane.b32.xlu0 %v832, 96
        %v842 = vpop.permute.xlu0 %841
        %vm843 = vcmask 64512
        %v844 = vsel %vm843, %v832, 0
        %v846 = vsel %vm843, %v842, 0
        %848 = vmatprep.subr.mxu0 0.0
        %849 = vmatpush1.xpose.msra.mxu0 0.0
        %850 = vmatprep.subr.mxu0 0.0
        %851 = vmatpush1.xpose.msra.mxu0 0.0
        %852 = vmatprep.subr.mxu0 0.0
        %853 = vmatpush1.xpose.msra.mxu0 0.0
        %854 = vmatprep.subr.mxu0 0.0
        %855 = vmatpush1.xpose.msra.mxu0 0.0
        %856 = vmatprep.subr.mxu0 0.0
        %857 = vmatpush1.xpose.msra.mxu0 0.0
        %858 = vmatprep.subr.mxu0 0.0
        %859 = vmatpush1.xpose.msra.mxu0 0.0
        %860 = vmatprep.subr.mxu0 0.0
        %861 = vmatpush1.xpose.msra.mxu0 0.0
        %862 = vmatprep.subr.mxu0 0.0
        %863 = vmatpush1.xpose.msra.mxu0 0.0
        %864 = vmatprep.subr.mxu0 0.0
        %865 = vmatpush1.xpose.msra.mxu0 0.0
        %866 = vmatprep.subr.mxu0 0.0
        %867 = vmatpush1.xpose.msra.mxu0 0.0
        %868 = vmatprep.subr.mxu0 0.0
        %869 = vmatpush1.xpose.msra.mxu0 0.0
        %870 = vmatprep.subr.mxu0 0.0
        %871 = vmatpush1.xpose.msra.mxu0 0.0
        %872 = vmatprep.subr.mxu0 0.0
        %873 = vmatpush1.xpose.msra.mxu0 0.0
        %874 = vmatprep.subr.mxu0 0.0
        %875 = vmatpush1.xpose.msra.mxu0 0.0
        %876 = vmatprep.subr.mxu0 0.0
        %877 = vmatpush1.xpose.msra.mxu0 0.0
        %878 = vmatprep.subr.mxu0 0.0
        %879 = vmatpush1.xpose.msra.mxu0 %v846
        %880 = vmatprep.subr.mxu0 0.0
        %881 = vmatpush2.xpose.msra.mxu0 0.0
        %882 = vmatprep.subr.mxu0 0.0
        %883 = vmatpush2.xpose.msra.mxu0 0.0
        %884 = vmatprep.subr.mxu0 0.0
        %885 = vmatpush2.xpose.msra.mxu0 0.0
        %886 = vmatprep.subr.mxu0 0.0
        %887 = vmatpush2.xpose.msra.mxu0 0.0
        %888 = vmatprep.subr.mxu0 0.0
        %889 = vmatpush2.xpose.msra.mxu0 0.0
        %890 = vmatprep.subr.mxu0 0.0
        %891 = vmatpush2.xpose.msra.mxu0 0.0
        %892 = vmatprep.subr.mxu0 0.0
        %893 = vmatpush2.xpose.msra.mxu0 0.0
        %894 = vmatprep.subr.mxu0 0.0
        %895 = vmatpush2.xpose.msra.mxu0 0.0
        %896 = vmatprep.subr.mxu0 0.0
        %897 = vmatpush2.xpose.msra.mxu0 0.0
        %898 = vmatprep.subr.mxu0 0.0
        %899 = vmatpush2.xpose.msra.mxu0 0.0
        %900 = vmatprep.subr.mxu0 0.0
        %901 = vmatpush2.xpose.msra.mxu0 0.0
        %902 = vmatprep.subr.mxu0 0.0
        %903 = vmatpush2.xpose.msra.mxu0 0.0
        %904 = vmatprep.subr.mxu0 0.0
        %905 = vmatpush2.xpose.msra.mxu0 0.0
        %906 = vmatprep.subr.mxu0 0.0
        %907 = vmatpush2.xpose.msra.mxu0 0.0
        %908 = vmatprep.subr.mxu0 0.0
        %909 = vmatpush2.xpose.msra.mxu0 0.0
        %910 = vmatprep.subr.mxu0 0.0
        %911 = vmatpush2.xpose.msra.mxu0 0.0
        %912 = vmatprep.mubr.f32.mxu0 0.0
        %913 = vmatmul.mubr.f32.gmra.mxu0 %v844
        %v914 = vpop.f32.mrf.mxu0
        %v915 = vadd.f32 0.0, %v914
        %v916 = vpop.f32.mrf.mxu0
        %917 = vdwg.mxu0
        %v918 = vmul.f32 %v915, 0.35355338
        %v919 = vsel %vm843, %v918, -inf
        %920 = vmax.xlane.f32.xlu0 %v919
        %v921 = vpop.xlane.xlu0 %920
        %v922 = vsub.f32 %v918, %v921
        %v923 = vmul.f32 %v922, 1.442695
        %v924 = vpow.pop %v923
        %v925 = vsel %vm843, %v924, 0.0
        %926 = vadd.xlane.f32.xlu0 %v925
        %v927 = vpop.xlane.xlu0 %926
        %v928 = vrcp.pop %v927
        %v929 = vmul.f32 %v924, %v928
        %v930 = vadd.f32 %v929, 0.0
        %931 = vrot.lane.b32.xlu0 %v832, 64
        %v932 = vpop.permute.xlu0 %931
        %v935 = vsel %vm843, %v929, 0
        %937 = vmatprep.subr.mxu0 0.0
        %938 = vmatpush1.msra.mxu0 0.0
        %939 = vmatprep.subr.mxu0 0.0
        %940 = vmatpush1.msra.mxu0 0.0
        %941 = vmatprep.subr.mxu0 0.0
        %942 = vmatpush1.msra.mxu0 0.0
        %943 = vmatprep.subr.mxu0 0.0
        %944 = vmatpush1.msra.mxu0 0.0
        %945 = vmatprep.subr.mxu0 0.0
        %946 = vmatpush1.msra.mxu0 0.0
        %947 = vmatprep.subr.mxu0 0.0
        %948 = vmatpush1.msra.mxu0 0.0
        %949 = vmatprep.subr.mxu0 0.0
        %950 = vmatpush1.msra.mxu0 0.0
        %951 = vmatprep.subr.mxu0 0.0
        %952 = vmatpush1.msra.mxu0 0.0
        %953 = vmatprep.subr.mxu0 0.0
        %954 = vmatpush1.msra.mxu0 0.0
        %955 = vmatprep.subr.mxu0 0.0
        %956 = vmatpush1.msra.mxu0 0.0
        %957 = vmatprep.subr.mxu0 0.0
        %958 = vmatpush1.msra.mxu0 0.0
        %959 = vmatprep.subr.mxu0 0.0
        %960 = vmatpush1.msra.mxu0 0.0
        %961 = vmatprep.subr.mxu0 0.0
        %962 = vmatpush1.msra.mxu0 0.0
        %963 = vmatprep.subr.mxu0 0.0
        %964 = vmatpush1.msra.mxu0 0.0
        %965 = vmatprep.subr.mxu0 0.0
        %966 = vmatpush1.msra.mxu0 0.0
        %967 = vmatprep.subr.mxu0 0.0
        %968 = vmatpush1.msra.mxu0 %v932
        %969 = vmatprep.subr.mxu0 0.0
        %970 = vmatpush2.msra.mxu0 0.0
        %971 = vmatprep.subr.mxu0 0.0
        %972 = vmatpush2.msra.mxu0 0.0
        %973 = vmatprep.subr.mxu0 0.0
        %974 = vmatpush2.msra.mxu0 0.0
        %975 = vmatprep.subr.mxu0 0.0
        %976 = vmatpush2.msra.mxu0 0.0
        %977 = vmatprep.subr.mxu0 0.0
        %978 = vmatpush2.msra.mxu0 0.0
        %979 = vmatprep.subr.mxu0 0.0
        %980 = vmatpush2.msra.mxu0 0.0
        %981 = vmatprep.subr.mxu0 0.0
        %982 = vmatpush2.msra.mxu0 0.0
        %983 = vmatprep.subr.mxu0 0.0
        %984 = vmatpush2.msra.mxu0 0.0
        %985 = vmatprep.subr.mxu0 0.0
        %986 = vmatpush2.msra.mxu0 0.0
        %987 = vmatprep.subr.mxu0 0.0
        %988 = vmatpush2.msra.mxu0 0.0
        %989 = vmatprep.subr.mxu0 0.0
        %990 = vmatpush2.msra.mxu0 0.0
        %991 = vmatprep.subr.mxu0 0.0
        %992 = vmatpush2.msra.mxu0 0.0
        %993 = vmatprep.subr.mxu0 0.0
        %994 = vmatpush2.msra.mxu0 0.0
        %995 = vmatprep.subr.mxu0 0.0
        %996 = vmatpush2.msra.mxu0 0.0
        %997 = vmatprep.subr.mxu0 0.0
        %998 = vmatpush2.msra.mxu0 0.0
        %999 = vmatprep.subr.mxu0 0.0
        %1000 = vmatpush2.msra.mxu0 0.0
        %1001 = vmatprep.mubr.f32.mxu0 0.0
        %1002 = vmatmul.mubr.f32.gmra.mxu0 %v935
        %v1003 = vpop.f32.mrf.mxu0
        %v1004 = vadd.f32 0.0, %v1003
        %v1005 = vpop.f32.mrf.mxu0
        %1006 = vdwg.mxu0
        %1007 = vrot.lane.b32.xlu0 %v832, 120
        %v1008 = vpop.permute.xlu0 %1007
        %1009 = vrot.lane.b32.xlu0 %v832, 88
        %v1010 = vpop.permute.xlu0 %1009
        %v1011 = vsel %vm843, %v1008, 0
        %v1013 = vsel %vm843, %v1010, 0
        %1015 = vmatprep.subr.mxu0 0.0
        %1016 = vmatpush1.xpose.msra.mxu0 0.0
        %1017 = vmatprep.subr.mxu0 0.0
        %1018 = vmatpush1.xpose.msra.mxu0 0.0
        %1019 = vmatprep.subr.mxu0 0.0
        %1020 = vmatpush1.xpose.msra.mxu0 0.0
        %1021 = vmatprep.subr.mxu0 0.0
        %1022 = vmatpush1.xpose.msra.mxu0 0.0
        %1023 = vmatprep.subr.mxu0 0.0
        %1024 = vmatpush1.xpose.msra.mxu0 0.0
        %1025 = vmatprep.subr.mxu0 0.0
        %1026 = vmatpush1.xpose.msra.mxu0 0.0
        %1027 = vmatprep.subr.mxu0 0.0
        %1028 = vmatpush1.xpose.msra.mxu0 0.0
        %1029 = vmatprep.subr.mxu0 0.0
        %1030 = vmatpush1.xpose.msra.mxu0 0.0
        %1031 = vmatprep.subr.mxu0 0.0
        %1032 = vmatpush1.xpose.msra.mxu0 0.0
        %1033 = vmatprep.subr.mxu0 0.0
        %1034 = vmatpush1.xpose.msra.mxu0 0.0
        %1035 = vmatprep.subr.mxu0 0.0
        %1036 = vmatpush1.xpose.msra.mxu0 0.0
        %1037 = vmatprep.subr.mxu0 0.0
        %1038 = vmatpush1.xpose.msra.mxu0 0.0
        %1039 = vmatprep.subr.mxu0 0.0
        %1040 = vmatpush1.xpose.msra.mxu0 0.0
        %1041 = vmatprep.subr.mxu0 0.0
        %1042 = vmatpush1.xpose.msra.mxu0 0.0
        %1043 = vmatprep.subr.mxu0 0.0
        %1044 = vmatpush1.xpose.msra.mxu0 0.0
        %1045 = vmatprep.subr.mxu0 0.0
        %1046 = vmatpush1.xpose.msra.mxu0 %v1013
        %1047 = vmatprep.subr.mxu0 0.0
        %1048 = vmatpush2.xpose.msra.mxu0 0.0
        %1049 = vmatprep.subr.mxu0 0.0
        %1050 = vmatpush2.xpose.msra.mxu0 0.0
        %1051 = vmatprep.subr.mxu0 0.0
        %1052 = vmatpush2.xpose.msra.mxu0 0.0
        %1053 = vmatprep.subr.mxu0 0.0
        %1054 = vmatpush2.xpose.msra.mxu0 0.0
        %1055 = vmatprep.subr.mxu0 0.0
        %1056 = vmatpush2.xpose.msra.mxu0 0.0
        %1057 = vmatprep.subr.mxu0 0.0
        %1058 = vmatpush2.xpose.msra.mxu0 0.0
        %1059 = vmatprep.subr.mxu0 0.0
        %1060 = vmatpush2.xpose.msra.mxu0 0.0
        %1061 = vmatprep.subr.mxu0 0.0
        %1062 = vmatpush2.xpose.msra.mxu0 0.0
        %1063 = vmatprep.subr.mxu0 0.0
        %1064 = vmatpush2.xpose.msra.mxu0 0.0
        %1065 = vmatprep.subr.mxu0 0.0
        %1066 = vmatpush2.xpose.msra.mxu0 0.0
        %1067 = vmatprep.subr.mxu0 0.0
        %1068 = vmatpush2.xpose.msra.mxu0 0.0
        %1069 = vmatprep.subr.mxu0 0.0
        %1070 = vmatpush2.xpose.msra.mxu0 0.0
        %1071 = vmatprep.subr.mxu0 0.0
        %1072 = vmatpush2.xpose.msra.mxu0 0.0
        %1073 = vmatprep.subr.mxu0 0.0
        %1074 = vmatpush2.xpose.msra.mxu0 0.0
        %1075 = vmatprep.subr.mxu0 0.0
        %1076 = vmatpush2.xpose.msra.mxu0 0.0
        %1077 = vmatprep.subr.mxu0 0.0
        %1078 = vmatpush2.xpose.msra.mxu0 0.0
        %1079 = vmatprep.mubr.f32.mxu0 0.0
        %1080 = vmatmul.mubr.f32.gmra.mxu0 %v1011
        %v1081 = vpop.f32.mrf.mxu0
        %v1082 = vadd.f32 0.0, %v1081
        %v1083 = vpop.f32.mrf.mxu0
        %1084 = vdwg.mxu0
        %v1085 = vmul.f32 %v1082, 0.35355338
        %v1086 = vsel %vm843, %v1085, -inf
        %1087 = vmax.xlane.f32.xlu0 %v1086
        %v1088 = vpop.xlane.xlu0 %1087
        %v1089 = vsub.f32 %v1085, %v1088
        %v1090 = vmul.f32 %v1089, 1.442695
        %v1091 = vpow.pop %v1090
        %v1092 = vsel %vm843, %v1091, 0.0
        %1093 = vadd.xlane.f32.xlu0 %v1092
        %v1094 = vpop.xlane.xlu0 %1093
        %v1095 = vrcp.pop %v1094
        %v1096 = vmul.f32 %v1091, %v1095
        %v1097 = vadd.f32 %v930, %v1096
        %1098 = vrot.lane.b32.xlu0 %v832, 56
        %v1099 = vpop.permute.xlu0 %1098
        %v1102 = vsel %vm843, %v1096, 0
        %1104 = vmatprep.subr.mxu0 0.0
        %1105 = vmatpush1.msra.mxu0 0.0
        %1106 = vmatprep.subr.mxu0 0.0
        %1107 = vmatpush1.msra.mxu0 0.0
        %1108 = vmatprep.subr.mxu0 0.0
        %1109 = vmatpush1.msra.mxu0 0.0
        %1110 = vmatprep.subr.mxu0 0.0
        %1111 = vmatpush1.msra.mxu0 0.0
        %1112 = vmatprep.subr.mxu0 0.0
        %1113 = vmatpush1.msra.mxu0 0.0
        %1114 = vmatprep.subr.mxu0 0.0
        %1115 = vmatpush1.msra.mxu0 0.0
        %1116 = vmatprep.subr.mxu0 0.0
        %1117 = vmatpush1.msra.mxu0 0.0
        %1118 = vmatprep.subr.mxu0 0.0
        %1119 = vmatpush1.msra.mxu0 0.0
        %1120 = vmatprep.subr.mxu0 0.0
        %1121 = vmatpush1.msra.mxu0 0.0
        %1122 = vmatprep.subr.mxu0 0.0
        %1123 = vmatpush1.msra.mxu0 0.0
        %1124 = vmatprep.subr.mxu0 0.0
        %1125 = vmatpush1.msra.mxu0 0.0
        %1126 = vmatprep.subr.mxu0 0.0
        %1127 = vmatpush1.msra.mxu0 0.0
        %1128 = vmatprep.subr.mxu0 0.0
        %1129 = vmatpush1.msra.mxu0 0.0
        %1130 = vmatprep.subr.mxu0 0.0
        %1131 = vmatpush1.msra.mxu0 0.0
        %1132 = vmatprep.subr.mxu0 0.0
        %1133 = vmatpush1.msra.mxu0 0.0
        %1134 = vmatprep.subr.mxu0 0.0
        %1135 = vmatpush1.msra.mxu0 %v1099
        %1136 = vmatprep.subr.mxu0 0.0
        %1137 = vmatpush2.msra.mxu0 0.0
        %1138 = vmatprep.subr.mxu0 0.0
        %1139 = vmatpush2.msra.mxu0 0.0
        %1140 = vmatprep.subr.mxu0 0.0
        %1141 = vmatpush2.msra.mxu0 0.0
        %1142 = vmatprep.subr.mxu0 0.0
        %1143 = vmatpush2.msra.mxu0 0.0
        %1144 = vmatprep.subr.mxu0 0.0
        %1145 = vmatpush2.msra.mxu0 0.0
        %1146 = vmatprep.subr.mxu0 0.0
        %1147 = vmatpush2.msra.mxu0 0.0
        %1148 = vmatprep.subr.mxu0 0.0
        %1149 = vmatpush2.msra.mxu0 0.0
        %1150 = vmatprep.subr.mxu0 0.0
        %1151 = vmatpush2.msra.mxu0 0.0
        %1152 = vmatprep.subr.mxu0 0.0
        %1153 = vmatpush2.msra.mxu0 0.0
        %1154 = vmatprep.subr.mxu0 0.0
        %1155 = vmatpush2.msra.mxu0 0.0
        %1156 = vmatprep.subr.mxu0 0.0
        %1157 = vmatpush2.msra.mxu0 0.0
        %1158 = vmatprep.subr.mxu0 0.0
        %1159 = vmatpush2.msra.mxu0 0.0
        %1160 = vmatprep.subr.mxu0 0.0
        %1161 = vmatpush2.msra.mxu0 0.0
        %1162 = vmatprep.subr.mxu0 0.0
        %1163 = vmatpush2.msra.mxu0 0.0
        %1164 = vmatprep.subr.mxu0 0.0
        %1165 = vmatpush2.msra.mxu0 0.0
        %1166 = vmatprep.subr.mxu0 0.0
        %1167 = vmatpush2.msra.mxu0 0.0
        %1168 = vmatprep.mubr.f32.mxu0 0.0
        %1169 = vmatmul.mubr.f32.gmra.mxu0 %v1102
        %v1170 = vpop.f32.mrf.mxu0
        %v1171 = vadd.f32 0.0, %v1170
        %v1172 = vpop.f32.mrf.mxu0
        %1173 = vdwg.mxu0
        %1174 = vrot.lane.b32.xlu0 %v832, 112
        %v1175 = vpop.permute.xlu0 %1174
        %1176 = vrot.lane.b32.xlu0 %v832, 80
        %v1177 = vpop.permute.xlu0 %1176
        %v1178 = vsel %vm843, %v1175, 0
        %v1180 = vsel %vm843, %v1177, 0
        %1182 = vmatprep.subr.mxu0 0.0
        %1183 = vmatpush1.xpose.msra.mxu0 0.0
        %1184 = vmatprep.subr.mxu0 0.0
        %1185 = vmatpush1.xpose.msra.mxu0 0.0
        %1186 = vmatprep.subr.mxu0 0.0
        %1187 = vmatpush1.xpose.msra.mxu0 0.0
        %1188 = vmatprep.subr.mxu0 0.0
        %1189 = vmatpush1.xpose.msra.mxu0 0.0
        %1190 = vmatprep.subr.mxu0 0.0
        %1191 = vmatpush1.xpose.msra.mxu0 0.0
        %1192 = vmatprep.subr.mxu0 0.0
        %1193 = vmatpush1.xpose.msra.mxu0 0.0
        %1194 = vmatprep.subr.mxu0 0.0
        %1195 = vmatpush1.xpose.msra.mxu0 0.0
        %1196 = vmatprep.subr.mxu0 0.0
        %1197 = vmatpush1.xpose.msra.mxu0 0.0
        %1198 = vmatprep.subr.mxu0 0.0
        %1199 = vmatpush1.xpose.msra.mxu0 0.0
        %1200 = vmatprep.subr.mxu0 0.0
        %1201 = vmatpush1.xpose.msra.mxu0 0.0
        %1202 = vmatprep.subr.mxu0 0.0
        %1203 = vmatpush1.xpose.msra.mxu0 0.0
        %1204 = vmatprep.subr.mxu0 0.0
        %1205 = vmatpush1.xpose.msra.mxu0 0.0
        %1206 = vmatprep.subr.mxu0 0.0
        %1207 = vmatpush1.xpose.msra.mxu0 0.0
        %1208 = vmatprep.subr.mxu0 0.0
        %1209 = vmatpush1.xpose.msra.mxu0 0.0
        %1210 = vmatprep.subr.mxu0 0.0
        %1211 = vmatpush1.xpose.msra.mxu0 0.0
        %1212 = vmatprep.subr.mxu0 0.0
        %1213 = vmatpush1.xpose.msra.mxu0 %v1180
        %1214 = vmatprep.subr.mxu0 0.0
        %1215 = vmatpush2.xpose.msra.mxu0 0.0
        %1216 = vmatprep.subr.mxu0 0.0
        %1217 = vmatpush2.xpose.msra.mxu0 0.0
        %1218 = vmatprep.subr.mxu0 0.0
        %1219 = vmatpush2.xpose.msra.mxu0 0.0
        %1220 = vmatprep.subr.mxu0 0.0
        %1221 = vmatpush2.xpose.msra.mxu0 0.0
        %1222 = vmatprep.subr.mxu0 0.0
        %1223 = vmatpush2.xpose.msra.mxu0 0.0
        %1224 = vmatprep.subr.mxu0 0.0
        %1225 = vmatpush2.xpose.msra.mxu0 0.0
        %1226 = vmatprep.subr.mxu0 0.0
        %1227 = vmatpush2.xpose.msra.mxu0 0.0
        %1228 = vmatprep.subr.mxu0 0.0
        %1229 = vmatpush2.xpose.msra.mxu0 0.0
        %1230 = vmatprep.subr.mxu0 0.0
        %1231 = vmatpush2.xpose.msra.mxu0 0.0
        %1232 = vmatprep.subr.mxu0 0.0
        %1233 = vmatpush2.xpose.msra.mxu0 0.0
        %1234 = vmatprep.subr.mxu0 0.0
        %1235 = vmatpush2.xpose.msra.mxu0 0.0
        %1236 = vmatprep.subr.mxu0 0.0
        %1237 = vmatpush2.xpose.msra.mxu0 0.0
        %1238 = vmatprep.subr.mxu0 0.0
        %1239 = vmatpush2.xpose.msra.mxu0 0.0
        %1240 = vmatprep.subr.mxu0 0.0
        %1241 = vmatpush2.xpose.msra.mxu0 0.0
        %1242 = vmatprep.subr.mxu0 0.0
        %1243 = vmatpush2.xpose.msra.mxu0 0.0
        %1244 = vmatprep.subr.mxu0 0.0
        %1245 = vmatpush2.xpose.msra.mxu0 0.0
        %1246 = vmatprep.mubr.f32.mxu0 0.0
        %1247 = vmatmul.mubr.f32.gmra.mxu0 %v1178
        %v1248 = vpop.f32.mrf.mxu0
        %v1249 = vadd.f32 0.0, %v1248
        %v1250 = vpop.f32.mrf.mxu0
        %1251 = vdwg.mxu0
        %v1252 = vmul.f32 %v1249, 0.35355338
        %v1253 = vsel %vm843, %v1252, -inf
        %1254 = vmax.xlane.f32.xlu0 %v1253
        %v1255 = vpop.xlane.xlu0 %1254
        %v1256 = vsub.f32 %v1252, %v1255
        %v1257 = vmul.f32 %v1256, 1.442695
        %v1258 = vpow.pop %v1257
        %v1259 = vsel %vm843, %v1258, 0.0
        %1260 = vadd.xlane.f32.xlu0 %v1259
        %v1261 = vpop.xlane.xlu0 %1260
        %v1262 = vrcp.pop %v1261
        %v1263 = vmul.f32 %v1258, %v1262
        %v1264 = vadd.f32 %v1097, %v1263
        %1265 = vrot.lane.b32.xlu0 %v832, 48
        %v1266 = vpop.permute.xlu0 %1265
        %v1269 = vsel %vm843, %v1263, 0
        %1271 = vmatprep.subr.mxu0 0.0
        %1272 = vmatpush1.msra.mxu0 0.0
        %1273 = vmatprep.subr.mxu0 0.0
        %1274 = vmatpush1.msra.mxu0 0.0
        %1275 = vmatprep.subr.mxu0 0.0
        %1276 = vmatpush1.msra.mxu0 0.0
        %1277 = vmatprep.subr.mxu0 0.0
        %1278 = vmatpush1.msra.mxu0 0.0
        %1279 = vmatprep.subr.mxu0 0.0
        %1280 = vmatpush1.msra.mxu0 0.0
        %1281 = vmatprep.subr.mxu0 0.0
        %1282 = vmatpush1.msra.mxu0 0.0
        %1283 = vmatprep.subr.mxu0 0.0
        %1284 = vmatpush1.msra.mxu0 0.0
        %1285 = vmatprep.subr.mxu0 0.0
        %1286 = vmatpush1.msra.mxu0 0.0
        %1287 = vmatprep.subr.mxu0 0.0
        %1288 = vmatpush1.msra.mxu0 0.0
        %1289 = vmatprep.subr.mxu0 0.0
        %1290 = vmatpush1.msra.mxu0 0.0
        %1291 = vmatprep.subr.mxu0 0.0
        %1292 = vmatpush1.msra.mxu0 0.0
        %1293 = vmatprep.subr.mxu0 0.0
        %1294 = vmatpush1.msra.mxu0 0.0
        %1295 = vmatprep.subr.mxu0 0.0
        %1296 = vmatpush1.msra.mxu0 0.0
        %1297 = vmatprep.subr.mxu0 0.0
        %1298 = vmatpush1.msra.mxu0 0.0
        %1299 = vmatprep.subr.mxu0 0.0
        %1300 = vmatpush1.msra.mxu0 0.0
        %1301 = vmatprep.subr.mxu0 0.0
        %1302 = vmatpush1.msra.mxu0 %v1266
        %1303 = vmatprep.subr.mxu0 0.0
        %1304 = vmatpush2.msra.mxu0 0.0
        %1305 = vmatprep.subr.mxu0 0.0
        %1306 = vmatpush2.msra.mxu0 0.0
        %1307 = vmatprep.subr.mxu0 0.0
        %1308 = vmatpush2.msra.mxu0 0.0
        %1309 = vmatprep.subr.mxu0 0.0
        %1310 = vmatpush2.msra.mxu0 0.0
        %1311 = vmatprep.subr.mxu0 0.0
        %1312 = vmatpush2.msra.mxu0 0.0
        %1313 = vmatprep.subr.mxu0 0.0
        %1314 = vmatpush2.msra.mxu0 0.0
        %1315 = vmatprep.subr.mxu0 0.0
        %1316 = vmatpush2.msra.mxu0 0.0
        %1317 = vmatprep.subr.mxu0 0.0
        %1318 = vmatpush2.msra.mxu0 0.0
        %1319 = vmatprep.subr.mxu0 0.0
        %1320 = vmatpush2.msra.mxu0 0.0
        %1321 = vmatprep.subr.mxu0 0.0
        %1322 = vmatpush2.msra.mxu0 0.0
        %1323 = vmatprep.subr.mxu0 0.0
        %1324 = vmatpush2.msra.mxu0 0.0
        %1325 = vmatprep.subr.mxu0 0.0
        %1326 = vmatpush2.msra.mxu0 0.0
        %1327 = vmatprep.subr.mxu0 0.0
        %1328 = vmatpush2.msra.mxu0 0.0
        %1329 = vmatprep.subr.mxu0 0.0
        %1330 = vmatpush2.msra.mxu0 0.0
        %1331 = vmatprep.subr.mxu0 0.0
        %1332 = vmatpush2.msra.mxu0 0.0
        %1333 = vmatprep.subr.mxu0 0.0
        %1334 = vmatpush2.msra.mxu0 0.0
        %1335 = vmatprep.mubr.f32.mxu0 0.0
        %1336 = vmatmul.mubr.f32.gmra.mxu0 %v1269
        %v1337 = vpop.f32.mrf.mxu0
        %v1338 = vadd.f32 0.0, %v1337
        %v1339 = vpop.f32.mrf.mxu0
        %1340 = vdwg.mxu0
        %1341 = vrot.lane.b32.xlu0 %v832, 104
        %v1342 = vpop.permute.xlu0 %1341
        %1343 = vrot.lane.b32.xlu0 %v832, 72
        %v1344 = vpop.permute.xlu0 %1343
        %v1345 = vsel %vm843, %v1342, 0
        %v1347 = vsel %vm843, %v1344, 0
        %1349 = vmatprep.subr.mxu0 0.0
        %1350 = vmatpush1.xpose.msra.mxu0 0.0
        %1351 = vmatprep.subr.mxu0 0.0
        %1352 = vmatpush1.xpose.msra.mxu0 0.0
        %1353 = vmatprep.subr.mxu0 0.0
        %1354 = vmatpush1.xpose.msra.mxu0 0.0
        %1355 = vmatprep.subr.mxu0 0.0
        %1356 = vmatpush1.xpose.msra.mxu0 0.0
        %1357 = vmatprep.subr.mxu0 0.0
        %1358 = vmatpush1.xpose.msra.mxu0 0.0
        %1359 = vmatprep.subr.mxu0 0.0
        %1360 = vmatpush1.xpose.msra.mxu0 0.0
        %1361 = vmatprep.subr.mxu0 0.0
        %1362 = vmatpush1.xpose.msra.mxu0 0.0
        %1363 = vmatprep.subr.mxu0 0.0
        %1364 = vmatpush1.xpose.msra.mxu0 0.0
        %1365 = vmatprep.subr.mxu0 0.0
        %1366 = vmatpush1.xpose.msra.mxu0 0.0
        %1367 = vmatprep.subr.mxu0 0.0
        %1368 = vmatpush1.xpose.msra.mxu0 0.0
        %1369 = vmatprep.subr.mxu0 0.0
        %1370 = vmatpush1.xpose.msra.mxu0 0.0
        %1371 = vmatprep.subr.mxu0 0.0
        %1372 = vmatpush1.xpose.msra.mxu0 0.0
        %1373 = vmatprep.subr.mxu0 0.0
        %1374 = vmatpush1.xpose.msra.mxu0 0.0
        %1375 = vmatprep.subr.mxu0 0.0
        %1376 = vmatpush1.xpose.msra.mxu0 0.0
        %1377 = vmatprep.subr.mxu0 0.0
        %1378 = vmatpush1.xpose.msra.mxu0 0.0
        %1379 = vmatprep.subr.mxu0 0.0
        %1380 = vmatpush1.xpose.msra.mxu0 %v1347
        %1381 = vmatprep.subr.mxu0 0.0
        %1382 = vmatpush2.xpose.msra.mxu0 0.0
        %1383 = vmatprep.subr.mxu0 0.0
        %1384 = vmatpush2.xpose.msra.mxu0 0.0
        %1385 = vmatprep.subr.mxu0 0.0
        %1386 = vmatpush2.xpose.msra.mxu0 0.0
        %1387 = vmatprep.subr.mxu0 0.0
        %1388 = vmatpush2.xpose.msra.mxu0 0.0
        %1389 = vmatprep.subr.mxu0 0.0
        %1390 = vmatpush2.xpose.msra.mxu0 0.0
        %1391 = vmatprep.subr.mxu0 0.0
        %1392 = vmatpush2.xpose.msra.mxu0 0.0
        %1393 = vmatprep.subr.mxu0 0.0
        %1394 = vmatpush2.xpose.msra.mxu0 0.0
        %1395 = vmatprep.subr.mxu0 0.0
        %1396 = vmatpush2.xpose.msra.mxu0 0.0
        %1397 = vmatprep.subr.mxu0 0.0
        %1398 = vmatpush2.xpose.msra.mxu0 0.0
        %1399 = vmatprep.subr.mxu0 0.0
        %1400 = vmatpush2.xpose.msra.mxu0 0.0
        %1401 = vmatprep.subr.mxu0 0.0
        %1402 = vmatpush2.xpose.msra.mxu0 0.0
        %1403 = vmatprep.subr.mxu0 0.0
        %1404 = vmatpush2.xpose.msra.mxu0 0.0
        %1405 = vmatprep.subr.mxu0 0.0
        %1406 = vmatpush2.xpose.msra.mxu0 0.0
        %1407 = vmatprep.subr.mxu0 0.0
        %1408 = vmatpush2.xpose.msra.mxu0 0.0
        %1409 = vmatprep.subr.mxu0 0.0
        %1410 = vmatpush2.xpose.msra.mxu0 0.0
        %1411 = vmatprep.subr.mxu0 0.0
        %1412 = vmatpush2.xpose.msra.mxu0 0.0
        %1413 = vmatprep.mubr.f32.mxu0 0.0
        %1414 = vmatmul.mubr.f32.gmra.mxu0 %v1345
        %v1415 = vpop.f32.mrf.mxu0
        %v1416 = vadd.f32 0.0, %v1415
        %v1417 = vpop.f32.mrf.mxu0
        %1418 = vdwg.mxu0
        %v1419 = vmul.f32 %v1416, 0.35355338
        %v1420 = vsel %vm843, %v1419, -inf
        %1421 = vmax.xlane.f32.xlu0 %v1420
        %v1422 = vpop.xlane.xlu0 %1421
        %v1423 = vsub.f32 %v1419, %v1422
        %v1424 = vmul.f32 %v1423, 1.442695
        %v1425 = vpow.pop %v1424
        %v1426 = vsel %vm843, %v1425, 0.0
        %1427 = vadd.xlane.f32.xlu0 %v1426
        %v1428 = vpop.xlane.xlu0 %1427
        %v1429 = vrcp.pop %v1428
        %v1430 = vmul.f32 %v1425, %v1429
        %v1431 = vadd.f32 %v1264, %v1430
        %1432 = vrot.lane.b32.xlu0 %v832, 40
        %v1433 = vpop.permute.xlu0 %1432
        %v1436 = vsel %vm843, %v1430, 0
        %1438 = vmatprep.subr.mxu0 0.0
        %1439 = vmatpush1.msra.mxu0 0.0
        %1440 = vmatprep.subr.mxu0 0.0
        %1441 = vmatpush1.msra.mxu0 0.0
        %1442 = vmatprep.subr.mxu0 0.0
        %1443 = vmatpush1.msra.mxu0 0.0
        %1444 = vmatprep.subr.mxu0 0.0
        %1445 = vmatpush1.msra.mxu0 0.0
        %1446 = vmatprep.subr.mxu0 0.0
        %1447 = vmatpush1.msra.mxu0 0.0
        %1448 = vmatprep.subr.mxu0 0.0
        %1449 = vmatpush1.msra.mxu0 0.0
        %1450 = vmatprep.subr.mxu0 0.0
        %1451 = vmatpush1.msra.mxu0 0.0
        %1452 = vmatprep.subr.mxu0 0.0
        %1453 = vmatpush1.msra.mxu0 0.0
        %1454 = vmatprep.subr.mxu0 0.0
        %1455 = vmatpush1.msra.mxu0 0.0
        %1456 = vmatprep.subr.mxu0 0.0
        %1457 = vmatpush1.msra.mxu0 0.0
        %1458 = vmatprep.subr.mxu0 0.0
        %1459 = vmatpush1.msra.mxu0 0.0
        %1460 = vmatprep.subr.mxu0 0.0
        %1461 = vmatpush1.msra.mxu0 0.0
        %1462 = vmatprep.subr.mxu0 0.0
        %1463 = vmatpush1.msra.mxu0 0.0
        %1464 = vmatprep.subr.mxu0 0.0
        %1465 = vmatpush1.msra.mxu0 0.0
        %1466 = vmatprep.subr.mxu0 0.0
        %1467 = vmatpush1.msra.mxu0 0.0
        %1468 = vmatprep.subr.mxu0 0.0
        %1469 = vmatpush1.msra.mxu0 %v1433
        %1470 = vmatprep.subr.mxu0 0.0
        %1471 = vmatpush2.msra.mxu0 0.0
        %1472 = vmatprep.subr.mxu0 0.0
        %1473 = vmatpush2.msra.mxu0 0.0
        %1474 = vmatprep.subr.mxu0 0.0
        %1475 = vmatpush2.msra.mxu0 0.0
        %1476 = vmatprep.subr.mxu0 0.0
        %1477 = vmatpush2.msra.mxu0 0.0
        %1478 = vmatprep.subr.mxu0 0.0
        %1479 = vmatpush2.msra.mxu0 0.0
        %1480 = vmatprep.subr.mxu0 0.0
        %1481 = vmatpush2.msra.mxu0 0.0
        %1482 = vmatprep.subr.mxu0 0.0
        %1483 = vmatpush2.msra.mxu0 0.0
        %1484 = vmatprep.subr.mxu0 0.0
        %1485 = vmatpush2.msra.mxu0 0.0
        %1486 = vmatprep.subr.mxu0 0.0
        %1487 = vmatpush2.msra.mxu0 0.0
        %1488 = vmatprep.subr.mxu0 0.0
        %1489 = vmatpush2.msra.mxu0 0.0
        %1490 = vmatprep.subr.mxu0 0.0
        %1491 = vmatpush2.msra.mxu0 0.0
        %1492 = vmatprep.subr.mxu0 0.0
        %1493 = vmatpush2.msra.mxu0 0.0
        %1494 = vmatprep.subr.mxu0 0.0
        %1495 = vmatpush2.msra.mxu0 0.0
        %1496 = vmatprep.subr.mxu0 0.0
        %1497 = vmatpush2.msra.mxu0 0.0
        %1498 = vmatprep.subr.mxu0 0.0
        %1499 = vmatpush2.msra.mxu0 0.0
        %1500 = vmatprep.subr.mxu0 0.0
        %1501 = vmatpush2.msra.mxu0 0.0
        %1502 = vmatprep.mubr.f32.mxu0 0.0
        %1503 = vmatmul.mubr.f32.gmra.mxu0 %v1436
        %v1504 = vpop.f32.mrf.mxu0
        %v1505 = vadd.f32 0.0, %v1504
        %v1506 = vpop.f32.mrf.mxu0
        %1507 = vdwg.mxu0
        %1509 = vrot.lane.b32.xlu0 %v1171, 8
        %v1510 = vpop.permute.xlu0 %1509
        %1513 = vrot.lane.b32.xlu0 %v1338, 16
        %v1514 = vpop.permute.xlu0 %1513
        %1517 = vrot.lane.b32.xlu0 %v1505, 24
        %v1518 = vpop.permute.xlu0 %1517
        %v1520 = vsel %vm843, %v1004, %v1510
        %vm1521 = vcmask 130048
        %v1522 = vsel %vm1521, %v1520, %v1514
        %vm1523 = vcmask 195584
        %v1524 = vsel %vm1523, %v1522, %v1518
        %v1525 = vmul.f32 %v1431, 0.25
        %1527 = vrot.lane.b32.xlu0 %v837, 96
        %v1528 = vpop.permute.xlu0 %1527
        %v1529 = vsel %vm843, %v837, 0
        %v1531 = vsel %vm843, %v1528, 0
        %1533 = vmatprep.subr.mxu0 0.0
        %1534 = vmatpush1.xpose.msra.mxu0 0.0
        %1535 = vmatprep.subr.mxu0 0.0
        %1536 = vmatpush1.xpose.msra.mxu0 0.0
        %1537 = vmatprep.subr.mxu0 0.0
        %1538 = vmatpush1.xpose.msra.mxu0 0.0
        %1539 = vmatprep.subr.mxu0 0.0
        %1540 = vmatpush1.xpose.msra.mxu0 0.0
        %1541 = vmatprep.subr.mxu0 0.0
        %1542 = vmatpush1.xpose.msra.mxu0 0.0
        %1543 = vmatprep.subr.mxu0 0.0
        %1544 = vmatpush1.xpose.msra.mxu0 0.0
        %1545 = vmatprep.subr.mxu0 0.0
        %1546 = vmatpush1.xpose.msra.mxu0 0.0
        %1547 = vmatprep.subr.mxu0 0.0
        %1548 = vmatpush1.xpose.msra.mxu0 0.0
        %1549 = vmatprep.subr.mxu0 0.0
        %1550 = vmatpush1.xpose.msra.mxu0 0.0
        %1551 = vmatprep.subr.mxu0 0.0
        %1552 = vmatpush1.xpose.msra.mxu0 0.0
        %1553 = vmatprep.subr.mxu0 0.0
        %1554 = vmatpush1.xpose.msra.mxu0 0.0
        %1555 = vmatprep.subr.mxu0 0.0
        %1556 = vmatpush1.xpose.msra.mxu0 0.0
        %1557 = vmatprep.subr.mxu0 0.0
        %1558 = vmatpush1.xpose.msra.mxu0 0.0
        %1559 = vmatprep.subr.mxu0 0.0
        %1560 = vmatpush1.xpose.msra.mxu0 0.0
        %1561 = vmatprep.subr.mxu0 0.0
        %1562 = vmatpush1.xpose.msra.mxu0 0.0
        %1563 = vmatprep.subr.mxu0 0.0
        %1564 = vmatpush1.xpose.msra.mxu0 %v1531
        %1565 = vmatprep.subr.mxu0 0.0
        %1566 = vmatpush2.xpose.msra.mxu0 0.0
        %1567 = vmatprep.subr.mxu0 0.0
        %1568 = vmatpush2.xpose.msra.mxu0 0.0
        %1569 = vmatprep.subr.mxu0 0.0
        %1570 = vmatpush2.xpose.msra.mxu0 0.0
        %1571 = vmatprep.subr.mxu0 0.0
        %1572 = vmatpush2.xpose.msra.mxu0 0.0
        %1573 = vmatprep.subr.mxu0 0.0
        %1574 = vmatpush2.xpose.msra.mxu0 0.0
        %1575 = vmatprep.subr.mxu0 0.0
        %1576 = vmatpush2.xpose.msra.mxu0 0.0
        %1577 = vmatprep.subr.mxu0 0.0
        %1578 = vmatpush2.xpose.msra.mxu0 0.0
        %1579 = vmatprep.subr.mxu0 0.0
        %1580 = vmatpush2.xpose.msra.mxu0 0.0
        %1581 = vmatprep.subr.mxu0 0.0
        %1582 = vmatpush2.xpose.msra.mxu0 0.0
        %1583 = vmatprep.subr.mxu0 0.0
        %1584 = vmatpush2.xpose.msra.mxu0 0.0
        %1585 = vmatprep.subr.mxu0 0.0
        %1586 = vmatpush2.xpose.msra.mxu0 0.0
        %1587 = vmatprep.subr.mxu0 0.0
        %1588 = vmatpush2.xpose.msra.mxu0 0.0
        %1589 = vmatprep.subr.mxu0 0.0
        %1590 = vmatpush2.xpose.msra.mxu0 0.0
        %1591 = vmatprep.subr.mxu0 0.0
        %1592 = vmatpush2.xpose.msra.mxu0 0.0
        %1593 = vmatprep.subr.mxu0 0.0
        %1594 = vmatpush2.xpose.msra.mxu0 0.0
        %1595 = vmatprep.subr.mxu0 0.0
        %1596 = vmatpush2.xpose.msra.mxu0 0.0
        %1597 = vmatprep.mubr.f32.mxu0 0.0
        %1598 = vmatmul.mubr.f32.gmra.mxu0 %v1529
        %v1599 = vpop.f32.mrf.mxu0
        %v1600 = vadd.f32 0.0, %v1599
        %v1601 = vpop.f32.mrf.mxu0
        %1602 = vdwg.mxu0
        %v1603 = vmul.f32 %v1600, 0.35355338
        %v1604 = vsel %vm843, %v1603, -inf
        %1605 = vmax.xlane.f32.xlu0 %v1604
        %v1606 = vpop.xlane.xlu0 %1605
        %v1607 = vsub.f32 %v1603, %v1606
        %v1608 = vmul.f32 %v1607, 1.442695
        %v1609 = vpow.pop %v1608
        %v1610 = vsel %vm843, %v1609, 0.0
        %1611 = vadd.xlane.f32.xlu0 %v1610
        %v1612 = vpop.xlane.xlu0 %1611
        %v1613 = vrcp.pop %v1612
        %v1614 = vmul.f32 %v1609, %v1613
        %v1615 = vadd.f32 %v1614, 0.0
        %1616 = vrot.lane.b32.xlu0 %v837, 64
        %v1617 = vpop.permute.xlu0 %1616
        %v1620 = vsel %vm843, %v1614, 0
        %1622 = vmatprep.subr.mxu0 0.0
        %1623 = vmatpush1.msra.mxu0 0.0
        %1624 = vmatprep.subr.mxu0 0.0
        %1625 = vmatpush1.msra.mxu0 0.0
        %1626 = vmatprep.subr.mxu0 0.0
        %1627 = vmatpush1.msra.mxu0 0.0
        %1628 = vmatprep.subr.mxu0 0.0
        %1629 = vmatpush1.msra.mxu0 0.0
        %1630 = vmatprep.subr.mxu0 0.0
        %1631 = vmatpush1.msra.mxu0 0.0
        %1632 = vmatprep.subr.mxu0 0.0
        %1633 = vmatpush1.msra.mxu0 0.0
        %1634 = vmatprep.subr.mxu0 0.0
        %1635 = vmatpush1.msra.mxu0 0.0
        %1636 = vmatprep.subr.mxu0 0.0
        %1637 = vmatpush1.msra.mxu0 0.0
        %1638 = vmatprep.subr.mxu0 0.0
        %1639 = vmatpush1.msra.mxu0 0.0
        %1640 = vmatprep.subr.mxu0 0.0
        %1641 = vmatpush1.msra.mxu0 0.0
        %1642 = vmatprep.subr.mxu0 0.0
        %1643 = vmatpush1.msra.mxu0 0.0
        %1644 = vmatprep.subr.mxu0 0.0
        %1645 = vmatpush1.msra.mxu0 0.0
        %1646 = vmatprep.subr.mxu0 0.0
        %1647 = vmatpush1.msra.mxu0 0.0
        %1648 = vmatprep.subr.mxu0 0.0
        %1649 = vmatpush1.msra.mxu0 0.0
        %1650 = vmatprep.subr.mxu0 0.0
        %1651 = vmatpush1.msra.mxu0 0.0
        %1652 = vmatprep.subr.mxu0 0.0
        %1653 = vmatpush1.msra.mxu0 %v1617
        %1654 = vmatprep.subr.mxu0 0.0
        %1655 = vmatpush2.msra.mxu0 0.0
        %1656 = vmatprep.subr.mxu0 0.0
        %1657 = vmatpush2.msra.mxu0 0.0
        %1658 = vmatprep.subr.mxu0 0.0
        %1659 = vmatpush2.msra.mxu0 0.0
        %1660 = vmatprep.subr.mxu0 0.0
        %1661 = vmatpush2.msra.mxu0 0.0
        %1662 = vmatprep.subr.mxu0 0.0
        %1663 = vmatpush2.msra.mxu0 0.0
        %1664 = vmatprep.subr.mxu0 0.0
        %1665 = vmatpush2.msra.mxu0 0.0
        %1666 = vmatprep.subr.mxu0 0.0
        %1667 = vmatpush2.msra.mxu0 0.0
        %1668 = vmatprep.subr.mxu0 0.0
        %1669 = vmatpush2.msra.mxu0 0.0
        %1670 = vmatprep.subr.mxu0 0.0
        %1671 = vmatpush2.msra.mxu0 0.0
        %1672 = vmatprep.subr.mxu0 0.0
        %1673 = vmatpush2.msra.mxu0 0.0
        %1674 = vmatprep.subr.mxu0 0.0
        %1675 = vmatpush2.msra.mxu0 0.0
        %1676 = vmatprep.subr.mxu0 0.0
        %1677 = vmatpush2.msra.mxu0 0.0
        %1678 = vmatprep.subr.mxu0 0.0
        %1679 = vmatpush2.msra.mxu0 0.0
        %1680 = vmatprep.subr.mxu0 0.0
        %1681 = vmatpush2.msra.mxu0 0.0
        %1682 = vmatprep.subr.mxu0 0.0
        %1683 = vmatpush2.msra.mxu0 0.0
        %1684 = vmatprep.subr.mxu0 0.0
        %1685 = vmatpush2.msra.mxu0 0.0
        %1686 = vmatprep.mubr.f32.mxu0 0.0
        %1687 = vmatmul.mubr.f32.gmra.mxu0 %v1620
        %v1688 = vpop.f32.mrf.mxu0
        %v1689 = vadd.f32 0.0, %v1688
        %v1690 = vpop.f32.mrf.mxu0
        %1691 = vdwg.mxu0
        %1692 = vrot.lane.b32.xlu0 %v837, 120
        %v1693 = vpop.permute.xlu0 %1692
        %1694 = vrot.lane.b32.xlu0 %v837, 88
        %v1695 = vpop.permute.xlu0 %1694
        %v1696 = vsel %vm843, %v1693, 0
        %v1698 = vsel %vm843, %v1695, 0
        %1700 = vmatprep.subr.mxu0 0.0
        %1701 = vmatpush1.xpose.msra.mxu0 0.0
        %1702 = vmatprep.subr.mxu0 0.0
        %1703 = vmatpush1.xpose.msra.mxu0 0.0
        %1704 = vmatprep.subr.mxu0 0.0
        %1705 = vmatpush1.xpose.msra.mxu0 0.0
        %1706 = vmatprep.subr.mxu0 0.0
        %1707 = vmatpush1.xpose.msra.mxu0 0.0
        %1708 = vmatprep.subr.mxu0 0.0
        %1709 = vmatpush1.xpose.msra.mxu0 0.0
        %1710 = vmatprep.subr.mxu0 0.0
        %1711 = vmatpush1.xpose.msra.mxu0 0.0
        %1712 = vmatprep.subr.mxu0 0.0
        %1713 = vmatpush1.xpose.msra.mxu0 0.0
        %1714 = vmatprep.subr.mxu0 0.0
        %1715 = vmatpush1.xpose.msra.mxu0 0.0
        %1716 = vmatprep.subr.mxu0 0.0
        %1717 = vmatpush1.xpose.msra.mxu0 0.0
        %1718 = vmatprep.subr.mxu0 0.0
        %1719 = vmatpush1.xpose.msra.mxu0 0.0
        %1720 = vmatprep.subr.mxu0 0.0
        %1721 = vmatpush1.xpose.msra.mxu0 0.0
        %1722 = vmatprep.subr.mxu0 0.0
        %1723 = vmatpush1.xpose.msra.mxu0 0.0
        %1724 = vmatprep.subr.mxu0 0.0
        %1725 = vmatpush1.xpose.msra.mxu0 0.0
        %1726 = vmatprep.subr.mxu0 0.0
        %1727 = vmatpush1.xpose.msra.mxu0 0.0
        %1728 = vmatprep.subr.mxu0 0.0
        %1729 = vmatpush1.xpose.msra.mxu0 0.0
        %1730 = vmatprep.subr.mxu0 0.0
        %1731 = vmatpush1.xpose.msra.mxu0 %v1698
        %1732 = vmatprep.subr.mxu0 0.0
        %1733 = vmatpush2.xpose.msra.mxu0 0.0
        %1734 = vmatprep.subr.mxu0 0.0
        %1735 = vmatpush2.xpose.msra.mxu0 0.0
        %1736 = vmatprep.subr.mxu0 0.0
        %1737 = vmatpush2.xpose.msra.mxu0 0.0
        %1738 = vmatprep.subr.mxu0 0.0
        %1739 = vmatpush2.xpose.msra.mxu0 0.0
        %1740 = vmatprep.subr.mxu0 0.0
        %1741 = vmatpush2.xpose.msra.mxu0 0.0
        %1742 = vmatprep.subr.mxu0 0.0
        %1743 = vmatpush2.xpose.msra.mxu0 0.0
        %1744 = vmatprep.subr.mxu0 0.0
        %1745 = vmatpush2.xpose.msra.mxu0 0.0
        %1746 = vmatprep.subr.mxu0 0.0
        %1747 = vmatpush2.xpose.msra.mxu0 0.0
        %1748 = vmatprep.subr.mxu0 0.0
        %1749 = vmatpush2.xpose.msra.mxu0 0.0
        %1750 = vmatprep.subr.mxu0 0.0
        %1751 = vmatpush2.xpose.msra.mxu0 0.0
        %1752 = vmatprep.subr.mxu0 0.0
        %1753 = vmatpush2.xpose.msra.mxu0 0.0
        %1754 = vmatprep.subr.mxu0 0.0
        %1755 = vmatpush2.xpose.msra.mxu0 0.0
        %1756 = vmatprep.subr.mxu0 0.0
        %1757 = vmatpush2.xpose.msra.mxu0 0.0
        %1758 = vmatprep.subr.mxu0 0.0
        %1759 = vmatpush2.xpose.msra.mxu0 0.0
        %1760 = vmatprep.subr.mxu0 0.0
        %1761 = vmatpush2.xpose.msra.mxu0 0.0
        %1762 = vmatprep.subr.mxu0 0.0
        %1763 = vmatpush2.xpose.msra.mxu0 0.0
        %1764 = vmatprep.mubr.f32.mxu0 0.0
        %1765 = vmatmul.mubr.f32.gmra.mxu0 %v1696
        %v1766 = vpop.f32.mrf.mxu0
        %v1767 = vadd.f32 0.0, %v1766
        %v1768 = vpop.f32.mrf.mxu0
        %1769 = vdwg.mxu0
        %v1770 = vmul.f32 %v1767, 0.35355338
        %v1771 = vsel %vm843, %v1770, -inf
        %1772 = vmax.xlane.f32.xlu0 %v1771
        %v1773 = vpop.xlane.xlu0 %1772
        %v1774 = vsub.f32 %v1770, %v1773
        %v1775 = vmul.f32 %v1774, 1.442695
        %v1776 = vpow.pop %v1775
        %v1777 = vsel %vm843, %v1776, 0.0
        %1778 = vadd.xlane.f32.xlu0 %v1777
        %v1779 = vpop.xlane.xlu0 %1778
        %v1780 = vrcp.pop %v1779
        %v1781 = vmul.f32 %v1776, %v1780
        %v1782 = vadd.f32 %v1615, %v1781
        %1783 = vrot.lane.b32.xlu0 %v837, 56
        %v1784 = vpop.permute.xlu0 %1783
        %v1787 = vsel %vm843, %v1781, 0
        %1789 = vmatprep.subr.mxu0 0.0
        %1790 = vmatpush1.msra.mxu0 0.0
        %1791 = vmatprep.subr.mxu0 0.0
        %1792 = vmatpush1.msra.mxu0 0.0
        %1793 = vmatprep.subr.mxu0 0.0
        %1794 = vmatpush1.msra.mxu0 0.0
        %1795 = vmatprep.subr.mxu0 0.0
        %1796 = vmatpush1.msra.mxu0 0.0
        %1797 = vmatprep.subr.mxu0 0.0
        %1798 = vmatpush1.msra.mxu0 0.0
        %1799 = vmatprep.subr.mxu0 0.0
        %1800 = vmatpush1.msra.mxu0 0.0
        %1801 = vmatprep.subr.mxu0 0.0
        %1802 = vmatpush1.msra.mxu0 0.0
        %1803 = vmatprep.subr.mxu0 0.0
        %1804 = vmatpush1.msra.mxu0 0.0
        %1805 = vmatprep.subr.mxu0 0.0
        %1806 = vmatpush1.msra.mxu0 0.0
        %1807 = vmatprep.subr.mxu0 0.0
        %1808 = vmatpush1.msra.mxu0 0.0
        %1809 = vmatprep.subr.mxu0 0.0
        %1810 = vmatpush1.msra.mxu0 0.0
        %1811 = vmatprep.subr.mxu0 0.0
        %1812 = vmatpush1.msra.mxu0 0.0
        %1813 = vmatprep.subr.mxu0 0.0
        %1814 = vmatpush1.msra.mxu0 0.0
        %1815 = vmatprep.subr.mxu0 0.0
        %1816 = vmatpush1.msra.mxu0 0.0
        %1817 = vmatprep.subr.mxu0 0.0
        %1818 = vmatpush1.msra.mxu0 0.0
        %1819 = vmatprep.subr.mxu0 0.0
        %1820 = vmatpush1.msra.mxu0 %v1784
        %1821 = vmatprep.subr.mxu0 0.0
        %1822 = vmatpush2.msra.mxu0 0.0
        %1823 = vmatprep.subr.mxu0 0.0
        %1824 = vmatpush2.msra.mxu0 0.0
        %1825 = vmatprep.subr.mxu0 0.0
        %1826 = vmatpush2.msra.mxu0 0.0
        %1827 = vmatprep.subr.mxu0 0.0
        %1828 = vmatpush2.msra.mxu0 0.0
        %1829 = vmatprep.subr.mxu0 0.0
        %1830 = vmatpush2.msra.mxu0 0.0
        %1831 = vmatprep.subr.mxu0 0.0
        %1832 = vmatpush2.msra.mxu0 0.0
        %1833 = vmatprep.subr.mxu0 0.0
        %1834 = vmatpush2.msra.mxu0 0.0
        %1835 = vmatprep.subr.mxu0 0.0
        %1836 = vmatpush2.msra.mxu0 0.0
        %1837 = vmatprep.subr.mxu0 0.0
        %1838 = vmatpush2.msra.mxu0 0.0
        %1839 = vmatprep.subr.mxu0 0.0
        %1840 = vmatpush2.msra.mxu0 0.0
        %1841 = vmatprep.subr.mxu0 0.0
        %1842 = vmatpush2.msra.mxu0 0.0
        %1843 = vmatprep.subr.mxu0 0.0
        %1844 = vmatpush2.msra.mxu0 0.0
        %1845 = vmatprep.subr.mxu0 0.0
        %1846 = vmatpush2.msra.mxu0 0.0
        %1847 = vmatprep.subr.mxu0 0.0
        %1848 = vmatpush2.msra.mxu0 0.0
        %1849 = vmatprep.subr.mxu0 0.0
        %1850 = vmatpush2.msra.mxu0 0.0
        %1851 = vmatprep.subr.mxu0 0.0
        %1852 = vmatpush2.msra.mxu0 0.0
        %1853 = vmatprep.mubr.f32.mxu0 0.0
        %1854 = vmatmul.mubr.f32.gmra.mxu0 %v1787
        %v1855 = vpop.f32.mrf.mxu0
        %v1856 = vadd.f32 0.0, %v1855
        %v1857 = vpop.f32.mrf.mxu0
        %1858 = vdwg.mxu0
        %1859 = vrot.lane.b32.xlu0 %v837, 112
        %v1860 = vpop.permute.xlu0 %1859
        %1861 = vrot.lane.b32.xlu0 %v837, 80
        %v1862 = vpop.permute.xlu0 %1861
        %v1863 = vsel %vm843, %v1860, 0
        %v1865 = vsel %vm843, %v1862, 0
        %1867 = vmatprep.subr.mxu0 0.0
        %1868 = vmatpush1.xpose.msra.mxu0 0.0
        %1869 = vmatprep.subr.mxu0 0.0
        %1870 = vmatpush1.xpose.msra.mxu0 0.0
        %1871 = vmatprep.subr.mxu0 0.0
        %1872 = vmatpush1.xpose.msra.mxu0 0.0
        %1873 = vmatprep.subr.mxu0 0.0
        %1874 = vmatpush1.xpose.msra.mxu0 0.0
        %1875 = vmatprep.subr.mxu0 0.0
        %1876 = vmatpush1.xpose.msra.mxu0 0.0
        %1877 = vmatprep.subr.mxu0 0.0
        %1878 = vmatpush1.xpose.msra.mxu0 0.0
        %1879 = vmatprep.subr.mxu0 0.0
        %1880 = vmatpush1.xpose.msra.mxu0 0.0
        %1881 = vmatprep.subr.mxu0 0.0
        %1882 = vmatpush1.xpose.msra.mxu0 0.0
        %1883 = vmatprep.subr.mxu0 0.0
        %1884 = vmatpush1.xpose.msra.mxu0 0.0
        %1885 = vmatprep.subr.mxu0 0.0
        %1886 = vmatpush1.xpose.msra.mxu0 0.0
        %1887 = vmatprep.subr.mxu0 0.0
        %1888 = vmatpush1.xpose.msra.mxu0 0.0
        %1889 = vmatprep.subr.mxu0 0.0
        %1890 = vmatpush1.xpose.msra.mxu0 0.0
        %1891 = vmatprep.subr.mxu0 0.0
        %1892 = vmatpush1.xpose.msra.mxu0 0.0
        %1893 = vmatprep.subr.mxu0 0.0
        %1894 = vmatpush1.xpose.msra.mxu0 0.0
        %1895 = vmatprep.subr.mxu0 0.0
        %1896 = vmatpush1.xpose.msra.mxu0 0.0
        %1897 = vmatprep.subr.mxu0 0.0
        %1898 = vmatpush1.xpose.msra.mxu0 %v1865
        %1899 = vmatprep.subr.mxu0 0.0
        %1900 = vmatpush2.xpose.msra.mxu0 0.0
        %1901 = vmatprep.subr.mxu0 0.0
        %1902 = vmatpush2.xpose.msra.mxu0 0.0
        %1903 = vmatprep.subr.mxu0 0.0
        %1904 = vmatpush2.xpose.msra.mxu0 0.0
        %1905 = vmatprep.subr.mxu0 0.0
        %1906 = vmatpush2.xpose.msra.mxu0 0.0
        %1907 = vmatprep.subr.mxu0 0.0
        %1908 = vmatpush2.xpose.msra.mxu0 0.0
        %1909 = vmatprep.subr.mxu0 0.0
        %1910 = vmatpush2.xpose.msra.mxu0 0.0
        %1911 = vmatprep.subr.mxu0 0.0
        %1912 = vmatpush2.xpose.msra.mxu0 0.0
        %1913 = vmatprep.subr.mxu0 0.0
        %1914 = vmatpush2.xpose.msra.mxu0 0.0
        %1915 = vmatprep.subr.mxu0 0.0
        %1916 = vmatpush2.xpose.msra.mxu0 0.0
        %1917 = vmatprep.subr.mxu0 0.0
        %1918 = vmatpush2.xpose.msra.mxu0 0.0
        %1919 = vmatprep.subr.mxu0 0.0
        %1920 = vmatpush2.xpose.msra.mxu0 0.0
        %1921 = vmatprep.subr.mxu0 0.0
        %1922 = vmatpush2.xpose.msra.mxu0 0.0
        %1923 = vmatprep.subr.mxu0 0.0
        %1924 = vmatpush2.xpose.msra.mxu0 0.0
        %1925 = vmatprep.subr.mxu0 0.0
        %1926 = vmatpush2.xpose.msra.mxu0 0.0
        %1927 = vmatprep.subr.mxu0 0.0
        %1928 = vmatpush2.xpose.msra.mxu0 0.0
        %1929 = vmatprep.subr.mxu0 0.0
        %1930 = vmatpush2.xpose.msra.mxu0 0.0
        %1931 = vmatprep.mubr.f32.mxu0 0.0
        %1932 = vmatmul.mubr.f32.gmra.mxu0 %v1863
        %v1933 = vpop.f32.mrf.mxu0
        %v1934 = vadd.f32 0.0, %v1933
        %v1935 = vpop.f32.mrf.mxu0
        %1936 = vdwg.mxu0
        %v1937 = vmul.f32 %v1934, 0.35355338
        %v1938 = vsel %vm843, %v1937, -inf
        %1939 = vmax.xlane.f32.xlu0 %v1938
        %v1940 = vpop.xlane.xlu0 %1939
        %v1941 = vsub.f32 %v1937, %v1940
        %v1942 = vmul.f32 %v1941, 1.442695
        %v1943 = vpow.pop %v1942
        %v1944 = vsel %vm843, %v1943, 0.0
        %1945 = vadd.xlane.f32.xlu0 %v1944
        %v1946 = vpop.xlane.xlu0 %1945
        %v1947 = vrcp.pop %v1946
        %v1948 = vmul.f32 %v1943, %v1947
        %v1949 = vadd.f32 %v1782, %v1948
        %1950 = vrot.lane.b32.xlu0 %v837, 48
        %v1951 = vpop.permute.xlu0 %1950
        %v1954 = vsel %vm843, %v1948, 0
        %1956 = vmatprep.subr.mxu0 0.0
        %1957 = vmatpush1.msra.mxu0 0.0
        %1958 = vmatprep.subr.mxu0 0.0
        %1959 = vmatpush1.msra.mxu0 0.0
        %1960 = vmatprep.subr.mxu0 0.0
        %1961 = vmatpush1.msra.mxu0 0.0
        %1962 = vmatprep.subr.mxu0 0.0
        %1963 = vmatpush1.msra.mxu0 0.0
        %1964 = vmatprep.subr.mxu0 0.0
        %1965 = vmatpush1.msra.mxu0 0.0
        %1966 = vmatprep.subr.mxu0 0.0
        %1967 = vmatpush1.msra.mxu0 0.0
        %1968 = vmatprep.subr.mxu0 0.0
        %1969 = vmatpush1.msra.mxu0 0.0
        %1970 = vmatprep.subr.mxu0 0.0
        %1971 = vmatpush1.msra.mxu0 0.0
        %1972 = vmatprep.subr.mxu0 0.0
        %1973 = vmatpush1.msra.mxu0 0.0
        %1974 = vmatprep.subr.mxu0 0.0
        %1975 = vmatpush1.msra.mxu0 0.0
        %1976 = vmatprep.subr.mxu0 0.0
        %1977 = vmatpush1.msra.mxu0 0.0
        %1978 = vmatprep.subr.mxu0 0.0
        %1979 = vmatpush1.msra.mxu0 0.0
        %1980 = vmatprep.subr.mxu0 0.0
        %1981 = vmatpush1.msra.mxu0 0.0
        %1982 = vmatprep.subr.mxu0 0.0
        %1983 = vmatpush1.msra.mxu0 0.0
        %1984 = vmatprep.subr.mxu0 0.0
        %1985 = vmatpush1.msra.mxu0 0.0
        %1986 = vmatprep.subr.mxu0 0.0
        %1987 = vmatpush1.msra.mxu0 %v1951
        %1988 = vmatprep.subr.mxu0 0.0
        %1989 = vmatpush2.msra.mxu0 0.0
        %1990 = vmatprep.subr.mxu0 0.0
        %1991 = vmatpush2.msra.mxu0 0.0
        %1992 = vmatprep.subr.mxu0 0.0
        %1993 = vmatpush2.msra.mxu0 0.0
        %1994 = vmatprep.subr.mxu0 0.0
        %1995 = vmatpush2.msra.mxu0 0.0
        %1996 = vmatprep.subr.mxu0 0.0
        %1997 = vmatpush2.msra.mxu0 0.0
        %1998 = vmatprep.subr.mxu0 0.0
        %1999 = vmatpush2.msra.mxu0 0.0
        %2000 = vmatprep.subr.mxu0 0.0
        %2001 = vmatpush2.msra.mxu0 0.0
        %2002 = vmatprep.subr.mxu0 0.0
        %2003 = vmatpush2.msra.mxu0 0.0
        %2004 = vmatprep.subr.mxu0 0.0
        %2005 = vmatpush2.msra.mxu0 0.0
        %2006 = vmatprep.subr.mxu0 0.0
        %2007 = vmatpush2.msra.mxu0 0.0
        %2008 = vmatprep.subr.mxu0 0.0
        %2009 = vmatpush2.msra.mxu0 0.0
        %2010 = vmatprep.subr.mxu0 0.0
        %2011 = vmatpush2.msra.mxu0 0.0
        %2012 = vmatprep.subr.mxu0 0.0
        %2013 = vmatpush2.msra.mxu0 0.0
        %2014 = vmatprep.subr.mxu0 0.0
        %2015 = vmatpush2.msra.mxu0 0.0
        %2016 = vmatprep.subr.mxu0 0.0
        %2017 = vmatpush2.msra.mxu0 0.0
        %2018 = vmatprep.subr.mxu0 0.0
        %2019 = vmatpush2.msra.mxu0 0.0
        %2020 = vmatprep.mubr.f32.mxu0 0.0
        %2021 = vmatmul.mubr.f32.gmra.mxu0 %v1954
        %v2022 = vpop.f32.mrf.mxu0
        %v2023 = vadd.f32 0.0, %v2022
        %v2024 = vpop.f32.mrf.mxu0
        %2025 = vdwg.mxu0
        %2026 = vrot.lane.b32.xlu0 %v837, 104
        %v2027 = vpop.permute.xlu0 %2026
        %2028 = vrot.lane.b32.xlu0 %v837, 72
        %v2029 = vpop.permute.xlu0 %2028
        %v2030 = vsel %vm843, %v2027, 0
        %v2032 = vsel %vm843, %v2029, 0
        %2034 = vmatprep.subr.mxu0 0.0
        %2035 = vmatpush1.xpose.msra.mxu0 0.0
        %2036 = vmatprep.subr.mxu0 0.0
        %2037 = vmatpush1.xpose.msra.mxu0 0.0
        %2038 = vmatprep.subr.mxu0 0.0
        %2039 = vmatpush1.xpose.msra.mxu0 0.0
        %2040 = vmatprep.subr.mxu0 0.0
        %2041 = vmatpush1.xpose.msra.mxu0 0.0
        %2042 = vmatprep.subr.mxu0 0.0
        %2043 = vmatpush1.xpose.msra.mxu0 0.0
        %2044 = vmatprep.subr.mxu0 0.0
        %2045 = vmatpush1.xpose.msra.mxu0 0.0
        %2046 = vmatprep.subr.mxu0 0.0
        %2047 = vmatpush1.xpose.msra.mxu0 0.0
        %2048 = vmatprep.subr.mxu0 0.0
        %2049 = vmatpush1.xpose.msra.mxu0 0.0
        %2050 = vmatprep.subr.mxu0 0.0
        %2051 = vmatpush1.xpose.msra.mxu0 0.0
        %2052 = vmatprep.subr.mxu0 0.0
        %2053 = vmatpush1.xpose.msra.mxu0 0.0
        %2054 = vmatprep.subr.mxu0 0.0
        %2055 = vmatpush1.xpose.msra.mxu0 0.0
        %2056 = vmatprep.subr.mxu0 0.0
        %2057 = vmatpush1.xpose.msra.mxu0 0.0
        %2058 = vmatprep.subr.mxu0 0.0
        %2059 = vmatpush1.xpose.msra.mxu0 0.0
        %2060 = vmatprep.subr.mxu0 0.0
        %2061 = vmatpush1.xpose.msra.mxu0 0.0
        %2062 = vmatprep.subr.mxu0 0.0
        %2063 = vmatpush1.xpose.msra.mxu0 0.0
        %2064 = vmatprep.subr.mxu0 0.0
        %2065 = vmatpush1.xpose.msra.mxu0 %v2032
        %2066 = vmatprep.subr.mxu0 0.0
        %2067 = vmatpush2.xpose.msra.mxu0 0.0
        %2068 = vmatprep.subr.mxu0 0.0
        %2069 = vmatpush2.xpose.msra.mxu0 0.0
        %2070 = vmatprep.subr.mxu0 0.0
        %2071 = vmatpush2.xpose.msra.mxu0 0.0
        %2072 = vmatprep.subr.mxu0 0.0
        %2073 = vmatpush2.xpose.msra.mxu0 0.0
        %2074 = vmatprep.subr.mxu0 0.0
        %2075 = vmatpush2.xpose.msra.mxu0 0.0
        %2076 = vmatprep.subr.mxu0 0.0
        %2077 = vmatpush2.xpose.msra.mxu0 0.0
        %2078 = vmatprep.subr.mxu0 0.0
        %2079 = vmatpush2.xpose.msra.mxu0 0.0
        %2080 = vmatprep.subr.mxu0 0.0
        %2081 = vmatpush2.xpose.msra.mxu0 0.0
        %2082 = vmatprep.subr.mxu0 0.0
        %2083 = vmatpush2.xpose.msra.mxu0 0.0
        %2084 = vmatprep.subr.mxu0 0.0
        %2085 = vmatpush2.xpose.msra.mxu0 0.0
        %2086 = vmatprep.subr.mxu0 0.0
        %2087 = vmatpush2.xpose.msra.mxu0 0.0
        %2088 = vmatprep.subr.mxu0 0.0
        %2089 = vmatpush2.xpose.msra.mxu0 0.0
        %2090 = vmatprep.subr.mxu0 0.0
        %2091 = vmatpush2.xpose.msra.mxu0 0.0
        %2092 = vmatprep.subr.mxu0 0.0
        %2093 = vmatpush2.xpose.msra.mxu0 0.0
        %2094 = vmatprep.subr.mxu0 0.0
        %2095 = vmatpush2.xpose.msra.mxu0 0.0
        %2096 = vmatprep.subr.mxu0 0.0
        %2097 = vmatpush2.xpose.msra.mxu0 0.0
        %2098 = vmatprep.mubr.f32.mxu0 0.0
        %2099 = vmatmul.mubr.f32.gmra.mxu0 %v2030
        %v2100 = vpop.f32.mrf.mxu0
        %v2101 = vadd.f32 0.0, %v2100
        %v2102 = vpop.f32.mrf.mxu0
        %2103 = vdwg.mxu0
        %v2104 = vmul.f32 %v2101, 0.35355338
        %v2105 = vsel %vm843, %v2104, -inf
        %2106 = vmax.xlane.f32.xlu0 %v2105
        %v2107 = vpop.xlane.xlu0 %2106
        %v2108 = vsub.f32 %v2104, %v2107
        %v2109 = vmul.f32 %v2108, 1.442695
        %v2110 = vpow.pop %v2109
        %v2111 = vsel %vm843, %v2110, 0.0
        %2112 = vadd.xlane.f32.xlu0 %v2111
        %v2113 = vpop.xlane.xlu0 %2112
        %v2114 = vrcp.pop %v2113
        %v2115 = vmul.f32 %v2110, %v2114
        %v2116 = vadd.f32 %v1949, %v2115
        %2117 = vrot.lane.b32.xlu0 %v837, 40
        %v2118 = vpop.permute.xlu0 %2117
        %v2121 = vsel %vm843, %v2115, 0
        %2123 = vmatprep.subr.mxu0 0.0
        %2124 = vmatpush1.msra.mxu0 0.0
        %2125 = vmatprep.subr.mxu0 0.0
        %2126 = vmatpush1.msra.mxu0 0.0
        %2127 = vmatprep.subr.mxu0 0.0
        %2128 = vmatpush1.msra.mxu0 0.0
        %2129 = vmatprep.subr.mxu0 0.0
        %2130 = vmatpush1.msra.mxu0 0.0
        %2131 = vmatprep.subr.mxu0 0.0
        %2132 = vmatpush1.msra.mxu0 0.0
        %2133 = vmatprep.subr.mxu0 0.0
        %2134 = vmatpush1.msra.mxu0 0.0
        %2135 = vmatprep.subr.mxu0 0.0
        %2136 = vmatpush1.msra.mxu0 0.0
        %2137 = vmatprep.subr.mxu0 0.0
        %2138 = vmatpush1.msra.mxu0 0.0
        %2139 = vmatprep.subr.mxu0 0.0
        %2140 = vmatpush1.msra.mxu0 0.0
        %2141 = vmatprep.subr.mxu0 0.0
        %2142 = vmatpush1.msra.mxu0 0.0
        %2143 = vmatprep.subr.mxu0 0.0
        %2144 = vmatpush1.msra.mxu0 0.0
        %2145 = vmatprep.subr.mxu0 0.0
        %2146 = vmatpush1.msra.mxu0 0.0
        %2147 = vmatprep.subr.mxu0 0.0
        %2148 = vmatpush1.msra.mxu0 0.0
        %2149 = vmatprep.subr.mxu0 0.0
        %2150 = vmatpush1.msra.mxu0 0.0
        %2151 = vmatprep.subr.mxu0 0.0
        %2152 = vmatpush1.msra.mxu0 0.0
        %2153 = vmatprep.subr.mxu0 0.0
        %2154 = vmatpush1.msra.mxu0 %v2118
        %2155 = vmatprep.subr.mxu0 0.0
        %2156 = vmatpush2.msra.mxu0 0.0
        %2157 = vmatprep.subr.mxu0 0.0
        %2158 = vmatpush2.msra.mxu0 0.0
        %2159 = vmatprep.subr.mxu0 0.0
        %2160 = vmatpush2.msra.mxu0 0.0
        %2161 = vmatprep.subr.mxu0 0.0
        %2162 = vmatpush2.msra.mxu0 0.0
        %2163 = vmatprep.subr.mxu0 0.0
        %2164 = vmatpush2.msra.mxu0 0.0
        %2165 = vmatprep.subr.mxu0 0.0
        %2166 = vmatpush2.msra.mxu0 0.0
        %2167 = vmatprep.subr.mxu0 0.0
        %2168 = vmatpush2.msra.mxu0 0.0
        %2169 = vmatprep.subr.mxu0 0.0
        %2170 = vmatpush2.msra.mxu0 0.0
        %2171 = vmatprep.subr.mxu0 0.0
        %2172 = vmatpush2.msra.mxu0 0.0
        %2173 = vmatprep.subr.mxu0 0.0
        %2174 = vmatpush2.msra.mxu0 0.0
        %2175 = vmatprep.subr.mxu0 0.0
        %2176 = vmatpush2.msra.mxu0 0.0
        %2177 = vmatprep.subr.mxu0 0.0
        %2178 = vmatpush2.msra.mxu0 0.0
        %2179 = vmatprep.subr.mxu0 0.0
        %2180 = vmatpush2.msra.mxu0 0.0
        %2181 = vmatprep.subr.mxu0 0.0
        %2182 = vmatpush2.msra.mxu0 0.0
        %2183 = vmatprep.subr.mxu0 0.0
        %2184 = vmatpush2.msra.mxu0 0.0
        %2185 = vmatprep.subr.mxu0 0.0
        %2186 = vmatpush2.msra.mxu0 0.0
        %2187 = vmatprep.mubr.f32.mxu0 0.0
        %2188 = vmatmul.mubr.f32.gmra.mxu0 %v2121
        %v2189 = vpop.f32.mrf.mxu0
        %v2190 = vadd.f32 0.0, %v2189
        %v2191 = vpop.f32.mrf.mxu0
        %2192 = vdwg.mxu0
        %2194 = vrot.lane.b32.xlu0 %v1856, 8
        %v2195 = vpop.permute.xlu0 %2194
        %2198 = vrot.lane.b32.xlu0 %v2023, 16
        %v2199 = vpop.permute.xlu0 %2198
        %2202 = vrot.lane.b32.xlu0 %v2190, 24
        %v2203 = vpop.permute.xlu0 %2202
        %v2205 = vsel %vm843, %v1689, %v2195
        %v2206 = vsel %vm1521, %v2205, %v2199
        %v2207 = vsel %vm1523, %v2206, %v2203
        %v2208 = vmul.f32 %v2116, 0.25
        %v2209 = vld [vmem:[%s612] sm:$0xff]
        %v2210 = vld [vmem:[%s612 + $0x8] sm:$0xff]
        %v2211 = vld [vmem:[%s612 + $0x10] sm:$0xff]
        %v2212 = vld [vmem:[%s612 + $0x18] sm:$0xff]
        %v2213 = vld [vmem:[%s615] sm:$0x1]
        %v2215 = vlaneseq
        %v2216 = vshrl.u32 %v2215, 7
        %v2217 = vsub.s32 0, %v2216
        %v2218 = vrot.slane %v2213, %v2217
        %v2221 = vsel %vm758, %v1524, 0
        %v2224 = vsel %vm758, %v2207, 0
        %2226 = vmatprep.subr.mxu0 0.0
        %2227 = vmatpush1.msra.mxu0 0.0
        %2228 = vmatprep.subr.mxu0 0.0
        %2229 = vmatpush1.msra.mxu0 0.0
        %2230 = vmatprep.subr.mxu0 0.0
        %2231 = vmatpush1.msra.mxu0 0.0
        %2232 = vmatprep.subr.mxu0 0.0
        %2233 = vmatpush1.msra.mxu0 0.0
        %2234 = vmatprep.subr.mxu0 0.0
        %2235 = vmatpush1.msra.mxu0 0.0
        %2236 = vmatprep.subr.mxu0 0.0
        %2237 = vmatpush1.msra.mxu0 0.0
        %2238 = vmatprep.subr.mxu0 0.0
        %2239 = vmatpush1.msra.mxu0 0.0
        %2240 = vmatprep.subr.mxu0 0.0
        %2241 = vmatpush1.msra.mxu0 0.0
        %2242 = vmatprep.subr.mxu0 0.0
        %2243 = vmatpush1.msra.mxu0 0.0
        %2244 = vmatprep.subr.mxu0 0.0
        %2245 = vmatpush1.msra.mxu0 0.0
        %2246 = vmatprep.subr.mxu0 0.0
        %2247 = vmatpush1.msra.mxu0 0.0
        %2248 = vmatprep.subr.mxu0 0.0
        %2249 = vmatpush1.msra.mxu0 0.0
        %2250 = vmatprep.subr.mxu0 0.0
        %2251 = vmatpush1.msra.mxu0 %v2212
        %2252 = vmatprep.subr.mxu0 0.0
        %2253 = vmatpush1.msra.mxu0 %v2211
        %2254 = vmatprep.subr.mxu0 0.0
        %2255 = vmatpush1.msra.mxu0 %v2210
        %2256 = vmatprep.subr.mxu0 0.0
        %2257 = vmatpush1.msra.mxu0 %v2209
        %2258 = vmatprep.subr.mxu0 0.0
        %2259 = vmatpush2.msra.mxu0 0.0
        %2260 = vmatprep.subr.mxu0 0.0
        %2261 = vmatpush2.msra.mxu0 0.0
        %2262 = vmatprep.subr.mxu0 0.0
        %2263 = vmatpush2.msra.mxu0 0.0
        %2264 = vmatprep.subr.mxu0 0.0
        %2265 = vmatpush2.msra.mxu0 0.0
        %2266 = vmatprep.subr.mxu0 0.0
        %2267 = vmatpush2.msra.mxu0 0.0
        %2268 = vmatprep.subr.mxu0 0.0
        %2269 = vmatpush2.msra.mxu0 0.0
        %2270 = vmatprep.subr.mxu0 0.0
        %2271 = vmatpush2.msra.mxu0 0.0
        %2272 = vmatprep.subr.mxu0 0.0
        %2273 = vmatpush2.msra.mxu0 0.0
        %2274 = vmatprep.subr.mxu0 0.0
        %2275 = vmatpush2.msra.mxu0 0.0
        %2276 = vmatprep.subr.mxu0 0.0
        %2277 = vmatpush2.msra.mxu0 0.0
        %2278 = vmatprep.subr.mxu0 0.0
        %2279 = vmatpush2.msra.mxu0 0.0
        %2280 = vmatprep.subr.mxu0 0.0
        %2281 = vmatpush2.msra.mxu0 0.0
        %2282 = vmatprep.subr.mxu0 0.0
        %2283 = vmatpush2.msra.mxu0 0.0
        %2284 = vmatprep.subr.mxu0 0.0
        %2285 = vmatpush2.msra.mxu0 0.0
        %2286 = vmatprep.subr.mxu0 0.0
        %2287 = vmatpush2.msra.mxu0 0.0
        %2288 = vmatprep.subr.mxu0 0.0
        %2289 = vmatpush2.msra.mxu0 0.0
        %2290 = vmatprep.mubr.f32.mxu0 0.0
        %2291 = vmatmul.mubr.f32.gmra.mxu0 %v2221
        %v2292 = vpop.f32.mrf.mxu0
        %v2293 = vadd.f32 %v2218, %v2292
        %v2294 = vpop.f32.mrf.mxu0
        %2295 = vmatprep.mubr.f32.mxu0 0.0
        %2296 = vmatmul.mubr.f32.gmra.mxu0 %v2224
        %v2297 = vpop.f32.mrf.mxu0
        %v2298 = vadd.f32 %v2218, %v2297
        %v2299 = vpop.f32.mrf.mxu0
        %2300 = vdwg.mxu0
        %v2301 = vld [vmem:[%s619] sm:$0xf]
        %v2302 = vadd.f32 %v745, %v2293
        %v2303 = vadd.f32 %v746, %v2298
        %v2304 = vsel %vm758, %v2302, 0.0
        %2305 = vadd.xlane.f32.xlu0 %v2304
        %v2306 = vpop.xlane.xlu0 %2305
        %v2307 = vsel %vm758, %v2303, 0.0
        %2308 = vadd.xlane.f32.xlu0 %v2307
        %v2309 = vpop.xlane.xlu0 %2308
        %v2310 = vrcp.pop 32.0
        %v2311 = vmul.f32 %v2306, %v2310
        %v2312 = vmul.f32 %v2309, %v2310
        %v2313 = vsub.f32 %v2302, %v2311
        %v2314 = vsub.f32 %v2303, %v2312
        %v2315 = vmul.f32 %v2313, %v2313
        %v2316 = vmul.f32 %v2314, %v2314
        %v2317 = vsel %vm758, %v2315, 0.0
        %2318 = vadd.xlane.f32.xlu0 %v2317
        %v2319 = vpop.xlane.xlu0 %2318
        %v2320 = vsel %vm758, %v2316, 0.0
        %2321 = vadd.xlane.f32.xlu0 %v2320
        %v2322 = vpop.xlane.xlu0 %2321
        %v2323 = vmul.f32 %v2319, %v2310
        %v2324 = vmul.f32 %v2322, %v2310
        %v2325 = vadd.f32 %v2323, 1e-05
        %v2326 = vadd.f32 %v2324, 1e-05
        %v2327 = vrsqrt.pop %v2325
        %v2328 = vrsqrt.pop %v2326
        %v2329 = vmul.f32 %v2313, %v2327
        %v2330 = vmul.f32 %v2314, %v2328
        %v2331 = vlaneseq
        %v2332 = vshrl.u32 %v2331, 7
        %v2333 = vsub.s32 0, %v2332
        %v2334 = vrot.slane %v2301, %v2333
        %v2335 = vmul.f32 %v2329, %v2334
        %v2336 = vmul.f32 %v2330, %v2334
        %v2337 = vlaneseq
        %v2338 = vshrl.u32 %v2337, 7
        %v2339 = vsub.s32 1, %v2338
        %v2340 = vrot.slane %v2301, %v2339
        %v2341 = vadd.f32 %v2335, %v2340
        %v2342 = vadd.f32 %v2336, %v2340
        %v2343 = vld [vmem:[%s624] sm:$0xff]
        %v2344 = vld [vmem:[%s624 + $0x8] sm:$0xff]
        %v2345 = vld [vmem:[%s624 + $0x10] sm:$0xff]
        %v2346 = vld [vmem:[%s624 + $0x18] sm:$0xff]
        %v2347 = vld [vmem:[%s627] sm:$0x1]
        %v2349 = vlaneseq
        %v2350 = vshrl.u32 %v2349, 7
        %v2351 = vsub.s32 0, %v2350
        %v2352 = vrot.slane %v2347, %v2351
        %v2355 = vsel %vm758, %v2341, 0
        %v2358 = vsel %vm758, %v2342, 0
        %2360 = vmatprep.subr.mxu0 0.0
        %2361 = vmatpush1.msra.mxu0 0.0
        %2362 = vmatprep.subr.mxu0 0.0
        %2363 = vmatpush1.msra.mxu0 0.0
        %2364 = vmatprep.subr.mxu0 0.0
        %2365 = vmatpush1.msra.mxu0 0.0
        %2366 = vmatprep.subr.mxu0 0.0
        %2367 = vmatpush1.msra.mxu0 0.0
        %2368 = vmatprep.subr.mxu0 0.0
        %2369 = vmatpush1.msra.mxu0 0.0
        %2370 = vmatprep.subr.mxu0 0.0
        %2371 = vmatpush1.msra.mxu0 0.0
        %2372 = vmatprep.subr.mxu0 0.0
        %2373 = vmatpush1.msra.mxu0 0.0
        %2374 = vmatprep.subr.mxu0 0.0
        %2375 = vmatpush1.msra.mxu0 0.0
        %2376 = vmatprep.subr.mxu0 0.0
        %2377 = vmatpush1.msra.mxu0 0.0
        %2378 = vmatprep.subr.mxu0 0.0
        %2379 = vmatpush1.msra.mxu0 0.0
        %2380 = vmatprep.subr.mxu0 0.0
        %2381 = vmatpush1.msra.mxu0 0.0
        %2382 = vmatprep.subr.mxu0 0.0
        %2383 = vmatpush1.msra.mxu0 0.0
        %2384 = vmatprep.subr.mxu0 0.0
        %2385 = vmatpush1.msra.mxu0 %v2346
        %2386 = vmatprep.subr.mxu0 0.0
        %2387 = vmatpush1.msra.mxu0 %v2345
        %2388 = vmatprep.subr.mxu0 0.0
        %2389 = vmatpush1.msra.mxu0 %v2344
        %2390 = vmatprep.subr.mxu0 0.0
        %2391 = vmatpush1.msra.mxu0 %v2343
        %2392 = vmatprep.subr.mxu0 0.0
        %2393 = vmatpush2.msra.mxu0 0.0
        %2394 = vmatprep.subr.mxu0 0.0
        %2395 = vmatpush2.msra.mxu0 0.0
        %2396 = vmatprep.subr.mxu0 0.0
        %2397 = vmatpush2.msra.mxu0 0.0
        %2398 = vmatprep.subr.mxu0 0.0
        %2399 = vmatpush2.msra.mxu0 0.0
        %2400 = vmatprep.subr.mxu0 0.0
        %2401 = vmatpush2.msra.mxu0 0.0
        %2402 = vmatprep.subr.mxu0 0.0
        %2403 = vmatpush2.msra.mxu0 0.0
        %2404 = vmatprep.subr.mxu0 0.0
        %2405 = vmatpush2.msra.mxu0 0.0
        %2406 = vmatprep.subr.mxu0 0.0
        %2407 = vmatpush2.msra.mxu0 0.0
        %2408 = vmatprep.subr.mxu0 0.0
        %2409 = vmatpush2.msra.mxu0 0.0
        %2410 = vmatprep.subr.mxu0 0.0
        %2411 = vmatpush2.msra.mxu0 0.0
        %2412 = vmatprep.subr.mxu0 0.0
        %2413 = vmatpush2.msra.mxu0 0.0
        %2414 = vmatprep.subr.mxu0 0.0
        %2415 = vmatpush2.msra.mxu0 0.0
        %2416 = vmatprep.subr.mxu0 0.0
        %2417 = vmatpush2.msra.mxu0 0.0
        %2418 = vmatprep.subr.mxu0 0.0
        %2419 = vmatpush2.msra.mxu0 0.0
        %2420 = vmatprep.subr.mxu0 0.0
        %2421 = vmatpush2.msra.mxu0 0.0
        %2422 = vmatprep.subr.mxu0 0.0
        %2423 = vmatpush2.msra.mxu0 0.0
        %2424 = vmatprep.mubr.f32.mxu0 0.0
        %2425 = vmatmul.mubr.f32.gmra.mxu0 %v2355
        %v2426 = vpop.f32.mrf.mxu0
        %v2427 = vadd.f32 %v2352, %v2426
        %v2428 = vpop.f32.mrf.mxu0
        %2429 = vmatprep.mubr.f32.mxu0 0.0
        %2430 = vmatmul.mubr.f32.gmra.mxu0 %v2358
        %v2431 = vpop.f32.mrf.mxu0
        %v2432 = vadd.f32 %v2352, %v2431
        %v2433 = vpop.f32.mrf.mxu0
        %2434 = vdwg.mxu0
        %v2435 = vmax.f32 %v2427, 0.0
        %v2436 = vmax.f32 %v2432, 0.0
        %v2437 = vld [vmem:[%s632] sm:$0xff]
        %v2438 = vld [vmem:[%s632 + $0x8] sm:$0xff]
        %v2439 = vld [vmem:[%s632 + $0x10] sm:$0xff]
        %v2440 = vld [vmem:[%s632 + $0x18] sm:$0xff]
        %v2441 = vld [vmem:[%s632 + $0x20] sm:$0xff]
        %v2442 = vld [vmem:[%s632 + $0x28] sm:$0xff]
        %v2443 = vld [vmem:[%s632 + $0x30] sm:$0xff]
        %v2444 = vld [vmem:[%s632 + $0x38] sm:$0xff]
        %v2445 = vld [vmem:[%s635] sm:$0x1]
        %v2447 = vlaneseq
        %v2448 = vshrl.u32 %v2447, 7
        %v2449 = vsub.s32 0, %v2448
        %v2450 = vrot.slane %v2445, %v2449
        %vm2452 = vcmask 523264
        %v2454 = vsel %vm2452, %v2435, 0
        %v2457 = vsel %vm2452, %v2436, 0
        %2459 = vmatprep.subr.mxu0 0.0
        %2460 = vmatpush1.msra.mxu0 0.0
        %2461 = vmatprep.subr.mxu0 0.0
        %2462 = vmatpush1.msra.mxu0 0.0
        %2463 = vmatprep.subr.mxu0 0.0
        %2464 = vmatpush1.msra.mxu0 0.0
        %2465 = vmatprep.subr.mxu0 0.0
        %2466 = vmatpush1.msra.mxu0 0.0
        %2467 = vmatprep.subr.mxu0 0.0
        %2468 = vmatpush1.msra.mxu0 0.0
        %2469 = vmatprep.subr.mxu0 0.0
        %2470 = vmatpush1.msra.mxu0 0.0
        %2471 = vmatprep.subr.mxu0 0.0
        %2472 = vmatpush1.msra.mxu0 0.0
        %2473 = vmatprep.subr.mxu0 0.0
        %2474 = vmatpush1.msra.mxu0 0.0
        %2475 = vmatprep.subr.mxu0 0.0
        %2476 = vmatpush1.msra.mxu0 %v2444
        %2477 = vmatprep.subr.mxu0 0.0
        %2478 = vmatpush1.msra.mxu0 %v2443
        %2479 = vmatprep.subr.mxu0 0.0
        %2480 = vmatpush1.msra.mxu0 %v2442
        %2481 = vmatprep.subr.mxu0 0.0
        %2482 = vmatpush1.msra.mxu0 %v2441
        %2483 = vmatprep.subr.mxu0 0.0
        %2484 = vmatpush1.msra.mxu0 %v2440
        %2485 = vmatprep.subr.mxu0 0.0
        %2486 = vmatpush1.msra.mxu0 %v2439
        %2487 = vmatprep.subr.mxu0 0.0
        %2488 = vmatpush1.msra.mxu0 %v2438
        %2489 = vmatprep.subr.mxu0 0.0
        %2490 = vmatpush1.msra.mxu0 %v2437
        %2491 = vmatprep.subr.mxu0 0.0
        %2492 = vmatpush2.msra.mxu0 0.0
        %2493 = vmatprep.subr.mxu0 0.0
        %2494 = vmatpush2.msra.mxu0 0.0
        %2495 = vmatprep.subr.mxu0 0.0
        %2496 = vmatpush2.msra.mxu0 0.0
        %2497 = vmatprep.subr.mxu0 0.0
        %2498 = vmatpush2.msra.mxu0 0.0
        %2499 = vmatprep.subr.mxu0 0.0
        %2500 = vmatpush2.msra.mxu0 0.0
        %2501 = vmatprep.subr.mxu0 0.0
        %2502 = vmatpush2.msra.mxu0 0.0
        %2503 = vmatprep.subr.mxu0 0.0
        %2504 = vmatpush2.msra.mxu0 0.0
        %2505 = vmatprep.subr.mxu0 0.0
        %2506 = vmatpush2.msra.mxu0 0.0
        %2507 = vmatprep.subr.mxu0 0.0
        %2508 = vmatpush2.msra.mxu0 0.0
        %2509 = vmatprep.subr.mxu0 0.0
        %2510 = vmatpush2.msra.mxu0 0.0
        %2511 = vmatprep.subr.mxu0 0.0
        %2512 = vmatpush2.msra.mxu0 0.0
        %2513 = vmatprep.subr.mxu0 0.0
        %2514 = vmatpush2.msra.mxu0 0.0
        %2515 = vmatprep.subr.mxu0 0.0
        %2516 = vmatpush2.msra.mxu0 0.0
        %2517 = vmatprep.subr.mxu0 0.0
        %2518 = vmatpush2.msra.mxu0 0.0
        %2519 = vmatprep.subr.mxu0 0.0
        %2520 = vmatpush2.msra.mxu0 0.0
        %2521 = vmatprep.subr.mxu0 0.0
        %2522 = vmatpush2.msra.mxu0 0.0
        %2523 = vmatprep.mubr.f32.mxu0 0.0
        %2524 = vmatmul.mubr.f32.gmra.mxu0 %v2454
        %v2525 = vpop.f32.mrf.mxu0
        %v2526 = vadd.f32 %v2450, %v2525
        %v2527 = vpop.f32.mrf.mxu0
        %2528 = vmatprep.mubr.f32.mxu0 0.0
        %2529 = vmatmul.mubr.f32.gmra.mxu0 %v2457
        %v2530 = vpop.f32.mrf.mxu0
        %v2531 = vadd.f32 %v2450, %v2530
        %v2532 = vpop.f32.mrf.mxu0
        %2533 = vdwg.mxu0
        %v2534 = vadd.f32 %v2341, %v2526
        %v2535 = vadd.f32 %v2342, %v2531
        %v2536 = vsel %vm758, %v2534, 0.0
        %2537 = vadd.xlane.f32.xlu0 %v2536
        %v2538 = vpop.xlane.xlu0 %2537
        %v2539 = vsel %vm758, %v2535, 0.0
        %2540 = vadd.xlane.f32.xlu0 %v2539
        %v2541 = vpop.xlane.xlu0 %2540
        %v2542 = vmul.f32 %v2538, %v2310
        %v2543 = vmul.f32 %v2541, %v2310
        %v2544 = vsub.f32 %v2534, %v2542
        %v2545 = vsub.f32 %v2535, %v2543
        %v2546 = vmul.f32 %v2544, %v2544
        %v2547 = vmul.f32 %v2545, %v2545
        %v2548 = vsel %vm758, %v2546, 0.0
        %2549 = vadd.xlane.f32.xlu0 %v2548
        %v2550 = vpop.xlane.xlu0 %2549
        %v2551 = vsel %vm758, %v2547, 0.0
        %2552 = vadd.xlane.f32.xlu0 %v2551
        %v2553 = vpop.xlane.xlu0 %2552
        %v2554 = vmul.f32 %v2550, %v2310
        %v2555 = vmul.f32 %v2553, %v2310
        %v2556 = vadd.f32 %v2554, 1e-05
        %v2557 = vadd.f32 %v2555, 1e-05
        %v2558 = vrsqrt.pop %v2556
        %v2559 = vrsqrt.pop %v2557
        %v2560 = vmul.f32 %v2544, %v2558
        %v2561 = vmul.f32 %v2545, %v2559
        %v2562 = vlaneseq
        %v2563 = vshrl.u32 %v2562, 7
        %v2564 = vsub.s32 2, %v2563
        %v2565 = vrot.slane %v2301, %v2564
        %v2566 = vmul.f32 %v2560, %v2565
        %v2567 = vmul.f32 %v2561, %v2565
        %v2568 = vlaneseq
        %v2569 = vshrl.u32 %v2568, 7
        %v2570 = vsub.s32 3, %v2569
        %v2571 = vrot.slane %v2301, %v2570
        %v2572 = vadd.f32 %v2566, %v2571
        %v2573 = vadd.f32 %v2567, %v2571
        %2574 = vst.msk [vmem:[#allocation2] sm:$0xff] %vm758, %v2572
        %2575 = vst.msk [vmem:[#allocation2 + $0x8] sm:$0xff] %vm758, %v2573
        %p2576 = scmp.eq.s32.totalorder %s31, 1
        // Predicated region
        $region85: #{tpu_custom_call.1} parent=71 // pred_check
          %p2577 = pneg %p2576
        $region86: #{tpu_custom_call.1} parent=71 // pred_check_branch
          %2579 = sbr.rel (%p2577) target = $region88
        $region87: #{tpu_custom_call.1} parent=71 // pred_region
          %2580 = vst.msk [vmem:[#allocation8] sm:$0xff] %vm758, %v2572
          %2581 = vst.msk [vmem:[#allocation8 + $0x8] sm:$0xff] %vm758, %v2573
          %2582 = vst.msk [vmem:[%s15] sm:$0xff] %vm843, %v1525
          %2583 = vst.msk [vmem:[%s15 + $0x8] sm:$0xff] %vm843, %v2208
          %v2585 = vrot.slane %v2572, 7
          %v2588 = vrot.slane %v2573, 6
          %vm2590 = vcmask 1040384
          %v2591 = vsel %vm2590, %v2585, %v2588
          %vm2592 = vcmask 254976
          %2593 = vst.msk [vmem:[#allocation9] sm:$0x3] %vm2592, %v2591
        $region88: #{tpu_custom_call.1} parent=71 // pred_fallthru
          _
        // Predicated region
        $region89: #{tpu_custom_call.1} parent=71 // pred_check
          %p2594 = pneg %p362
        $region90: #{tpu_custom_call.1} parent=71 // pred_check_branch
          %2596 = sbr.rel (%p2594) target = $region92
        $region91: #{tpu_custom_call.1} parent=71 // pred_region
          %s2598 = ssub.s32 256, 256
          %2599 = vsyncadd [#allocation5], %s2598
          %s2600 = sshll.u32 [#allocation8], 4
          %s2601 = int_to_ptr.vmem [resolvable:$true] %s2600
          %2606 = dma.vmem_to_hbm [thread:$0]  %s2601, 256, %s13, [#allocation5], 128, 128, 8
        $region92: #{tpu_custom_call.1} parent=71 // pred_fallthru
          _
        // Predicated region
        $region93: #{tpu_custom_call.1} parent=71 // pred_check
          %p2607 = pneg %p383
        $region94: #{tpu_custom_call.1} parent=71 // pred_check_branch
          %2609 = sbr.rel (%p2607) target = $region96
        $region95: #{tpu_custom_call.1} parent=71 // pred_region
          %s2611 = ssub.s32 32, 32
          %2612 = vsyncadd [#allocation10], %s2611
          %s2614 = sshll.u32 [#allocation9], 4
          %s2615 = int_to_ptr.vmem [resolvable:$true] %s2614
          %2617 = dma.vmem_to_hbm [thread:$0]  %s2615, 32, %s14, [#allocation10]
        $region96: #{tpu_custom_call.1} parent=71 // pred_fallthru
          _
        // Predicated region
        $region97: #{tpu_custom_call.1} parent=71 // pred_check
          %p2618 = pneg %p404
        $region98: #{tpu_custom_call.1} parent=71 // pred_check_branch
          %2620 = sbr.rel (%p2618) target = $region100
        $region99: #{tpu_custom_call.1} parent=71 // pred_region
          _
        $region100: #{tpu_custom_call.1} parent=71 // pred_fallthru
          _
        // Predicated region
        $region101: #{tpu_custom_call.1} parent=71 // pred_check
          %p2621 = pneg %p362
        $region102: #{tpu_custom_call.1} parent=71 // pred_check_branch
          %2623 = sbr.rel (%p2621) target = $region104
        $region103: #{tpu_custom_call.1} parent=71 // pred_region
          %2624 = dma.done [#allocation5], 256
        $region104: #{tpu_custom_call.1} parent=71 // pred_fallthru
          _
        // Predicated region
        $region105: #{tpu_custom_call.1} parent=71 // pred_check
          %p2625 = pneg %p383
        $region106: #{tpu_custom_call.1} parent=71 // pred_check_branch
          %2627 = sbr.rel (%p2625) target = $region108
        $region107: #{tpu_custom_call.1} parent=71 // pred_region
          %2628 = dma.done [#allocation10], 32
        $region108: #{tpu_custom_call.1} parent=71 // pred_fallthru
          _
        // Predicated region
        $region109: #{tpu_custom_call.1} parent=71 // pred_check
          %p2629 = pneg %p404
        $region110: #{tpu_custom_call.1} parent=71 // pred_check_branch
          %2631 = sbr.rel (%p2629) target = $region112
        $region111: #{tpu_custom_call.1} parent=71 // pred_region
          _
        $region112: #{tpu_custom_call.1} parent=71 // pred_fallthru
          _
      $region72: #{tpu_custom_call.1} parent=5 // pred_fallthru
        _
      %p2632 = scmp.le.s32.totalorder 2, %s26
      // Predicated region
      $region113: #{tpu_custom_call.1} parent=5 // pred_check
        %p2633 = pneg %p2632
      $region114: #{tpu_custom_call.1} parent=5 // pred_check_branch
        %2635 = sbr.rel (%p2633) target = $region116
      $region115: #{tpu_custom_call.1} parent=5 // pred_region
        %s2636 = ssub.s32 %s26, 2
      $region116: #{tpu_custom_call.1} parent=5 // pred_fallthru
        _
    $region6: #{tpu_custom_call.1} parent=1 // loop_footer
      %s30 = sadd.s32 1, %s26
    $region7: #{tpu_custom_call.1} parent=1 // loop_footer_branch
      %25 = sbr.rel target = $region3
    $region8: #{tpu_custom_call.1} parent=1 // loop_exit
      _
    %2637 = vsyncpa [#allocation4], 1
    %s2638 = scalar_lea.sflag [#allocation4], 1
    %2639 = vsyncpa %s2638, 1
    %2640 = vsyncpa [#allocation7], 1
    %2641 = vsyncpa [#allocation5], 1
    %s2642 = scalar_lea.sflag [#allocation5], 1
    %2643 = vsyncpa %s2642, 1
    %2644 = vsyncpa [#allocation10], 1

</llo_original>
